<compile_context>
chip_gen: v7x
topology: tpu7x:2x2x1
jax: 0.10.0
libtpu: 0.0.40
codegen_flags: <defaults>
</compile_context>

<pallas_src>
import functools

import jax
import jax.numpy as jnp
from jax.experimental import pallas as pl
from jax.experimental.pallas import tpu as pltpu  # noqa: F401  (kept for TPU-specific tuning hooks)

# ---------------- model hyper-parameters (small, consistent with the module) ----------
DIM = 32        # model dim
DEPTH = 2       # number of TransformerBlocks
HEADS = 4
DIM_HEAD = 8    # inner_dim = 32
MLP_DIM = 64
SEQ = 8
BATCH = 2
EPS = 1e-5
INNER = HEADS * DIM_HEAD


# ---------------------------- Pallas kernel (whole transformer) -----------------------
def transformer_kernel(x_ref,
                       wqkv_ref, bqkv_ref, wo_ref, bo_ref,
                       w1_ref, b1_ref, w2_ref, b2_ref,
                       o_ref,
                       *, depth, heads, dim_head, batch, seq):
    bn = batch * seq
    inner = heads * dim_head
    x = x_ref[...]                                 # (B*N, D) f32, resident in VMEM for all layers

    for l in range(depth):                         # static unrolled layer loop (fused blocks)
        wqkv, bqkv = wqkv_ref[l], bqkv_ref[l]      # (D, 3*inner), (1, 3*inner)  LN1 affine + scale folded
        wo, bo = wo_ref[l], bo_ref[l]              # (inner, D), (1, D)
        w1, b1 = w1_ref[l], b1_ref[l]              # (D, MLP), (1, MLP)          LN2 affine folded
        w2, b2 = w2_ref[l], b2_ref[l]              # (MLP, D), (1, D)

        # ---------------- attention branch (pre-LN; affine folded into wqkv/bqkv) -----
        mu = jnp.mean(x, axis=-1, keepdims=True)
        var = jnp.mean((x - mu) ** 2, axis=-1, keepdims=True)
        xn = (x - mu) * jax.lax.rsqrt(var + EPS)
        qkv = jnp.dot(xn, wqkv, preferred_element_type=jnp.float32) + bqkv   # (B*N, 3*inner)

        attn_proj = jnp.zeros((bn, x.shape[-1]), jnp.float32)
        for h in range(heads):                     # static; each iter batched over B, no concat
            lo = h * dim_head
            qh = qkv[:, 0 * inner + lo:0 * inner + lo + dim_head].reshape(batch, seq, dim_head)
            kh = qkv[:, 1 * inner + lo:1 * inner + lo + dim_head].reshape(batch, seq, dim_head)
            vh = qkv[:, 2 * inner + lo:2 * inner + lo + dim_head].reshape(batch, seq, dim_head)
            dots = jnp.einsum('bnd,bmd->bnm', qh, kh,
                              preferred_element_type=jnp.float32)            # (B, N, N); scale in q
            dots = dots - jnp.max(dots, axis=-1, keepdims=True)
            e = jnp.exp(dots)
            p = e * pl.reciprocal(jnp.sum(e, axis=-1, keepdims=True), approx=True)
            oh = jnp.einsum('bnm,bmd->bnd', p, vh,
                            preferred_element_type=jnp.float32)              # (B, N, dh)
            # fold head output straight into the out-projection (no head concatenate)
            attn_proj = attn_proj + jnp.dot(oh.reshape(bn, dim_head),
                                            wo[lo:lo + dim_head, :],
                                            preferred_element_type=jnp.float32)
        x = x + attn_proj + bo                                                # residual (+ out-proj bias)

        # ---------------- MLP branch (pre-LN; affine folded into w1/b1) ---------------
        mu2 = jnp.mean(x, axis=-1, keepdims=True)
        var2 = jnp.mean((x - mu2) ** 2, axis=-1, keepdims=True)
        xn2 = (x - mu2) * jax.lax.rsqrt(var2 + EPS)
        h1 = jnp.dot(xn2, w1, preferred_element_type=jnp.float32) + b1
        h1 = 0.5 * h1 * (1.0 + jax.lax.erf(h1 * 0.7071067811865476))          # exact GELU (nn.GELU default)
        x = x + jnp.dot(h1, w2, preferred_element_type=jnp.float32) + b2

    o_ref[...] = x                                 # single store of the final slab


# ---------------------------- wrapper ---------------------------------------------------
def _stack_and_prepare(layer_params):
    """Stack per-layer params along a leading DEPTH axis.

    Folds (done once, outside the kernel):
      * LN1 affine into wqkv  -> wqkv_f = diag(ln1_w) @ wqkv ;  bqkv = ln1_b @ wqkv
      * LN2 affine into w1    -> w1_f   = diag(ln2_w) @ w1   ;  b1_f = b1 + ln2_b @ w1
      * softmax 1/sqrt(dh) scale into the q columns of wqkv_f / bqkv
    """
    scale = DIM_HEAD ** (-0.5)
    stack = lambda name: jnp.stack([p[name] for p in layer_params], axis=0)

    ln1w, ln1b = stack("ln1_w"), stack("ln1_b")          # (L, 1, D)
    wqkv = stack("wqkv")                                 # (L, D, 3*inner)
    wqkv_f = wqkv * jnp.transpose(ln1w, (0, 2, 1))       # row-scale by ln1_w
    bqkv = jnp.matmul(ln1b, wqkv)                        # (L, 1, 3*inner)
    wqkv_f = wqkv_f.at[:, :, :INNER].multiply(scale)     # dots*scale == (q*scale)·k
    bqkv = bqkv.at[:, :, :INNER].multiply(scale)

    ln2w, ln2b = stack("ln2_w"), stack("ln2_b")          # (L, 1, D)
    w1 = stack("w1")                                     # (L, D, MLP)
    w1_f = w1 * jnp.transpose(ln2w, (0, 2, 1))
    b1_f = stack("b1") + jnp.matmul(ln2b, w1)            # (L, 1, MLP)

    return (wqkv_f, bqkv, stack("wo"), stack("bo"),
            w1_f, b1_f, stack("w2"), stack("b2"))


def transformer_forward(x, layer_params):
    """Run the whole Transformer (all layers, all batch) in one pallas_call."""
    B, N, D = x.shape
    params = _stack_and_prepare(layer_params)
    kernel = functools.partial(transformer_kernel,
                               depth=len(layer_params), heads=HEADS,
                               dim_head=DIM_HEAD, batch=B, seq=N)
    out_flat = pl.pallas_call(
        kernel,
        out_shape=jax.ShapeDtypeStruct((B * N, D), jnp.float32),
    )(x.reshape(B * N, D), *params)
    # TODO(synk): return_attn=True path (per-layer attention maps) not implemented.
    return out_flat.reshape(B, N, D)


# ---------------------------- pure-JAX reference (for verification) --------------------
def _ref_block(x, p):
    def ln(v, w, b):
        mu = jnp.mean(v, axis=-1, keepdims=True)
        var = jnp.mean((v - mu) ** 2, axis=-1, keepdims=True)
        return (v - mu) / jnp.sqrt(var + EPS) * w + b

    B, N, D = x.shape
    xn = ln(x, p["ln1_w"], p["ln1_b"])
    qkv = xn @ p["wqkv"]
    q, k, v = jnp.split(qkv, 3, axis=-1)

    def to_heads(t):
        return t.reshape(B, N, HEADS, DIM_HEAD).transpose(0, 2, 1, 3)

    q, k, v = to_heads(q), to_heads(k), to_heads(v)
    dots = jnp.einsum("bhnd,bhmd->bhnm", q, k) * (DIM_HEAD ** -0.5)
    attn = jax.nn.softmax(dots, axis=-1)
    out = jnp.einsum("bhnm,bhmd->bhnd", attn, v)
    out = out.transpose(0, 2, 1, 3).reshape(B, N, INNER)
    out = out @ p["wo"] + p["bo"]
    x = x + out
    xn2 = ln(x, p["ln2_w"], p["ln2_b"])
    h1 = xn2 @ p["w1"] + p["b1"]
    h1 = 0.5 * h1 * (1.0 + jax.lax.erf(h1 / jnp.sqrt(2.0)))
    h2 = h1 @ p["w2"] + p["b2"]
    return x + h2


def _ref_forward(x, layer_params):
    for p in layer_params:
        x = _ref_block(x, p)
    return x


# ---------------------------- deterministic parameter init -----------------------------
def init_params(key):
    layers = []
    for _ in range(DEPTH):
        key, k1, k2, k3, k4, k5, k6 = jax.random.split(key, 7)
        layers.append(dict(
            ln1_w=1.0 + 0.1 * jax.random.normal(k5, (1, DIM), jnp.float32),
            ln1_b=0.05 * jax.random.normal(k6, (1, DIM), jnp.float32),
            wqkv=0.05 * jax.random.normal(k1, (DIM, 3 * INNER), jnp.float32),
            wo=0.05 * jax.random.normal(k2, (INNER, DIM), jnp.float32),
            bo=jnp.zeros((1, DIM), jnp.float32),
            ln2_w=jnp.ones((1, DIM), jnp.float32),
            ln2_b=jnp.zeros((1, DIM), jnp.float32),
            w1=0.05 * jax.random.normal(k3, (DIM, MLP_DIM), jnp.float32),
            b1=jnp.zeros((1, MLP_DIM), jnp.float32),
            w2=0.05 * jax.random.normal(k4, (MLP_DIM, DIM), jnp.float32),
            b2=jnp.zeros((1, DIM), jnp.float32),
        ))
    return layers


# ---------------------------- main ------------------------------------------------------
if __name__ == "__main__":
    key = jax.random.PRNGKey(0)
    key, kx = jax.random.split(key)
    x = jax.random.normal(kx, (BATCH, SEQ, DIM), jnp.float32)

    layer_params = init_params(key)

    out = transformer_forward(x, layer_params)
    out = jax.block_until_ready(out)

    ref = _ref_forward(x, layer_params)
    assert out.shape == (BATCH, SEQ, DIM)
    assert jnp.allclose(out, ref, atol=2e-2, rtol=2e-2), "mismatch vs pure-JAX reference"

    print("KERNEL_OK")
</pallas_src>

<mosaic_0001>
module attributes {stable_mosaic.version = 11 : i64} {
  func.func @transformer_kernel(%arg0: memref<16x32xf32, #tpu.memory_space<vmem>>, %arg1: memref<2x32x96xf32, #tpu.memory_space<vmem>>, %arg2: memref<2x1x96xf32, #tpu.memory_space<vmem>>, %arg3: memref<2x32x32xf32, #tpu.memory_space<vmem>>, %arg4: memref<2x1x32xf32, #tpu.memory_space<vmem>>, %arg5: memref<2x32x64xf32, #tpu.memory_space<vmem>>, %arg6: memref<2x1x64xf32, #tpu.memory_space<vmem>>, %arg7: memref<2x64x32xf32, #tpu.memory_space<vmem>>, %arg8: memref<2x1x32xf32, #tpu.memory_space<vmem>>, %arg9: memref<16x32xf32, #tpu.memory_space<vmem>>) attributes {dimension_semantics = [], scalar_prefetch = 0 : i64, scratch_operands = 0 : i64, tpu.core_type = #tpu.core_type<tc>} {
    %c0 = arith.constant 0 : index
    %c0_0 = arith.constant 0 : index
    %0 = vector.load %arg0[%c0, %c0_0] : memref<16x32xf32, #tpu.memory_space<vmem>>, vector<16x32xf32>
    %c0_1 = arith.constant 0 : index
    %c0_2 = arith.constant 0 : index
    %c0_3 = arith.constant 0 : index
    %1 = vector.load %arg1[%c0_1, %c0_2, %c0_3] : memref<2x32x96xf32, #tpu.memory_space<vmem>>, vector<1x32x96xf32>
    %2 = vector.shape_cast %1 : vector<1x32x96xf32> to vector<32x96xf32>
    %c0_4 = arith.constant 0 : index
    %c0_5 = arith.constant 0 : index
    %c0_6 = arith.constant 0 : index
    %3 = vector.load %arg2[%c0_4, %c0_5, %c0_6] : memref<2x1x96xf32, #tpu.memory_space<vmem>>, vector<1x1x96xf32>
    %4 = vector.shape_cast %3 : vector<1x1x96xf32> to vector<1x96xf32>
    %c0_7 = arith.constant 0 : index
    %c0_8 = arith.constant 0 : index
    %c0_9 = arith.constant 0 : index
    %5 = vector.load %arg3[%c0_7, %c0_8, %c0_9] : memref<2x32x32xf32, #tpu.memory_space<vmem>>, vector<1x32x32xf32>
    %6 = vector.shape_cast %5 : vector<1x32x32xf32> to vector<32x32xf32>
    %c0_10 = arith.constant 0 : index
    %c0_11 = arith.constant 0 : index
    %c0_12 = arith.constant 0 : index
    %7 = vector.load %arg4[%c0_10, %c0_11, %c0_12] : memref<2x1x32xf32, #tpu.memory_space<vmem>>, vector<1x1x32xf32>
    %8 = vector.shape_cast %7 : vector<1x1x32xf32> to vector<1x32xf32>
    %c0_13 = arith.constant 0 : index
    %c0_14 = arith.constant 0 : index
    %c0_15 = arith.constant 0 : index
    %9 = vector.load %arg5[%c0_13, %c0_14, %c0_15] : memref<2x32x64xf32, #tpu.memory_space<vmem>>, vector<1x32x64xf32>
    %10 = vector.shape_cast %9 : vector<1x32x64xf32> to vector<32x64xf32>
    %c0_16 = arith.constant 0 : index
    %c0_17 = arith.constant 0 : index
    %c0_18 = arith.constant 0 : index
    %11 = vector.load %arg6[%c0_16, %c0_17, %c0_18] : memref<2x1x64xf32, #tpu.memory_space<vmem>>, vector<1x1x64xf32>
    %12 = vector.shape_cast %11 : vector<1x1x64xf32> to vector<1x64xf32>
    %c0_19 = arith.constant 0 : index
    %c0_20 = arith.constant 0 : index
    %c0_21 = arith.constant 0 : index
    %13 = vector.load %arg7[%c0_19, %c0_20, %c0_21] : memref<2x64x32xf32, #tpu.memory_space<vmem>>, vector<1x64x32xf32>
    %14 = vector.shape_cast %13 : vector<1x64x32xf32> to vector<64x32xf32>
    %c0_22 = arith.constant 0 : index
    %c0_23 = arith.constant 0 : index
    %c0_24 = arith.constant 0 : index
    %15 = vector.load %arg8[%c0_22, %c0_23, %c0_24] : memref<2x1x32xf32, #tpu.memory_space<vmem>>, vector<1x1x32xf32>
    %16 = vector.shape_cast %15 : vector<1x1x32xf32> to vector<1x32xf32>
    %cst = arith.constant dense<0.000000e+00> : vector<16xf32>
    %17 = vector.multi_reduction <add>, %0, %cst [1] : vector<16x32xf32> to vector<16xf32>
    %18 = vector.shape_cast %17 : vector<16xf32> to vector<16x1xf32>
    %cst_25 = arith.constant 3.200000e+01 : f32
    %19 = vector.broadcast %cst_25 : f32 to vector<16x1xf32>
    %20 = arith.divf %18, %19 : vector<16x1xf32>
    %21 = vector.broadcast %20 : vector<16x1xf32> to vector<16x32xf32>
    %22 = arith.subf %0, %21 : vector<16x32xf32>
    %23 = arith.mulf %22, %22 : vector<16x32xf32>
    %cst_26 = arith.constant dense<0.000000e+00> : vector<16xf32>
    %24 = vector.multi_reduction <add>, %23, %cst_26 [1] : vector<16x32xf32> to vector<16xf32>
    %25 = vector.shape_cast %24 : vector<16xf32> to vector<16x1xf32>
    %cst_27 = arith.constant 3.200000e+01 : f32
    %26 = vector.broadcast %cst_27 : f32 to vector<16x1xf32>
    %27 = arith.divf %25, %26 : vector<16x1xf32>
    %28 = vector.broadcast %20 : vector<16x1xf32> to vector<16x32xf32>
    %29 = arith.subf %0, %28 : vector<16x32xf32>
    %cst_28 = arith.constant 9.99999974E-6 : f32
    %30 = vector.broadcast %cst_28 : f32 to vector<16x1xf32>
    %31 = arith.addf %27, %30 : vector<16x1xf32>
    %32 = math.rsqrt %31 : vector<16x1xf32>
    %33 = vector.broadcast %32 : vector<16x1xf32> to vector<16x32xf32>
    %34 = arith.mulf %29, %33 : vector<16x32xf32>
    %cst_29 = arith.constant dense<0.000000e+00> : vector<16x96xf32>
    %35 = tpu.matmul %34, %2, %cst_29 {dimension_numbers = #tpu.dot_dimension_numbers<[1], [0], [0], [1], [0, 0, 1, 1], [], []>} : vector<16x32xf32>, vector<32x96xf32>, vector<16x96xf32> -> vector<16x96xf32>
    %36 = vector.broadcast %4 : vector<1x96xf32> to vector<16x96xf32>
    %37 = arith.addf %35, %36 : vector<16x96xf32>
    %cst_30 = arith.constant 0.000000e+00 : f32
    %38 = vector.broadcast %cst_30 : f32 to vector<16x32xf32>
    %39 = vector.extract_strided_slice %37 {offsets = [0, 0], sizes = [16, 8], strides = [1, 1]} : vector<16x96xf32> to vector<16x8xf32>
    %40 = vector.shape_cast %39 : vector<16x8xf32> to vector<2x8x8xf32>
    %41 = vector.extract_strided_slice %37 {offsets = [0, 32], sizes = [16, 8], strides = [1, 1]} : vector<16x96xf32> to vector<16x8xf32>
    %42 = vector.shape_cast %41 : vector<16x8xf32> to vector<2x8x8xf32>
    %43 = vector.extract_strided_slice %37 {offsets = [0, 64], sizes = [16, 8], strides = [1, 1]} : vector<16x96xf32> to vector<16x8xf32>
    %44 = vector.shape_cast %43 : vector<16x8xf32> to vector<2x8x8xf32>
    "tpu.trace_start"() <{level = 10 : i32, message = "bnd,bmd->bnm"}> : () -> ()
    %cst_31 = arith.constant dense<0.000000e+00> : vector<2x8x8xf32>
    %45 = tpu.matmul %40, %42, %cst_31 {dimension_numbers = #tpu.dot_dimension_numbers<[2], [2], [1], [1], [0, 0, 0, 1, 1, 1], [0], [0]>} : vector<2x8x8xf32>, vector<2x8x8xf32>, vector<2x8x8xf32> -> vector<2x8x8xf32>
    "tpu.trace_stop"() : () -> ()
    %cst_32 = arith.constant dense<0xFF800000> : vector<2x8xf32>
    %46 = vector.multi_reduction <maximumf>, %45, %cst_32 [2] : vector<2x8x8xf32> to vector<2x8xf32>
    %47 = vector.shape_cast %46 : vector<2x8xf32> to vector<2x8x1xf32>
    %48 = vector.broadcast %47 : vector<2x8x1xf32> to vector<2x8x8xf32>
    %49 = arith.subf %45, %48 : vector<2x8x8xf32>
    %50 = math.exp %49 : vector<2x8x8xf32>
    %cst_33 = arith.constant dense<0.000000e+00> : vector<2x8xf32>
    %51 = vector.multi_reduction <add>, %50, %cst_33 [2] : vector<2x8x8xf32> to vector<2x8xf32>
    %52 = vector.shape_cast %51 : vector<2x8xf32> to vector<2x8x1xf32>
    %53 = tpu.reciprocal %52 {approx = true} : vector<2x8x1xf32> -> vector<2x8x1xf32>
    %54 = vector.broadcast %53 : vector<2x8x1xf32> to vector<2x8x8xf32>
    %55 = arith.mulf %50, %54 : vector<2x8x8xf32>
    "tpu.trace_start"() <{level = 10 : i32, message = "bnm,bmd->bnd"}> : () -> ()
    %cst_34 = arith.constant dense<0.000000e+00> : vector<2x8x8xf32>
    %56 = tpu.matmul %55, %44, %cst_34 {dimension_numbers = #tpu.dot_dimension_numbers<[2], [1], [1], [2], [0, 0, 0, 1, 1, 2], [0], [0]>} : vector<2x8x8xf32>, vector<2x8x8xf32>, vector<2x8x8xf32> -> vector<2x8x8xf32>
    "tpu.trace_stop"() : () -> ()
    %57 = vector.shape_cast %56 : vector<2x8x8xf32> to vector<16x8xf32>
    %58 = vector.extract_strided_slice %6 {offsets = [0, 0], sizes = [8, 32], strides = [1, 1]} : vector<32x32xf32> to vector<8x32xf32>
    %cst_35 = arith.constant dense<0.000000e+00> : vector<16x32xf32>
    %59 = tpu.matmul %57, %58, %cst_35 {dimension_numbers = #tpu.dot_dimension_numbers<[1], [0], [0], [1], [0, 0, 1, 1], [], []>} : vector<16x8xf32>, vector<8x32xf32>, vector<16x32xf32> -> vector<16x32xf32>
    %60 = arith.addf %38, %59 : vector<16x32xf32>
    %61 = vector.extract_strided_slice %37 {offsets = [0, 8], sizes = [16, 8], strides = [1, 1]} : vector<16x96xf32> to vector<16x8xf32>
    %62 = vector.shape_cast %61 : vector<16x8xf32> to vector<2x8x8xf32>
    %63 = vector.extract_strided_slice %37 {offsets = [0, 40], sizes = [16, 8], strides = [1, 1]} : vector<16x96xf32> to vector<16x8xf32>
    %64 = vector.shape_cast %63 : vector<16x8xf32> to vector<2x8x8xf32>
    %65 = vector.extract_strided_slice %37 {offsets = [0, 72], sizes = [16, 8], strides = [1, 1]} : vector<16x96xf32> to vector<16x8xf32>
    %66 = vector.shape_cast %65 : vector<16x8xf32> to vector<2x8x8xf32>
    "tpu.trace_start"() <{level = 10 : i32, message = "bnd,bmd->bnm"}> : () -> ()
    %cst_36 = arith.constant dense<0.000000e+00> : vector<2x8x8xf32>
    %67 = tpu.matmul %62, %64, %cst_36 {dimension_numbers = #tpu.dot_dimension_numbers<[2], [2], [1], [1], [0, 0, 0, 1, 1, 1], [0], [0]>} : vector<2x8x8xf32>, vector<2x8x8xf32>, vector<2x8x8xf32> -> vector<2x8x8xf32>
    "tpu.trace_stop"() : () -> ()
    %cst_37 = arith.constant dense<0xFF800000> : vector<2x8xf32>
    %68 = vector.multi_reduction <maximumf>, %67, %cst_37 [2] : vector<2x8x8xf32> to vector<2x8xf32>
    %69 = vector.shape_cast %68 : vector<2x8xf32> to vector<2x8x1xf32>
    %70 = vector.broadcast %69 : vector<2x8x1xf32> to vector<2x8x8xf32>
    %71 = arith.subf %67, %70 : vector<2x8x8xf32>
    %72 = math.exp %71 : vector<2x8x8xf32>
    %cst_38 = arith.constant dense<0.000000e+00> : vector<2x8xf32>
    %73 = vector.multi_reduction <add>, %72, %cst_38 [2] : vector<2x8x8xf32> to vector<2x8xf32>
    %74 = vector.shape_cast %73 : vector<2x8xf32> to vector<2x8x1xf32>
    %75 = tpu.reciprocal %74 {approx = true} : vector<2x8x1xf32> -> vector<2x8x1xf32>
    %76 = vector.broadcast %75 : vector<2x8x1xf32> to vector<2x8x8xf32>
    %77 = arith.mulf %72, %76 : vector<2x8x8xf32>
    "tpu.trace_start"() <{level = 10 : i32, message = "bnm,bmd->bnd"}> : () -> ()
    %cst_39 = arith.constant dense<0.000000e+00> : vector<2x8x8xf32>
    %78 = tpu.matmul %77, %66, %cst_39 {dimension_numbers = #tpu.dot_dimension_numbers<[2], [1], [1], [2], [0, 0, 0, 1, 1, 2], [0], [0]>} : vector<2x8x8xf32>, vector<2x8x8xf32>, vector<2x8x8xf32> -> vector<2x8x8xf32>
    "tpu.trace_stop"() : () -> ()
    %79 = vector.shape_cast %78 : vector<2x8x8xf32> to vector<16x8xf32>
    %80 = vector.extract_strided_slice %6 {offsets = [8, 0], sizes = [8, 32], strides = [1, 1]} : vector<32x32xf32> to vector<8x32xf32>
    %cst_40 = arith.constant dense<0.000000e+00> : vector<16x32xf32>
    %81 = tpu.matmul %79, %80, %cst_40 {dimension_numbers = #tpu.dot_dimension_numbers<[1], [0], [0], [1], [0, 0, 1, 1], [], []>} : vector<16x8xf32>, vector<8x32xf32>, vector<16x32xf32> -> vector<16x32xf32>
    %82 = arith.addf %60, %81 : vector<16x32xf32>
    %83 = vector.extract_strided_slice %37 {offsets = [0, 16], sizes = [16, 8], strides = [1, 1]} : vector<16x96xf32> to vector<16x8xf32>
    %84 = vector.shape_cast %83 : vector<16x8xf32> to vector<2x8x8xf32>
    %85 = vector.extract_strided_slice %37 {offsets = [0, 48], sizes = [16, 8], strides = [1, 1]} : vector<16x96xf32> to vector<16x8xf32>
    %86 = vector.shape_cast %85 : vector<16x8xf32> to vector<2x8x8xf32>
    %87 = vector.extract_strided_slice %37 {offsets = [0, 80], sizes = [16, 8], strides = [1, 1]} : vector<16x96xf32> to vector<16x8xf32>
    %88 = vector.shape_cast %87 : vector<16x8xf32> to vector<2x8x8xf32>
    "tpu.trace_start"() <{level = 10 : i32, message = "bnd,bmd->bnm"}> : () -> ()
    %cst_41 = arith.constant dense<0.000000e+00> : vector<2x8x8xf32>
    %89 = tpu.matmul %84, %86, %cst_41 {dimension_numbers = #tpu.dot_dimension_numbers<[2], [2], [1], [1], [0, 0, 0, 1, 1, 1], [0], [0]>} : vector<2x8x8xf32>, vector<2x8x8xf32>, vector<2x8x8xf32> -> vector<2x8x8xf32>
    "tpu.trace_stop"() : () -> ()
    %cst_42 = arith.constant dense<0xFF800000> : vector<2x8xf32>
    %90 = vector.multi_reduction <maximumf>, %89, %cst_42 [2] : vector<2x8x8xf32> to vector<2x8xf32>
    %91 = vector.shape_cast %90 : vector<2x8xf32> to vector<2x8x1xf32>
    %92 = vector.broadcast %91 : vector<2x8x1xf32> to vector<2x8x8xf32>
    %93 = arith.subf %89, %92 : vector<2x8x8xf32>
    %94 = math.exp %93 : vector<2x8x8xf32>
    %cst_43 = arith.constant dense<0.000000e+00> : vector<2x8xf32>
    %95 = vector.multi_reduction <add>, %94, %cst_43 [2] : vector<2x8x8xf32> to vector<2x8xf32>
    %96 = vector.shape_cast %95 : vector<2x8xf32> to vector<2x8x1xf32>
    %97 = tpu.reciprocal %96 {approx = true} : vector<2x8x1xf32> -> vector<2x8x1xf32>
    %98 = vector.broadcast %97 : vector<2x8x1xf32> to vector<2x8x8xf32>
    %99 = arith.mulf %94, %98 : vector<2x8x8xf32>
    "tpu.trace_start"() <{level = 10 : i32, message = "bnm,bmd->bnd"}> : () -> ()
    %cst_44 = arith.constant dense<0.000000e+00> : vector<2x8x8xf32>
    %100 = tpu.matmul %99, %88, %cst_44 {dimension_numbers = #tpu.dot_dimension_numbers<[2], [1], [1], [2], [0, 0, 0, 1, 1, 2], [0], [0]>} : vector<2x8x8xf32>, vector<2x8x8xf32>, vector<2x8x8xf32> -> vector<2x8x8xf32>
    "tpu.trace_stop"() : () -> ()
    %101 = vector.shape_cast %100 : vector<2x8x8xf32> to vector<16x8xf32>
    %102 = vector.extract_strided_slice %6 {offsets = [16, 0], sizes = [8, 32], strides = [1, 1]} : vector<32x32xf32> to vector<8x32xf32>
    %cst_45 = arith.constant dense<0.000000e+00> : vector<16x32xf32>
    %103 = tpu.matmul %101, %102, %cst_45 {dimension_numbers = #tpu.dot_dimension_numbers<[1], [0], [0], [1], [0, 0, 1, 1], [], []>} : vector<16x8xf32>, vector<8x32xf32>, vector<16x32xf32> -> vector<16x32xf32>
    %104 = arith.addf %82, %103 : vector<16x32xf32>
    %105 = vector.extract_strided_slice %37 {offsets = [0, 24], sizes = [16, 8], strides = [1, 1]} : vector<16x96xf32> to vector<16x8xf32>
    %106 = vector.shape_cast %105 : vector<16x8xf32> to vector<2x8x8xf32>
    %107 = vector.extract_strided_slice %37 {offsets = [0, 56], sizes = [16, 8], strides = [1, 1]} : vector<16x96xf32> to vector<16x8xf32>
    %108 = vector.shape_cast %107 : vector<16x8xf32> to vector<2x8x8xf32>
    %109 = vector.extract_strided_slice %37 {offsets = [0, 88], sizes = [16, 8], strides = [1, 1]} : vector<16x96xf32> to vector<16x8xf32>
    %110 = vector.shape_cast %109 : vector<16x8xf32> to vector<2x8x8xf32>
    "tpu.trace_start"() <{level = 10 : i32, message = "bnd,bmd->bnm"}> : () -> ()
    %cst_46 = arith.constant dense<0.000000e+00> : vector<2x8x8xf32>
    %111 = tpu.matmul %106, %108, %cst_46 {dimension_numbers = #tpu.dot_dimension_numbers<[2], [2], [1], [1], [0, 0, 0, 1, 1, 1], [0], [0]>} : vector<2x8x8xf32>, vector<2x8x8xf32>, vector<2x8x8xf32> -> vector<2x8x8xf32>
    "tpu.trace_stop"() : () -> ()
    %cst_47 = arith.constant dense<0xFF800000> : vector<2x8xf32>
    %112 = vector.multi_reduction <maximumf>, %111, %cst_47 [2] : vector<2x8x8xf32> to vector<2x8xf32>
    %113 = vector.shape_cast %112 : vector<2x8xf32> to vector<2x8x1xf32>
    %114 = vector.broadcast %113 : vector<2x8x1xf32> to vector<2x8x8xf32>
    %115 = arith.subf %111, %114 : vector<2x8x8xf32>
    %116 = math.exp %115 : vector<2x8x8xf32>
    %cst_48 = arith.constant dense<0.000000e+00> : vector<2x8xf32>
    %117 = vector.multi_reduction <add>, %116, %cst_48 [2] : vector<2x8x8xf32> to vector<2x8xf32>
    %118 = vector.shape_cast %117 : vector<2x8xf32> to vector<2x8x1xf32>
    %119 = tpu.reciprocal %118 {approx = true} : vector<2x8x1xf32> -> vector<2x8x1xf32>
    %120 = vector.broadcast %119 : vector<2x8x1xf32> to vector<2x8x8xf32>
    %121 = arith.mulf %116, %120 : vector<2x8x8xf32>
    "tpu.trace_start"() <{level = 10 : i32, message = "bnm,bmd->bnd"}> : () -> ()
    %cst_49 = arith.constant dense<0.000000e+00> : vector<2x8x8xf32>
    %122 = tpu.matmul %121, %110, %cst_49 {dimension_numbers = #tpu.dot_dimension_numbers<[2], [1], [1], [2], [0, 0, 0, 1, 1, 2], [0], [0]>} : vector<2x8x8xf32>, vector<2x8x8xf32>, vector<2x8x8xf32> -> vector<2x8x8xf32>
    "tpu.trace_stop"() : () -> ()
    %123 = vector.shape_cast %122 : vector<2x8x8xf32> to vector<16x8xf32>
    %124 = vector.extract_strided_slice %6 {offsets = [24, 0], sizes = [8, 32], strides = [1, 1]} : vector<32x32xf32> to vector<8x32xf32>
    %cst_50 = arith.constant dense<0.000000e+00> : vector<16x32xf32>
    %125 = tpu.matmul %123, %124, %cst_50 {dimension_numbers = #tpu.dot_dimension_numbers<[1], [0], [0], [1], [0, 0, 1, 1], [], []>} : vector<16x8xf32>, vector<8x32xf32>, vector<16x32xf32> -> vector<16x32xf32>
    %126 = arith.addf %104, %125 : vector<16x32xf32>
    %127 = arith.addf %0, %126 : vector<16x32xf32>
    %128 = vector.broadcast %8 : vector<1x32xf32> to vector<16x32xf32>
    %129 = arith.addf %127, %128 : vector<16x32xf32>
    %cst_51 = arith.constant dense<0.000000e+00> : vector<16xf32>
    %130 = vector.multi_reduction <add>, %129, %cst_51 [1] : vector<16x32xf32> to vector<16xf32>
    %131 = vector.shape_cast %130 : vector<16xf32> to vector<16x1xf32>
    %cst_52 = arith.constant 3.200000e+01 : f32
    %132 = vector.broadcast %cst_52 : f32 to vector<16x1xf32>
    %133 = arith.divf %131, %132 : vector<16x1xf32>
    %134 = vector.broadcast %133 : vector<16x1xf32> to vector<16x32xf32>
    %135 = arith.subf %129, %134 : vector<16x32xf32>
    %136 = arith.mulf %135, %135 : vector<16x32xf32>
    %cst_53 = arith.constant dense<0.000000e+00> : vector<16xf32>
    %137 = vector.multi_reduction <add>, %136, %cst_53 [1] : vector<16x32xf32> to vector<16xf32>
    %138 = vector.shape_cast %137 : vector<16xf32> to vector<16x1xf32>
    %cst_54 = arith.constant 3.200000e+01 : f32
    %139 = vector.broadcast %cst_54 : f32 to vector<16x1xf32>
    %140 = arith.divf %138, %139 : vector<16x1xf32>
    %141 = vector.broadcast %133 : vector<16x1xf32> to vector<16x32xf32>
    %142 = arith.subf %129, %141 : vector<16x32xf32>
    %cst_55 = arith.constant 9.99999974E-6 : f32
    %143 = vector.broadcast %cst_55 : f32 to vector<16x1xf32>
    %144 = arith.addf %140, %143 : vector<16x1xf32>
    %145 = math.rsqrt %144 : vector<16x1xf32>
    %146 = vector.broadcast %145 : vector<16x1xf32> to vector<16x32xf32>
    %147 = arith.mulf %142, %146 : vector<16x32xf32>
    %cst_56 = arith.constant dense<0.000000e+00> : vector<16x64xf32>
    %148 = tpu.matmul %147, %10, %cst_56 {dimension_numbers = #tpu.dot_dimension_numbers<[1], [0], [0], [1], [0, 0, 1, 1], [], []>} : vector<16x32xf32>, vector<32x64xf32>, vector<16x64xf32> -> vector<16x64xf32>
    %149 = vector.broadcast %12 : vector<1x64xf32> to vector<16x64xf32>
    %150 = arith.addf %148, %149 : vector<16x64xf32>
    %cst_57 = arith.constant 5.000000e-01 : f32
    %151 = vector.broadcast %cst_57 : f32 to vector<16x64xf32>
    %152 = arith.mulf %151, %150 : vector<16x64xf32>
    %cst_58 = arith.constant 0.707106769 : f32
    %153 = vector.broadcast %cst_58 : f32 to vector<16x64xf32>
    %154 = arith.mulf %150, %153 : vector<16x64xf32>
    %155 = math.erf %154 : vector<16x64xf32>
    %cst_59 = arith.constant 1.000000e+00 : f32
    %156 = vector.broadcast %cst_59 : f32 to vector<16x64xf32>
    %157 = arith.addf %156, %155 : vector<16x64xf32>
    %158 = arith.mulf %152, %157 : vector<16x64xf32>
    %cst_60 = arith.constant dense<0.000000e+00> : vector<16x32xf32>
    %159 = tpu.matmul %158, %14, %cst_60 {dimension_numbers = #tpu.dot_dimension_numbers<[1], [0], [0], [1], [0, 0, 1, 1], [], []>} : vector<16x64xf32>, vector<64x32xf32>, vector<16x32xf32> -> vector<16x32xf32>
    %160 = arith.addf %129, %159 : vector<16x32xf32>
    %161 = vector.broadcast %16 : vector<1x32xf32> to vector<16x32xf32>
    %162 = arith.addf %160, %161 : vector<16x32xf32>
    %c1 = arith.constant 1 : index
    %c0_61 = arith.constant 0 : index
    %c0_62 = arith.constant 0 : index
    %163 = vector.load %arg1[%c1, %c0_61, %c0_62] : memref<2x32x96xf32, #tpu.memory_space<vmem>>, vector<1x32x96xf32>
    %164 = vector.shape_cast %163 : vector<1x32x96xf32> to vector<32x96xf32>
    %c1_63 = arith.constant 1 : index
    %c0_64 = arith.constant 0 : index
    %c0_65 = arith.constant 0 : index
    %165 = vector.load %arg2[%c1_63, %c0_64, %c0_65] : memref<2x1x96xf32, #tpu.memory_space<vmem>>, vector<1x1x96xf32>
    %166 = vector.shape_cast %165 : vector<1x1x96xf32> to vector<1x96xf32>
    %c1_66 = arith.constant 1 : index
    %c0_67 = arith.constant 0 : index
    %c0_68 = arith.constant 0 : index
    %167 = vector.load %arg3[%c1_66, %c0_67, %c0_68] : memref<2x32x32xf32, #tpu.memory_space<vmem>>, vector<1x32x32xf32>
    %168 = vector.shape_cast %167 : vector<1x32x32xf32> to vector<32x32xf32>
    %c1_69 = arith.constant 1 : index
    %c0_70 = arith.constant 0 : index
    %c0_71 = arith.constant 0 : index
    %169 = vector.load %arg4[%c1_69, %c0_70, %c0_71] : memref<2x1x32xf32, #tpu.memory_space<vmem>>, vector<1x1x32xf32>
    %170 = vector.shape_cast %169 : vector<1x1x32xf32> to vector<1x32xf32>
    %c1_72 = arith.constant 1 : index
    %c0_73 = arith.constant 0 : index
    %c0_74 = arith.constant 0 : index
    %171 = vector.load %arg5[%c1_72, %c0_73, %c0_74] : memref<2x32x64xf32, #tpu.memory_space<vmem>>, vector<1x32x64xf32>
    %172 = vector.shape_cast %171 : vector<1x32x64xf32> to vector<32x64xf32>
    %c1_75 = arith.constant 1 : index
    %c0_76 = arith.constant 0 : index
    %c0_77 = arith.constant 0 : index
    %173 = vector.load %arg6[%c1_75, %c0_76, %c0_77] : memref<2x1x64xf32, #tpu.memory_space<vmem>>, vector<1x1x64xf32>
    %174 = vector.shape_cast %173 : vector<1x1x64xf32> to vector<1x64xf32>
    %c1_78 = arith.constant 1 : index
    %c0_79 = arith.constant 0 : index
    %c0_80 = arith.constant 0 : index
    %175 = vector.load %arg7[%c1_78, %c0_79, %c0_80] : memref<2x64x32xf32, #tpu.memory_space<vmem>>, vector<1x64x32xf32>
    %176 = vector.shape_cast %175 : vector<1x64x32xf32> to vector<64x32xf32>
    %c1_81 = arith.constant 1 : index
    %c0_82 = arith.constant 0 : index
    %c0_83 = arith.constant 0 : index
    %177 = vector.load %arg8[%c1_81, %c0_82, %c0_83] : memref<2x1x32xf32, #tpu.memory_space<vmem>>, vector<1x1x32xf32>
    %178 = vector.shape_cast %177 : vector<1x1x32xf32> to vector<1x32xf32>
    %cst_84 = arith.constant dense<0.000000e+00> : vector<16xf32>
    %179 = vector.multi_reduction <add>, %162, %cst_84 [1] : vector<16x32xf32> to vector<16xf32>
    %180 = vector.shape_cast %179 : vector<16xf32> to vector<16x1xf32>
    %cst_85 = arith.constant 3.200000e+01 : f32
    %181 = vector.broadcast %cst_85 : f32 to vector<16x1xf32>
    %182 = arith.divf %180, %181 : vector<16x1xf32>
    %183 = vector.broadcast %182 : vector<16x1xf32> to vector<16x32xf32>
    %184 = arith.subf %162, %183 : vector<16x32xf32>
    %185 = arith.mulf %184, %184 : vector<16x32xf32>
    %cst_86 = arith.constant dense<0.000000e+00> : vector<16xf32>
    %186 = vector.multi_reduction <add>, %185, %cst_86 [1] : vector<16x32xf32> to vector<16xf32>
    %187 = vector.shape_cast %186 : vector<16xf32> to vector<16x1xf32>
    %cst_87 = arith.constant 3.200000e+01 : f32
    %188 = vector.broadcast %cst_87 : f32 to vector<16x1xf32>
    %189 = arith.divf %187, %188 : vector<16x1xf32>
    %190 = vector.broadcast %182 : vector<16x1xf32> to vector<16x32xf32>
    %191 = arith.subf %162, %190 : vector<16x32xf32>
    %cst_88 = arith.constant 9.99999974E-6 : f32
    %192 = vector.broadcast %cst_88 : f32 to vector<16x1xf32>
    %193 = arith.addf %189, %192 : vector<16x1xf32>
    %194 = math.rsqrt %193 : vector<16x1xf32>
    %195 = vector.broadcast %194 : vector<16x1xf32> to vector<16x32xf32>
    %196 = arith.mulf %191, %195 : vector<16x32xf32>
    %cst_89 = arith.constant dense<0.000000e+00> : vector<16x96xf32>
    %197 = tpu.matmul %196, %164, %cst_89 {dimension_numbers = #tpu.dot_dimension_numbers<[1], [0], [0], [1], [0, 0, 1, 1], [], []>} : vector<16x32xf32>, vector<32x96xf32>, vector<16x96xf32> -> vector<16x96xf32>
    %198 = vector.broadcast %166 : vector<1x96xf32> to vector<16x96xf32>
    %199 = arith.addf %197, %198 : vector<16x96xf32>
    %cst_90 = arith.constant 0.000000e+00 : f32
    %200 = vector.broadcast %cst_90 : f32 to vector<16x32xf32>
    %201 = vector.extract_strided_slice %199 {offsets = [0, 0], sizes = [16, 8], strides = [1, 1]} : vector<16x96xf32> to vector<16x8xf32>
    %202 = vector.shape_cast %201 : vector<16x8xf32> to vector<2x8x8xf32>
    %203 = vector.extract_strided_slice %199 {offsets = [0, 32], sizes = [16, 8], strides = [1, 1]} : vector<16x96xf32> to vector<16x8xf32>
    %204 = vector.shape_cast %203 : vector<16x8xf32> to vector<2x8x8xf32>
    %205 = vector.extract_strided_slice %199 {offsets = [0, 64], sizes = [16, 8], strides = [1, 1]} : vector<16x96xf32> to vector<16x8xf32>
    %206 = vector.shape_cast %205 : vector<16x8xf32> to vector<2x8x8xf32>
    "tpu.trace_start"() <{level = 10 : i32, message = "bnd,bmd->bnm"}> : () -> ()
    %cst_91 = arith.constant dense<0.000000e+00> : vector<2x8x8xf32>
    %207 = tpu.matmul %202, %204, %cst_91 {dimension_numbers = #tpu.dot_dimension_numbers<[2], [2], [1], [1], [0, 0, 0, 1, 1, 1], [0], [0]>} : vector<2x8x8xf32>, vector<2x8x8xf32>, vector<2x8x8xf32> -> vector<2x8x8xf32>
    "tpu.trace_stop"() : () -> ()
    %cst_92 = arith.constant dense<0xFF800000> : vector<2x8xf32>
    %208 = vector.multi_reduction <maximumf>, %207, %cst_92 [2] : vector<2x8x8xf32> to vector<2x8xf32>
    %209 = vector.shape_cast %208 : vector<2x8xf32> to vector<2x8x1xf32>
    %210 = vector.broadcast %209 : vector<2x8x1xf32> to vector<2x8x8xf32>
    %211 = arith.subf %207, %210 : vector<2x8x8xf32>
    %212 = math.exp %211 : vector<2x8x8xf32>
    %cst_93 = arith.constant dense<0.000000e+00> : vector<2x8xf32>
    %213 = vector.multi_reduction <add>, %212, %cst_93 [2] : vector<2x8x8xf32> to vector<2x8xf32>
    %214 = vector.shape_cast %213 : vector<2x8xf32> to vector<2x8x1xf32>
    %215 = tpu.reciprocal %214 {approx = true} : vector<2x8x1xf32> -> vector<2x8x1xf32>
    %216 = vector.broadcast %215 : vector<2x8x1xf32> to vector<2x8x8xf32>
    %217 = arith.mulf %212, %216 : vector<2x8x8xf32>
    "tpu.trace_start"() <{level = 10 : i32, message = "bnm,bmd->bnd"}> : () -> ()
    %cst_94 = arith.constant dense<0.000000e+00> : vector<2x8x8xf32>
    %218 = tpu.matmul %217, %206, %cst_94 {dimension_numbers = #tpu.dot_dimension_numbers<[2], [1], [1], [2], [0, 0, 0, 1, 1, 2], [0], [0]>} : vector<2x8x8xf32>, vector<2x8x8xf32>, vector<2x8x8xf32> -> vector<2x8x8xf32>
    "tpu.trace_stop"() : () -> ()
    %219 = vector.shape_cast %218 : vector<2x8x8xf32> to vector<16x8xf32>
    %220 = vector.extract_strided_slice %168 {offsets = [0, 0], sizes = [8, 32], strides = [1, 1]} : vector<32x32xf32> to vector<8x32xf32>
    %cst_95 = arith.constant dense<0.000000e+00> : vector<16x32xf32>
    %221 = tpu.matmul %219, %220, %cst_95 {dimension_numbers = #tpu.dot_dimension_numbers<[1], [0], [0], [1], [0, 0, 1, 1], [], []>} : vector<16x8xf32>, vector<8x32xf32>, vector<16x32xf32> -> vector<16x32xf32>
    %222 = arith.addf %200, %221 : vector<16x32xf32>
    %223 = vector.extract_strided_slice %199 {offsets = [0, 8], sizes = [16, 8], strides = [1, 1]} : vector<16x96xf32> to vector<16x8xf32>
    %224 = vector.shape_cast %223 : vector<16x8xf32> to vector<2x8x8xf32>
    %225 = vector.extract_strided_slice %199 {offsets = [0, 40], sizes = [16, 8], strides = [1, 1]} : vector<16x96xf32> to vector<16x8xf32>
    %226 = vector.shape_cast %225 : vector<16x8xf32> to vector<2x8x8xf32>
    %227 = vector.extract_strided_slice %199 {offsets = [0, 72], sizes = [16, 8], strides = [1, 1]} : vector<16x96xf32> to vector<16x8xf32>
    %228 = vector.shape_cast %227 : vector<16x8xf32> to vector<2x8x8xf32>
    "tpu.trace_start"() <{level = 10 : i32, message = "bnd,bmd->bnm"}> : () -> ()
    %cst_96 = arith.constant dense<0.000000e+00> : vector<2x8x8xf32>
    %229 = tpu.matmul %224, %226, %cst_96 {dimension_numbers = #tpu.dot_dimension_numbers<[2], [2], [1], [1], [0, 0, 0, 1, 1, 1], [0], [0]>} : vector<2x8x8xf32>, vector<2x8x8xf32>, vector<2x8x8xf32> -> vector<2x8x8xf32>
    "tpu.trace_stop"() : () -> ()
    %cst_97 = arith.constant dense<0xFF800000> : vector<2x8xf32>
    %230 = vector.multi_reduction <maximumf>, %229, %cst_97 [2] : vector<2x8x8xf32> to vector<2x8xf32>
    %231 = vector.shape_cast %230 : vector<2x8xf32> to vector<2x8x1xf32>
    %232 = vector.broadcast %231 : vector<2x8x1xf32> to vector<2x8x8xf32>
    %233 = arith.subf %229, %232 : vector<2x8x8xf32>
    %234 = math.exp %233 : vector<2x8x8xf32>
    %cst_98 = arith.constant dense<0.000000e+00> : vector<2x8xf32>
    %235 = vector.multi_reduction <add>, %234, %cst_98 [2] : vector<2x8x8xf32> to vector<2x8xf32>
    %236 = vector.shape_cast %235 : vector<2x8xf32> to vector<2x8x1xf32>
    %237 = tpu.reciprocal %236 {approx = true} : vector<2x8x1xf32> -> vector<2x8x1xf32>
    %238 = vector.broadcast %237 : vector<2x8x1xf32> to vector<2x8x8xf32>
    %239 = arith.mulf %234, %238 : vector<2x8x8xf32>
    "tpu.trace_start"() <{level = 10 : i32, message = "bnm,bmd->bnd"}> : () -> ()
    %cst_99 = arith.constant dense<0.000000e+00> : vector<2x8x8xf32>
    %240 = tpu.matmul %239, %228, %cst_99 {dimension_numbers = #tpu.dot_dimension_numbers<[2], [1], [1], [2], [0, 0, 0, 1, 1, 2], [0], [0]>} : vector<2x8x8xf32>, vector<2x8x8xf32>, vector<2x8x8xf32> -> vector<2x8x8xf32>
    "tpu.trace_stop"() : () -> ()
    %241 = vector.shape_cast %240 : vector<2x8x8xf32> to vector<16x8xf32>
    %242 = vector.extract_strided_slice %168 {offsets = [8, 0], sizes = [8, 32], strides = [1, 1]} : vector<32x32xf32> to vector<8x32xf32>
    %cst_100 = arith.constant dense<0.000000e+00> : vector<16x32xf32>
    %243 = tpu.matmul %241, %242, %cst_100 {dimension_numbers = #tpu.dot_dimension_numbers<[1], [0], [0], [1], [0, 0, 1, 1], [], []>} : vector<16x8xf32>, vector<8x32xf32>, vector<16x32xf32> -> vector<16x32xf32>
    %244 = arith.addf %222, %243 : vector<16x32xf32>
    %245 = vector.extract_strided_slice %199 {offsets = [0, 16], sizes = [16, 8], strides = [1, 1]} : vector<16x96xf32> to vector<16x8xf32>
    %246 = vector.shape_cast %245 : vector<16x8xf32> to vector<2x8x8xf32>
    %247 = vector.extract_strided_slice %199 {offsets = [0, 48], sizes = [16, 8], strides = [1, 1]} : vector<16x96xf32> to vector<16x8xf32>
    %248 = vector.shape_cast %247 : vector<16x8xf32> to vector<2x8x8xf32>
    %249 = vector.extract_strided_slice %199 {offsets = [0, 80], sizes = [16, 8], strides = [1, 1]} : vector<16x96xf32> to vector<16x8xf32>
    %250 = vector.shape_cast %249 : vector<16x8xf32> to vector<2x8x8xf32>
    "tpu.trace_start"() <{level = 10 : i32, message = "bnd,bmd->bnm"}> : () -> ()
    %cst_101 = arith.constant dense<0.000000e+00> : vector<2x8x8xf32>
    %251 = tpu.matmul %246, %248, %cst_101 {dimension_numbers = #tpu.dot_dimension_numbers<[2], [2], [1], [1], [0, 0, 0, 1, 1, 1], [0], [0]>} : vector<2x8x8xf32>, vector<2x8x8xf32>, vector<2x8x8xf32> -> vector<2x8x8xf32>
    "tpu.trace_stop"() : () -> ()
    %cst_102 = arith.constant dense<0xFF800000> : vector<2x8xf32>
    %252 = vector.multi_reduction <maximumf>, %251, %cst_102 [2] : vector<2x8x8xf32> to vector<2x8xf32>
    %253 = vector.shape_cast %252 : vector<2x8xf32> to vector<2x8x1xf32>
    %254 = vector.broadcast %253 : vector<2x8x1xf32> to vector<2x8x8xf32>
    %255 = arith.subf %251, %254 : vector<2x8x8xf32>
    %256 = math.exp %255 : vector<2x8x8xf32>
    %cst_103 = arith.constant dense<0.000000e+00> : vector<2x8xf32>
    %257 = vector.multi_reduction <add>, %256, %cst_103 [2] : vector<2x8x8xf32> to vector<2x8xf32>
    %258 = vector.shape_cast %257 : vector<2x8xf32> to vector<2x8x1xf32>
    %259 = tpu.reciprocal %258 {approx = true} : vector<2x8x1xf32> -> vector<2x8x1xf32>
    %260 = vector.broadcast %259 : vector<2x8x1xf32> to vector<2x8x8xf32>
    %261 = arith.mulf %256, %260 : vector<2x8x8xf32>
    "tpu.trace_start"() <{level = 10 : i32, message = "bnm,bmd->bnd"}> : () -> ()
    %cst_104 = arith.constant dense<0.000000e+00> : vector<2x8x8xf32>
    %262 = tpu.matmul %261, %250, %cst_104 {dimension_numbers = #tpu.dot_dimension_numbers<[2], [1], [1], [2], [0, 0, 0, 1, 1, 2], [0], [0]>} : vector<2x8x8xf32>, vector<2x8x8xf32>, vector<2x8x8xf32> -> vector<2x8x8xf32>
    "tpu.trace_stop"() : () -> ()
    %263 = vector.shape_cast %262 : vector<2x8x8xf32> to vector<16x8xf32>
    %264 = vector.extract_strided_slice %168 {offsets = [16, 0], sizes = [8, 32], strides = [1, 1]} : vector<32x32xf32> to vector<8x32xf32>
    %cst_105 = arith.constant dense<0.000000e+00> : vector<16x32xf32>
    %265 = tpu.matmul %263, %264, %cst_105 {dimension_numbers = #tpu.dot_dimension_numbers<[1], [0], [0], [1], [0, 0, 1, 1], [], []>} : vector<16x8xf32>, vector<8x32xf32>, vector<16x32xf32> -> vector<16x32xf32>
    %266 = arith.addf %244, %265 : vector<16x32xf32>
    %267 = vector.extract_strided_slice %199 {offsets = [0, 24], sizes = [16, 8], strides = [1, 1]} : vector<16x96xf32> to vector<16x8xf32>
    %268 = vector.shape_cast %267 : vector<16x8xf32> to vector<2x8x8xf32>
    %269 = vector.extract_strided_slice %199 {offsets = [0, 56], sizes = [16, 8], strides = [1, 1]} : vector<16x96xf32> to vector<16x8xf32>
    %270 = vector.shape_cast %269 : vector<16x8xf32> to vector<2x8x8xf32>
    %271 = vector.extract_strided_slice %199 {offsets = [0, 88], sizes = [16, 8], strides = [1, 1]} : vector<16x96xf32> to vector<16x8xf32>
    %272 = vector.shape_cast %271 : vector<16x8xf32> to vector<2x8x8xf32>
    "tpu.trace_start"() <{level = 10 : i32, message = "bnd,bmd->bnm"}> : () -> ()
    %cst_106 = arith.constant dense<0.000000e+00> : vector<2x8x8xf32>
    %273 = tpu.matmul %268, %270, %cst_106 {dimension_numbers = #tpu.dot_dimension_numbers<[2], [2], [1], [1], [0, 0, 0, 1, 1, 1], [0], [0]>} : vector<2x8x8xf32>, vector<2x8x8xf32>, vector<2x8x8xf32> -> vector<2x8x8xf32>
    "tpu.trace_stop"() : () -> ()
    %cst_107 = arith.constant dense<0xFF800000> : vector<2x8xf32>
    %274 = vector.multi_reduction <maximumf>, %273, %cst_107 [2] : vector<2x8x8xf32> to vector<2x8xf32>
    %275 = vector.shape_cast %274 : vector<2x8xf32> to vector<2x8x1xf32>
    %276 = vector.broadcast %275 : vector<2x8x1xf32> to vector<2x8x8xf32>
    %277 = arith.subf %273, %276 : vector<2x8x8xf32>
    %278 = math.exp %277 : vector<2x8x8xf32>
    %cst_108 = arith.constant dense<0.000000e+00> : vector<2x8xf32>
    %279 = vector.multi_reduction <add>, %278, %cst_108 [2] : vector<2x8x8xf32> to vector<2x8xf32>
    %280 = vector.shape_cast %279 : vector<2x8xf32> to vector<2x8x1xf32>
    %281 = tpu.reciprocal %280 {approx = true} : vector<2x8x1xf32> -> vector<2x8x1xf32>
    %282 = vector.broadcast %281 : vector<2x8x1xf32> to vector<2x8x8xf32>
    %283 = arith.mulf %278, %282 : vector<2x8x8xf32>
    "tpu.trace_start"() <{level = 10 : i32, message = "bnm,bmd->bnd"}> : () -> ()
    %cst_109 = arith.constant dense<0.000000e+00> : vector<2x8x8xf32>
    %284 = tpu.matmul %283, %272, %cst_109 {dimension_numbers = #tpu.dot_dimension_numbers<[2], [1], [1], [2], [0, 0, 0, 1, 1, 2], [0], [0]>} : vector<2x8x8xf32>, vector<2x8x8xf32>, vector<2x8x8xf32> -> vector<2x8x8xf32>
    "tpu.trace_stop"() : () -> ()
    %285 = vector.shape_cast %284 : vector<2x8x8xf32> to vector<16x8xf32>
    %286 = vector.extract_strided_slice %168 {offsets = [24, 0], sizes = [8, 32], strides = [1, 1]} : vector<32x32xf32> to vector<8x32xf32>
    %cst_110 = arith.constant dense<0.000000e+00> : vector<16x32xf32>
    %287 = tpu.matmul %285, %286, %cst_110 {dimension_numbers = #tpu.dot_dimension_numbers<[1], [0], [0], [1], [0, 0, 1, 1], [], []>} : vector<16x8xf32>, vector<8x32xf32>, vector<16x32xf32> -> vector<16x32xf32>
    %288 = arith.addf %266, %287 : vector<16x32xf32>
    %289 = arith.addf %162, %288 : vector<16x32xf32>
    %290 = vector.broadcast %170 : vector<1x32xf32> to vector<16x32xf32>
    %291 = arith.addf %289, %290 : vector<16x32xf32>
    %cst_111 = arith.constant dense<0.000000e+00> : vector<16xf32>
    %292 = vector.multi_reduction <add>, %291, %cst_111 [1] : vector<16x32xf32> to vector<16xf32>
    %293 = vector.shape_cast %292 : vector<16xf32> to vector<16x1xf32>
    %cst_112 = arith.constant 3.200000e+01 : f32
    %294 = vector.broadcast %cst_112 : f32 to vector<16x1xf32>
    %295 = arith.divf %293, %294 : vector<16x1xf32>
    %296 = vector.broadcast %295 : vector<16x1xf32> to vector<16x32xf32>
    %297 = arith.subf %291, %296 : vector<16x32xf32>
    %298 = arith.mulf %297, %297 : vector<16x32xf32>
    %cst_113 = arith.constant dense<0.000000e+00> : vector<16xf32>
    %299 = vector.multi_reduction <add>, %298, %cst_113 [1] : vector<16x32xf32> to vector<16xf32>
    %300 = vector.shape_cast %299 : vector<16xf32> to vector<16x1xf32>
    %cst_114 = arith.constant 3.200000e+01 : f32
    %301 = vector.broadcast %cst_114 : f32 to vector<16x1xf32>
    %302 = arith.divf %300, %301 : vector<16x1xf32>
    %303 = vector.broadcast %295 : vector<16x1xf32> to vector<16x32xf32>
    %304 = arith.subf %291, %303 : vector<16x32xf32>
    %cst_115 = arith.constant 9.99999974E-6 : f32
    %305 = vector.broadcast %cst_115 : f32 to vector<16x1xf32>
    %306 = arith.addf %302, %305 : vector<16x1xf32>
    %307 = math.rsqrt %306 : vector<16x1xf32>
    %308 = vector.broadcast %307 : vector<16x1xf32> to vector<16x32xf32>
    %309 = arith.mulf %304, %308 : vector<16x32xf32>
    %cst_116 = arith.constant dense<0.000000e+00> : vector<16x64xf32>
    %310 = tpu.matmul %309, %172, %cst_116 {dimension_numbers = #tpu.dot_dimension_numbers<[1], [0], [0], [1], [0, 0, 1, 1], [], []>} : vector<16x32xf32>, vector<32x64xf32>, vector<16x64xf32> -> vector<16x64xf32>
    %311 = vector.broadcast %174 : vector<1x64xf32> to vector<16x64xf32>
    %312 = arith.addf %310, %311 : vector<16x64xf32>
    %cst_117 = arith.constant 5.000000e-01 : f32
    %313 = vector.broadcast %cst_117 : f32 to vector<16x64xf32>
    %314 = arith.mulf %313, %312 : vector<16x64xf32>
    %cst_118 = arith.constant 0.707106769 : f32
    %315 = vector.broadcast %cst_118 : f32 to vector<16x64xf32>
    %316 = arith.mulf %312, %315 : vector<16x64xf32>
    %317 = math.erf %316 : vector<16x64xf32>
    %cst_119 = arith.constant 1.000000e+00 : f32
    %318 = vector.broadcast %cst_119 : f32 to vector<16x64xf32>
    %319 = arith.addf %318, %317 : vector<16x64xf32>
    %320 = arith.mulf %314, %319 : vector<16x64xf32>
    %cst_120 = arith.constant dense<0.000000e+00> : vector<16x32xf32>
    %321 = tpu.matmul %320, %176, %cst_120 {dimension_numbers = #tpu.dot_dimension_numbers<[1], [0], [0], [1], [0, 0, 1, 1], [], []>} : vector<16x64xf32>, vector<64x32xf32>, vector<16x32xf32> -> vector<16x32xf32>
    %322 = arith.addf %291, %321 : vector<16x32xf32>
    %323 = vector.broadcast %178 : vector<1x32xf32> to vector<16x32xf32>
    %324 = arith.addf %322, %323 : vector<16x32xf32>
    %c0_121 = arith.constant 0 : index
    %c0_122 = arith.constant 0 : index
    %325 = vector.load %arg9[%c0_121, %c0_122] : memref<16x32xf32, #tpu.memory_space<vmem>>, vector<16x32xf32>
    tpu.vector_store %arg9[%c0_121, %c0_122], %324 {strides = array<i32>} : memref<16x32xf32, #tpu.memory_space<vmem>>, vector<16x32xf32>,
    return
  }
}

</mosaic_0001>

<llo_original>
// kernel: tpu_custom_call.1
$region0: #{tpu_custom_call.1}
  #allocation0 [shape = 'u32[]', space=smem, size = 0x4, offset = 0x4, fixed_abs, tag = 'smem constant byte address 0x4 - core index']
  #allocation1 [shape = 'u32[144,128]{1,0:T(1,128)}', space=vmem, size = 0x12000, scoped, tag = 'internal scratch']
  %s0 = inlined_call_operand.hbm [shape: f32[16,32], index: 0, kind: input, shape index: {}]
  %s1 = inlined_call_operand.vmem [shape: f32[2,32,96], index: 1, kind: input, shape index: {}]
  %s2 = inlined_call_operand.vmem [shape: f32[2,1,96], index: 2, kind: input, shape index: {}]
  %s3 = inlined_call_operand.vmem [shape: f32[2,32,32], index: 3, kind: input, shape index: {}]
  %s4 = inlined_call_operand.vmem [shape: f32[2,1,32], index: 4, kind: input, shape index: {}]
  %s5 = inlined_call_operand.vmem [shape: f32[2,32,64], index: 5, kind: input, shape index: {}]
  %s6 = inlined_call_operand.vmem [shape: f32[2,1,64], index: 6, kind: input, shape index: {}]
  %s7 = inlined_call_operand.vmem [shape: f32[2,64,32], index: 7, kind: input, shape index: {}]
  %s8 = inlined_call_operand.vmem [shape: f32[2,1,32], index: 8, kind: input, shape index: {}]
  %s9 = inlined_call_operand.hbm [shape: f32[16,32], index: 9, kind: output, shape index: {}]
  %s10 = sld [smem:[#allocation0]]
  $region50: #{tpu_custom_call.1} parent=0
    _
  %s12 = ssub.s32 1, %s10
  %s13 = scalar_select 0, %s12, %s10
  $region1: #{tpu_custom_call.1} parent=0
    #allocation2 [shape = 'u8[8192]{0}', space=vmem, size = 0x2000, scoped, tag = 'input window, operand 0, single buffered']
    #allocation3 [shape = 's32[1]{0}', space=sflag, size = 0x4, scoped, tag = 'scoped memory for tpu_custom_call.1']
    #allocation4 [shape = 's32[1]{0}', space=sflag, size = 0x4, scoped, tag = 'scoped memory for tpu_custom_call.1']
    #allocation5 [shape = 'u8[8192]{0}', space=vmem, size = 0x2000, scoped, tag = 'output window, operand 0, single buffered']
    %14 = vsyncpa [#allocation3], 0
    %15 = vsyncpa [#allocation4], 0
    // Predicated region
    $region2: #{tpu_custom_call.1} parent=1 // pred_check
      _
    $region3: #{tpu_custom_call.1} parent=1 // pred_check_branch
      %17 = sbr.rel (0) target = $region5
    $region4: #{tpu_custom_call.1} parent=1 // pred_region
      %s19 = ssub.s32 256, 256
      %20 = vsyncadd [#allocation3], %s19
      %s21 = sshll.u32 [#allocation2], 4
      %s22 = int_to_ptr.vmem [resolvable:$true] %s21
      %27 = dma.hbm_to_vmem [thread:$0]  %s0, 256, %s22, [#allocation3], 128, 128, 8
    $region5: #{tpu_custom_call.1} parent=1 // pred_fallthru
      _
    // Predicated region
    $region6: #{tpu_custom_call.1} parent=1 // pred_check
      _
    $region7: #{tpu_custom_call.1} parent=1 // pred_check_branch
      %29 = sbr.rel (0) target = $region9
    $region8: #{tpu_custom_call.1} parent=1 // pred_region
      _
    $region9: #{tpu_custom_call.1} parent=1 // pred_fallthru
      _
    // Predicated region
    $region10: #{tpu_custom_call.1} parent=1 // pred_check
      _
    $region11: #{tpu_custom_call.1} parent=1 // pred_check_branch
      %31 = sbr.rel (0) target = $region13
    $region12: #{tpu_custom_call.1} parent=1 // pred_region
      _
    $region13: #{tpu_custom_call.1} parent=1 // pred_fallthru
      _
    // Predicated region
    $region14: #{tpu_custom_call.1} parent=1 // pred_check
      _
    $region15: #{tpu_custom_call.1} parent=1 // pred_check_branch
      %33 = sbr.rel (0) target = $region17
    $region16: #{tpu_custom_call.1} parent=1 // pred_region
      _
    $region17: #{tpu_custom_call.1} parent=1 // pred_fallthru
      _
    // Predicated region
    $region18: #{tpu_custom_call.1} parent=1 // pred_check
      _
    $region19: #{tpu_custom_call.1} parent=1 // pred_check_branch
      %35 = sbr.rel (0) target = $region21
    $region20: #{tpu_custom_call.1} parent=1 // pred_region
      _
    $region21: #{tpu_custom_call.1} parent=1 // pred_fallthru
      _
    // Predicated region
    $region22: #{tpu_custom_call.1} parent=1 // pred_check
      _
    $region23: #{tpu_custom_call.1} parent=1 // pred_check_branch
      %37 = sbr.rel (0) target = $region25
    $region24: #{tpu_custom_call.1} parent=1 // pred_region
      _
    $region25: #{tpu_custom_call.1} parent=1 // pred_fallthru
      _
    // Predicated region
    $region26: #{tpu_custom_call.1} parent=1 // pred_check
      _
    $region27: #{tpu_custom_call.1} parent=1 // pred_check_branch
      %39 = sbr.rel (0) target = $region29
    $region28: #{tpu_custom_call.1} parent=1 // pred_region
      _
    $region29: #{tpu_custom_call.1} parent=1 // pred_fallthru
      _
    // Predicated region
    $region30: #{tpu_custom_call.1} parent=1 // pred_check
      _
    $region31: #{tpu_custom_call.1} parent=1 // pred_check_branch
      %41 = sbr.rel (0) target = $region33
    $region32: #{tpu_custom_call.1} parent=1 // pred_region
      _
    $region33: #{tpu_custom_call.1} parent=1 // pred_fallthru
      _
    // Predicated region
    $region34: #{tpu_custom_call.1} parent=1 // pred_check
      _
    $region35: #{tpu_custom_call.1} parent=1 // pred_check_branch
      %43 = sbr.rel (0) target = $region37
    $region36: #{tpu_custom_call.1} parent=1 // pred_region
      _
    $region37: #{tpu_custom_call.1} parent=1 // pred_fallthru
      _
    // Predicated region
    $region38: #{tpu_custom_call.1} parent=1 // pred_check
      _
    $region39: #{tpu_custom_call.1} parent=1 // pred_check_branch
      %45 = sbr.rel (0) target = $region41
    $region40: #{tpu_custom_call.1} parent=1 // pred_region
      %46 = dma.done [#allocation3], 256
    $region41: #{tpu_custom_call.1} parent=1 // pred_fallthru
      _
    %v47 = vld [vmem:[#allocation2] sm:$0xff]
    %v48 = vld [vmem:[#allocation2 + $0x8] sm:$0xff]
    %v49 = vld [vmem:[%s1] sm:$0xff]
    %v50 = vld [vmem:[%s1 + $0x8] sm:$0xff]
    %v51 = vld [vmem:[%s1 + $0x10] sm:$0xff]
    %v52 = vld [vmem:[%s1 + $0x18] sm:$0xff]
    %v53 = vld [vmem:[%s2] sm:$0x1]
    %v54 = vld [vmem:[%s3] sm:$0xff]
    %v55 = vld [vmem:[%s3 + $0x8] sm:$0xff]
    %v56 = vld [vmem:[%s3 + $0x10] sm:$0xff]
    %v57 = vld [vmem:[%s3 + $0x18] sm:$0xff]
    %v58 = vld [vmem:[%s4] sm:$0x1]
    %v59 = vld [vmem:[%s5] sm:$0xff]
    %v60 = vld [vmem:[%s5 + $0x8] sm:$0xff]
    %v61 = vld [vmem:[%s5 + $0x10] sm:$0xff]
    %v62 = vld [vmem:[%s5 + $0x18] sm:$0xff]
    %v63 = vld [vmem:[%s6] sm:$0x1]
    %v64 = vld [vmem:[%s7] sm:$0xff]
    %v65 = vld [vmem:[%s7 + $0x8] sm:$0xff]
    %v66 = vld [vmem:[%s7 + $0x10] sm:$0xff]
    %v67 = vld [vmem:[%s7 + $0x18] sm:$0xff]
    %v68 = vld [vmem:[%s7 + $0x20] sm:$0xff]
    %v69 = vld [vmem:[%s7 + $0x28] sm:$0xff]
    %v70 = vld [vmem:[%s7 + $0x30] sm:$0xff]
    %v71 = vld [vmem:[%s7 + $0x38] sm:$0xff]
    %v72 = vld [vmem:[%s8] sm:$0x1]
    %vm73 = vcmask 261120
    %v74 = vsel %vm73, %v47, 0.0
    %75 = vadd.xlane.f32.xlu0 %v74
    %v76 = vpop.xlane.xlu0 %75
    %v77 = vsel %vm73, %v48, 0.0
    %78 = vadd.xlane.f32.xlu0 %v77
    %v79 = vpop.xlane.xlu0 %78
    %v80 = vrcp.pop 32.0
    %v81 = vmul.f32 %v76, %v80
    %v82 = vmul.f32 %v79, %v80
    %v83 = vsub.f32 %v47, %v81
    %v84 = vsub.f32 %v48, %v82
    %v85 = vmul.f32 %v83, %v83
    %v86 = vmul.f32 %v84, %v84
    %v87 = vsel %vm73, %v85, 0.0
    %88 = vadd.xlane.f32.xlu0 %v87
    %v89 = vpop.xlane.xlu0 %88
    %v90 = vsel %vm73, %v86, 0.0
    %91 = vadd.xlane.f32.xlu0 %v90
    %v92 = vpop.xlane.xlu0 %91
    %v93 = vmul.f32 %v89, %v80
    %v94 = vmul.f32 %v92, %v80
    %v95 = vadd.f32 %v93, 1e-05
    %v96 = vadd.f32 %v94, 1e-05
    %v97 = vrsqrt.pop %v95
    %v98 = vrsqrt.pop %v96
    %v99 = vmul.f32 %v83, %v97
    %v100 = vmul.f32 %v84, %v98
    %v102 = vlaneseq
    %v103 = vshrl.u32 %v102, 7
    %v104 = vsub.s32 0, %v103
    %v105 = vrot.slane %v53, %v104
    %v108 = vsel %vm73, %v99, 0
    %v111 = vsel %vm73, %v100, 0
    %113 = vmatprep.subr.mxu0 0.0
    %114 = vmatpush1.msra.mxu0 %v49
    %115 = vmatprep.subr.mxu0 0.0
    %116 = vmatpush1.msra.mxu0 %v50
    %117 = vmatprep.subr.mxu0 0.0
    %118 = vmatpush1.msra.mxu0 %v51
    %119 = vmatprep.subr.mxu0 0.0
    %120 = vmatpush1.msra.mxu0 %v52
    %121 = vmatprep.subr.mxu0 0.0
    %122 = vmatpush1.msra.mxu0 0.0
    %123 = vmatprep.subr.mxu0 0.0
    %124 = vmatpush1.msra.mxu0 0.0
    %125 = vmatprep.subr.mxu0 0.0
    %126 = vmatpush1.msra.mxu0 0.0
    %127 = vmatprep.subr.mxu0 0.0
    %128 = vmatpush1.msra.mxu0 0.0
    %129 = vmatprep.subr.mxu0 0.0
    %130 = vmatpush1.msra.mxu0 0.0
    %131 = vmatprep.subr.mxu0 0.0
    %132 = vmatpush1.msra.mxu0 0.0
    %133 = vmatprep.subr.mxu0 0.0
    %134 = vmatpush1.msra.mxu0 0.0
    %135 = vmatprep.subr.mxu0 0.0
    %136 = vmatpush1.msra.mxu0 0.0
    %137 = vmatprep.subr.mxu0 0.0
    %138 = vmatpush1.msra.mxu0 0.0
    %139 = vmatprep.subr.mxu0 0.0
    %140 = vmatpush1.msra.mxu0 0.0
    %141 = vmatprep.subr.mxu0 0.0
    %142 = vmatpush1.msra.mxu0 0.0
    %143 = vmatprep.subr.mxu0 0.0
    %144 = vmatpush1.msra.mxu0 0.0
    %145 = vmatprep.subr.mxu0 0.0
    %146 = vmatpush1.msra.mxu0 0.0
    %147 = vmatprep.subr.mxu0 0.0
    %148 = vmatpush1.msra.mxu0 0.0
    %149 = vmatprep.subr.mxu0 0.0
    %150 = vmatpush1.msra.mxu0 0.0
    %151 = vmatprep.subr.mxu0 0.0
    %152 = vmatpush1.msra.mxu0 0.0
    %153 = vmatprep.subr.mxu0 0.0
    %154 = vmatpush1.msra.mxu0 0.0
    %155 = vmatprep.subr.mxu0 0.0
    %156 = vmatpush1.msra.mxu0 0.0
    %157 = vmatprep.subr.mxu0 0.0
    %158 = vmatpush1.msra.mxu0 0.0
    %159 = vmatprep.subr.mxu0 0.0
    %160 = vmatpush1.msra.mxu0 0.0
    %161 = vmatprep.subr.mxu0 0.0
    %162 = vmatpush1.msra.mxu0 0.0
    %163 = vmatprep.subr.mxu0 0.0
    %164 = vmatpush1.msra.mxu0 0.0
    %165 = vmatprep.subr.mxu0 0.0
    %166 = vmatpush1.msra.mxu0 0.0
    %167 = vmatprep.subr.mxu0 0.0
    %168 = vmatpush1.msra.mxu0 0.0
    %169 = vmatprep.subr.mxu0 0.0
    %170 = vmatpush1.msra.mxu0 0.0
    %171 = vmatprep.subr.mxu0 0.0
    %172 = vmatpush1.msra.mxu0 0.0
    %173 = vmatprep.subr.mxu0 0.0
    %174 = vmatpush1.msra.mxu0 0.0
    %175 = vmatprep.subr.mxu0 0.0
    %176 = vmatpush1.msra.mxu0 0.0
    %177 = vmatprep.mubr.f32.mxu0 0.0
    %178 = vmatmul.mubr.f32.gmra.mrb[0].mxu0 %v108
    %v179 = vpop.f32.mrb[0].mxu0
    %v180 = vadd.f32 %v105, %v179
    %v181 = vpop.f32.mrb[0].mxu0
    %182 = vmatprep.mubr.f32.mxu0 0.0
    %183 = vmatmul.mubr.f32.gmra.mrb[0].mxu0 %v111
    %v184 = vpop.f32.mrb[0].mxu0
    %v185 = vadd.f32 %v105, %v184
    %v186 = vpop.f32.mrb[0].mxu0
    %187 = vdwg.mxu0
    %189 = vrot.lane.b32.xlu0 %v180, 96
    %v190 = vpop.permute.xlu0 %189
    %vm191 = vcmask 64512
    %v192 = vsel %vm191, %v180, 0
    %v194 = vsel %vm191, %v190, 0
    %196 = vmatprep.subr.mxu0 0.0
    %197 = vmatpush1.xpose.msra.mxu0 %v194
    %198 = vmatprep.subr.mxu0 0.0
    %199 = vmatpush1.xpose.msra.mxu0 0.0
    %200 = vmatprep.subr.mxu0 0.0
    %201 = vmatpush1.xpose.msra.mxu0 0.0
    %202 = vmatprep.subr.mxu0 0.0
    %203 = vmatpush1.xpose.msra.mxu0 0.0
    %204 = vmatprep.subr.mxu0 0.0
    %205 = vmatpush1.xpose.msra.mxu0 0.0
    %206 = vmatprep.subr.mxu0 0.0
    %207 = vmatpush1.xpose.msra.mxu0 0.0
    %208 = vmatprep.subr.mxu0 0.0
    %209 = vmatpush1.xpose.msra.mxu0 0.0
    %210 = vmatprep.subr.mxu0 0.0
    %211 = vmatpush1.xpose.msra.mxu0 0.0
    %212 = vmatprep.subr.mxu0 0.0
    %213 = vmatpush1.xpose.msra.mxu0 0.0
    %214 = vmatprep.subr.mxu0 0.0
    %215 = vmatpush1.xpose.msra.mxu0 0.0
    %216 = vmatprep.subr.mxu0 0.0
    %217 = vmatpush1.xpose.msra.mxu0 0.0
    %218 = vmatprep.subr.mxu0 0.0
    %219 = vmatpush1.xpose.msra.mxu0 0.0
    %220 = vmatprep.subr.mxu0 0.0
    %221 = vmatpush1.xpose.msra.mxu0 0.0
    %222 = vmatprep.subr.mxu0 0.0
    %223 = vmatpush1.xpose.msra.mxu0 0.0
    %224 = vmatprep.subr.mxu0 0.0
    %225 = vmatpush1.xpose.msra.mxu0 0.0
    %226 = vmatprep.subr.mxu0 0.0
    %227 = vmatpush1.xpose.msra.mxu0 0.0
    %228 = vmatprep.subr.mxu0 0.0
    %229 = vmatpush1.xpose.msra.mxu0 0.0
    %230 = vmatprep.subr.mxu0 0.0
    %231 = vmatpush1.xpose.msra.mxu0 0.0
    %232 = vmatprep.subr.mxu0 0.0
    %233 = vmatpush1.xpose.msra.mxu0 0.0
    %234 = vmatprep.subr.mxu0 0.0
    %235 = vmatpush1.xpose.msra.mxu0 0.0
    %236 = vmatprep.subr.mxu0 0.0
    %237 = vmatpush1.xpose.msra.mxu0 0.0
    %238 = vmatprep.subr.mxu0 0.0
    %239 = vmatpush1.xpose.msra.mxu0 0.0
    %240 = vmatprep.subr.mxu0 0.0
    %241 = vmatpush1.xpose.msra.mxu0 0.0
    %242 = vmatprep.subr.mxu0 0.0
    %243 = vmatpush1.xpose.msra.mxu0 0.0
    %244 = vmatprep.subr.mxu0 0.0
    %245 = vmatpush1.xpose.msra.mxu0 0.0
    %246 = vmatprep.subr.mxu0 0.0
    %247 = vmatpush1.xpose.msra.mxu0 0.0
    %248 = vmatprep.subr.mxu0 0.0
    %249 = vmatpush1.xpose.msra.mxu0 0.0
    %250 = vmatprep.subr.mxu0 0.0
    %251 = vmatpush1.xpose.msra.mxu0 0.0
    %252 = vmatprep.subr.mxu0 0.0
    %253 = vmatpush1.xpose.msra.mxu0 0.0
    %254 = vmatprep.subr.mxu0 0.0
    %255 = vmatpush1.xpose.msra.mxu0 0.0
    %256 = vmatprep.subr.mxu0 0.0
    %257 = vmatpush1.xpose.msra.mxu0 0.0
    %258 = vmatprep.subr.mxu0 0.0
    %259 = vmatpush1.xpose.msra.mxu0 0.0
    %260 = vmatprep.mubr.f32.mxu0 0.0
    %261 = vmatmul.mubr.f32.gmra.mrb[0].mxu0 %v192
    %v262 = vpop.f32.mrb[0].mxu0
    %v263 = vadd.f32 0.0, %v262
    %v264 = vpop.f32.mrb[0].mxu0
    %265 = vdwg.mxu0
    %267 = vrot.lane.b32.xlu0 %v185, 96
    %v268 = vpop.permute.xlu0 %267
    %v269 = vsel %vm191, %v185, 0
    %v271 = vsel %vm191, %v268, 0
    %273 = vmatprep.subr.mxu0 0.0
    %274 = vmatpush1.xpose.msra.mxu0 %v271
    %275 = vmatprep.subr.mxu0 0.0
    %276 = vmatpush1.xpose.msra.mxu0 0.0
    %277 = vmatprep.subr.mxu0 0.0
    %278 = vmatpush1.xpose.msra.mxu0 0.0
    %279 = vmatprep.subr.mxu0 0.0
    %280 = vmatpush1.xpose.msra.mxu0 0.0
    %281 = vmatprep.subr.mxu0 0.0
    %282 = vmatpush1.xpose.msra.mxu0 0.0
    %283 = vmatprep.subr.mxu0 0.0
    %284 = vmatpush1.xpose.msra.mxu0 0.0
    %285 = vmatprep.subr.mxu0 0.0
    %286 = vmatpush1.xpose.msra.mxu0 0.0
    %287 = vmatprep.subr.mxu0 0.0
    %288 = vmatpush1.xpose.msra.mxu0 0.0
    %289 = vmatprep.subr.mxu0 0.0
    %290 = vmatpush1.xpose.msra.mxu0 0.0
    %291 = vmatprep.subr.mxu0 0.0
    %292 = vmatpush1.xpose.msra.mxu0 0.0
    %293 = vmatprep.subr.mxu0 0.0
    %294 = vmatpush1.xpose.msra.mxu0 0.0
    %295 = vmatprep.subr.mxu0 0.0
    %296 = vmatpush1.xpose.msra.mxu0 0.0
    %297 = vmatprep.subr.mxu0 0.0
    %298 = vmatpush1.xpose.msra.mxu0 0.0
    %299 = vmatprep.subr.mxu0 0.0
    %300 = vmatpush1.xpose.msra.mxu0 0.0
    %301 = vmatprep.subr.mxu0 0.0
    %302 = vmatpush1.xpose.msra.mxu0 0.0
    %303 = vmatprep.subr.mxu0 0.0
    %304 = vmatpush1.xpose.msra.mxu0 0.0
    %305 = vmatprep.subr.mxu0 0.0
    %306 = vmatpush1.xpose.msra.mxu0 0.0
    %307 = vmatprep.subr.mxu0 0.0
    %308 = vmatpush1.xpose.msra.mxu0 0.0
    %309 = vmatprep.subr.mxu0 0.0
    %310 = vmatpush1.xpose.msra.mxu0 0.0
    %311 = vmatprep.subr.mxu0 0.0
    %312 = vmatpush1.xpose.msra.mxu0 0.0
    %313 = vmatprep.subr.mxu0 0.0
    %314 = vmatpush1.xpose.msra.mxu0 0.0
    %315 = vmatprep.subr.mxu0 0.0
    %316 = vmatpush1.xpose.msra.mxu0 0.0
    %317 = vmatprep.subr.mxu0 0.0
    %318 = vmatpush1.xpose.msra.mxu0 0.0
    %319 = vmatprep.subr.mxu0 0.0
    %320 = vmatpush1.xpose.msra.mxu0 0.0
    %321 = vmatprep.subr.mxu0 0.0
    %322 = vmatpush1.xpose.msra.mxu0 0.0
    %323 = vmatprep.subr.mxu0 0.0
    %324 = vmatpush1.xpose.msra.mxu0 0.0
    %325 = vmatprep.subr.mxu0 0.0
    %326 = vmatpush1.xpose.msra.mxu0 0.0
    %327 = vmatprep.subr.mxu0 0.0
    %328 = vmatpush1.xpose.msra.mxu0 0.0
    %329 = vmatprep.subr.mxu0 0.0
    %330 = vmatpush1.xpose.msra.mxu0 0.0
    %331 = vmatprep.subr.mxu0 0.0
    %332 = vmatpush1.xpose.msra.mxu0 0.0
    %333 = vmatprep.subr.mxu0 0.0
    %334 = vmatpush1.xpose.msra.mxu0 0.0
    %335 = vmatprep.subr.mxu0 0.0
    %336 = vmatpush1.xpose.msra.mxu0 0.0
    %337 = vmatprep.mubr.f32.mxu0 0.0
    %338 = vmatmul.mubr.f32.gmra.mrb[0].mxu0 %v269
    %v339 = vpop.f32.mrb[0].mxu0
    %v340 = vadd.f32 0.0, %v339
    %v341 = vpop.f32.mrb[0].mxu0
    %342 = vdwg.mxu0
    %v343 = vsel %vm191, %v263, -inf
    %344 = vmax.xlane.f32.xlu0 %v343
    %v345 = vpop.xlane.xlu0 %344
    %v346 = vsel %vm191, %v340, -inf
    %347 = vmax.xlane.f32.xlu0 %v346
    %v348 = vpop.xlane.xlu0 %347
    %v349 = vsub.f32 %v263, %v345
    %v350 = vsub.f32 %v340, %v348
    %v351 = vmul.f32 %v349, 1.442695
    %v352 = vpow.pop %v351
    %v353 = vmul.f32 %v350, 1.442695
    %v354 = vpow.pop %v353
    %v355 = vsel %vm191, %v352, 0.0
    %356 = vadd.xlane.f32.xlu0 %v355
    %v357 = vpop.xlane.xlu0 %356
    %v358 = vsel %vm191, %v354, 0.0
    %359 = vadd.xlane.f32.xlu0 %v358
    %v360 = vpop.xlane.xlu0 %359
    %v361 = vrcp.pop %v357
    %v362 = vrcp.pop %v360
    %v363 = vmul.f32 %v352, %v361
    %v364 = vmul.f32 %v354, %v362
    %365 = vrot.lane.b32.xlu0 %v180, 64
    %v366 = vpop.permute.xlu0 %365
    %v369 = vsel %vm191, %v363, 0
    %371 = vmatprep.subr.mxu0 0.0
    %372 = vmatpush1.msra.mxu0 %v366
    %373 = vmatprep.subr.mxu0 0.0
    %374 = vmatpush1.msra.mxu0 0.0
    %375 = vmatprep.subr.mxu0 0.0
    %376 = vmatpush1.msra.mxu0 0.0
    %377 = vmatprep.subr.mxu0 0.0
    %378 = vmatpush1.msra.mxu0 0.0
    %379 = vmatprep.subr.mxu0 0.0
    %380 = vmatpush1.msra.mxu0 0.0
    %381 = vmatprep.subr.mxu0 0.0
    %382 = vmatpush1.msra.mxu0 0.0
    %383 = vmatprep.subr.mxu0 0.0
    %384 = vmatpush1.msra.mxu0 0.0
    %385 = vmatprep.subr.mxu0 0.0
    %386 = vmatpush1.msra.mxu0 0.0
    %387 = vmatprep.subr.mxu0 0.0
    %388 = vmatpush1.msra.mxu0 0.0
    %389 = vmatprep.subr.mxu0 0.0
    %390 = vmatpush1.msra.mxu0 0.0
    %391 = vmatprep.subr.mxu0 0.0
    %392 = vmatpush1.msra.mxu0 0.0
    %393 = vmatprep.subr.mxu0 0.0
    %394 = vmatpush1.msra.mxu0 0.0
    %395 = vmatprep.subr.mxu0 0.0
    %396 = vmatpush1.msra.mxu0 0.0
    %397 = vmatprep.subr.mxu0 0.0
    %398 = vmatpush1.msra.mxu0 0.0
    %399 = vmatprep.subr.mxu0 0.0
    %400 = vmatpush1.msra.mxu0 0.0
    %401 = vmatprep.subr.mxu0 0.0
    %402 = vmatpush1.msra.mxu0 0.0
    %403 = vmatprep.subr.mxu0 0.0
    %404 = vmatpush1.msra.mxu0 0.0
    %405 = vmatprep.subr.mxu0 0.0
    %406 = vmatpush1.msra.mxu0 0.0
    %407 = vmatprep.subr.mxu0 0.0
    %408 = vmatpush1.msra.mxu0 0.0
    %409 = vmatprep.subr.mxu0 0.0
    %410 = vmatpush1.msra.mxu0 0.0
    %411 = vmatprep.subr.mxu0 0.0
    %412 = vmatpush1.msra.mxu0 0.0
    %413 = vmatprep.subr.mxu0 0.0
    %414 = vmatpush1.msra.mxu0 0.0
    %415 = vmatprep.subr.mxu0 0.0
    %416 = vmatpush1.msra.mxu0 0.0
    %417 = vmatprep.subr.mxu0 0.0
    %418 = vmatpush1.msra.mxu0 0.0
    %419 = vmatprep.subr.mxu0 0.0
    %420 = vmatpush1.msra.mxu0 0.0
    %421 = vmatprep.subr.mxu0 0.0
    %422 = vmatpush1.msra.mxu0 0.0
    %423 = vmatprep.subr.mxu0 0.0
    %424 = vmatpush1.msra.mxu0 0.0
    %425 = vmatprep.subr.mxu0 0.0
    %426 = vmatpush1.msra.mxu0 0.0
    %427 = vmatprep.subr.mxu0 0.0
    %428 = vmatpush1.msra.mxu0 0.0
    %429 = vmatprep.subr.mxu0 0.0
    %430 = vmatpush1.msra.mxu0 0.0
    %431 = vmatprep.subr.mxu0 0.0
    %432 = vmatpush1.msra.mxu0 0.0
    %433 = vmatprep.subr.mxu0 0.0
    %434 = vmatpush1.msra.mxu0 0.0
    %435 = vmatprep.mubr.f32.mxu0 0.0
    %436 = vmatmul.mubr.f32.gmra.mrb[0].mxu0 %v369
    %v437 = vpop.f32.mrb[0].mxu0
    %v438 = vadd.f32 0.0, %v437
    %v439 = vpop.f32.mrb[0].mxu0
    %440 = vdwg.mxu0
    %441 = vrot.lane.b32.xlu0 %v185, 64
    %v442 = vpop.permute.xlu0 %441
    %v445 = vsel %vm191, %v364, 0
    %447 = vmatprep.subr.mxu0 0.0
    %448 = vmatpush1.msra.mxu0 %v442
    %449 = vmatprep.subr.mxu0 0.0
    %450 = vmatpush1.msra.mxu0 0.0
    %451 = vmatprep.subr.mxu0 0.0
    %452 = vmatpush1.msra.mxu0 0.0
    %453 = vmatprep.subr.mxu0 0.0
    %454 = vmatpush1.msra.mxu0 0.0
    %455 = vmatprep.subr.mxu0 0.0
    %456 = vmatpush1.msra.mxu0 0.0
    %457 = vmatprep.subr.mxu0 0.0
    %458 = vmatpush1.msra.mxu0 0.0
    %459 = vmatprep.subr.mxu0 0.0
    %460 = vmatpush1.msra.mxu0 0.0
    %461 = vmatprep.subr.mxu0 0.0
    %462 = vmatpush1.msra.mxu0 0.0
    %463 = vmatprep.subr.mxu0 0.0
    %464 = vmatpush1.msra.mxu0 0.0
    %465 = vmatprep.subr.mxu0 0.0
    %466 = vmatpush1.msra.mxu0 0.0
    %467 = vmatprep.subr.mxu0 0.0
    %468 = vmatpush1.msra.mxu0 0.0
    %469 = vmatprep.subr.mxu0 0.0
    %470 = vmatpush1.msra.mxu0 0.0
    %471 = vmatprep.subr.mxu0 0.0
    %472 = vmatpush1.msra.mxu0 0.0
    %473 = vmatprep.subr.mxu0 0.0
    %474 = vmatpush1.msra.mxu0 0.0
    %475 = vmatprep.subr.mxu0 0.0
    %476 = vmatpush1.msra.mxu0 0.0
    %477 = vmatprep.subr.mxu0 0.0
    %478 = vmatpush1.msra.mxu0 0.0
    %479 = vmatprep.subr.mxu0 0.0
    %480 = vmatpush1.msra.mxu0 0.0
    %481 = vmatprep.subr.mxu0 0.0
    %482 = vmatpush1.msra.mxu0 0.0
    %483 = vmatprep.subr.mxu0 0.0
    %484 = vmatpush1.msra.mxu0 0.0
    %485 = vmatprep.subr.mxu0 0.0
    %486 = vmatpush1.msra.mxu0 0.0
    %487 = vmatprep.subr.mxu0 0.0
    %488 = vmatpush1.msra.mxu0 0.0
    %489 = vmatprep.subr.mxu0 0.0
    %490 = vmatpush1.msra.mxu0 0.0
    %491 = vmatprep.subr.mxu0 0.0
    %492 = vmatpush1.msra.mxu0 0.0
    %493 = vmatprep.subr.mxu0 0.0
    %494 = vmatpush1.msra.mxu0 0.0
    %495 = vmatprep.subr.mxu0 0.0
    %496 = vmatpush1.msra.mxu0 0.0
    %497 = vmatprep.subr.mxu0 0.0
    %498 = vmatpush1.msra.mxu0 0.0
    %499 = vmatprep.subr.mxu0 0.0
    %500 = vmatpush1.msra.mxu0 0.0
    %501 = vmatprep.subr.mxu0 0.0
    %502 = vmatpush1.msra.mxu0 0.0
    %503 = vmatprep.subr.mxu0 0.0
    %504 = vmatpush1.msra.mxu0 0.0
    %505 = vmatprep.subr.mxu0 0.0
    %506 = vmatpush1.msra.mxu0 0.0
    %507 = vmatprep.subr.mxu0 0.0
    %508 = vmatpush1.msra.mxu0 0.0
    %509 = vmatprep.subr.mxu0 0.0
    %510 = vmatpush1.msra.mxu0 0.0
    %511 = vmatprep.mubr.f32.mxu0 0.0
    %512 = vmatmul.mubr.f32.gmra.mrb[0].mxu0 %v445
    %v513 = vpop.f32.mrb[0].mxu0
    %v514 = vadd.f32 0.0, %v513
    %v515 = vpop.f32.mrb[0].mxu0
    %516 = vdwg.mxu0
    %517 = vrot.lane.b32.xlu0 %v180, 120
    %v518 = vpop.permute.xlu0 %517
    %519 = vrot.lane.b32.xlu0 %v180, 88
    %v520 = vpop.permute.xlu0 %519
    %v521 = vsel %vm191, %v518, 0
    %v523 = vsel %vm191, %v520, 0
    %525 = vmatprep.subr.mxu0 0.0
    %526 = vmatpush1.xpose.msra.mxu0 %v523
    %527 = vmatprep.subr.mxu0 0.0
    %528 = vmatpush1.xpose.msra.mxu0 0.0
    %529 = vmatprep.subr.mxu0 0.0
    %530 = vmatpush1.xpose.msra.mxu0 0.0
    %531 = vmatprep.subr.mxu0 0.0
    %532 = vmatpush1.xpose.msra.mxu0 0.0
    %533 = vmatprep.subr.mxu0 0.0
    %534 = vmatpush1.xpose.msra.mxu0 0.0
    %535 = vmatprep.subr.mxu0 0.0
    %536 = vmatpush1.xpose.msra.mxu0 0.0
    %537 = vmatprep.subr.mxu0 0.0
    %538 = vmatpush1.xpose.msra.mxu0 0.0
    %539 = vmatprep.subr.mxu0 0.0
    %540 = vmatpush1.xpose.msra.mxu0 0.0
    %541 = vmatprep.subr.mxu0 0.0
    %542 = vmatpush1.xpose.msra.mxu0 0.0
    %543 = vmatprep.subr.mxu0 0.0
    %544 = vmatpush1.xpose.msra.mxu0 0.0
    %545 = vmatprep.subr.mxu0 0.0
    %546 = vmatpush1.xpose.msra.mxu0 0.0
    %547 = vmatprep.subr.mxu0 0.0
    %548 = vmatpush1.xpose.msra.mxu0 0.0
    %549 = vmatprep.subr.mxu0 0.0
    %550 = vmatpush1.xpose.msra.mxu0 0.0
    %551 = vmatprep.subr.mxu0 0.0
    %552 = vmatpush1.xpose.msra.mxu0 0.0
    %553 = vmatprep.subr.mxu0 0.0
    %554 = vmatpush1.xpose.msra.mxu0 0.0
    %555 = vmatprep.subr.mxu0 0.0
    %556 = vmatpush1.xpose.msra.mxu0 0.0
    %557 = vmatprep.subr.mxu0 0.0
    %558 = vmatpush1.xpose.msra.mxu0 0.0
    %559 = vmatprep.subr.mxu0 0.0
    %560 = vmatpush1.xpose.msra.mxu0 0.0
    %561 = vmatprep.subr.mxu0 0.0
    %562 = vmatpush1.xpose.msra.mxu0 0.0
    %563 = vmatprep.subr.mxu0 0.0
    %564 = vmatpush1.xpose.msra.mxu0 0.0
    %565 = vmatprep.subr.mxu0 0.0
    %566 = vmatpush1.xpose.msra.mxu0 0.0
    %567 = vmatprep.subr.mxu0 0.0
    %568 = vmatpush1.xpose.msra.mxu0 0.0
    %569 = vmatprep.subr.mxu0 0.0
    %570 = vmatpush1.xpose.msra.mxu0 0.0
    %571 = vmatprep.subr.mxu0 0.0
    %572 = vmatpush1.xpose.msra.mxu0 0.0
    %573 = vmatprep.subr.mxu0 0.0
    %574 = vmatpush1.xpose.msra.mxu0 0.0
    %575 = vmatprep.subr.mxu0 0.0
    %576 = vmatpush1.xpose.msra.mxu0 0.0
    %577 = vmatprep.subr.mxu0 0.0
    %578 = vmatpush1.xpose.msra.mxu0 0.0
    %579 = vmatprep.subr.mxu0 0.0
    %580 = vmatpush1.xpose.msra.mxu0 0.0
    %581 = vmatprep.subr.mxu0 0.0
    %582 = vmatpush1.xpose.msra.mxu0 0.0
    %583 = vmatprep.subr.mxu0 0.0
    %584 = vmatpush1.xpose.msra.mxu0 0.0
    %585 = vmatprep.subr.mxu0 0.0
    %586 = vmatpush1.xpose.msra.mxu0 0.0
    %587 = vmatprep.subr.mxu0 0.0
    %588 = vmatpush1.xpose.msra.mxu0 0.0
    %589 = vmatprep.mubr.f32.mxu0 0.0
    %590 = vmatmul.mubr.f32.gmra.mrb[0].mxu0 %v521
    %v591 = vpop.f32.mrb[0].mxu0
    %v592 = vadd.f32 0.0, %v591
    %v593 = vpop.f32.mrb[0].mxu0
    %594 = vdwg.mxu0
    %595 = vrot.lane.b32.xlu0 %v185, 120
    %v596 = vpop.permute.xlu0 %595
    %597 = vrot.lane.b32.xlu0 %v185, 88
    %v598 = vpop.permute.xlu0 %597
    %v599 = vsel %vm191, %v596, 0
    %v601 = vsel %vm191, %v598, 0
    %603 = vmatprep.subr.mxu0 0.0
    %604 = vmatpush1.xpose.msra.mxu0 %v601
    %605 = vmatprep.subr.mxu0 0.0
    %606 = vmatpush1.xpose.msra.mxu0 0.0
    %607 = vmatprep.subr.mxu0 0.0
    %608 = vmatpush1.xpose.msra.mxu0 0.0
    %609 = vmatprep.subr.mxu0 0.0
    %610 = vmatpush1.xpose.msra.mxu0 0.0
    %611 = vmatprep.subr.mxu0 0.0
    %612 = vmatpush1.xpose.msra.mxu0 0.0
    %613 = vmatprep.subr.mxu0 0.0
    %614 = vmatpush1.xpose.msra.mxu0 0.0
    %615 = vmatprep.subr.mxu0 0.0
    %616 = vmatpush1.xpose.msra.mxu0 0.0
    %617 = vmatprep.subr.mxu0 0.0
    %618 = vmatpush1.xpose.msra.mxu0 0.0
    %619 = vmatprep.subr.mxu0 0.0
    %620 = vmatpush1.xpose.msra.mxu0 0.0
    %621 = vmatprep.subr.mxu0 0.0
    %622 = vmatpush1.xpose.msra.mxu0 0.0
    %623 = vmatprep.subr.mxu0 0.0
    %624 = vmatpush1.xpose.msra.mxu0 0.0
    %625 = vmatprep.subr.mxu0 0.0
    %626 = vmatpush1.xpose.msra.mxu0 0.0
    %627 = vmatprep.subr.mxu0 0.0
    %628 = vmatpush1.xpose.msra.mxu0 0.0
    %629 = vmatprep.subr.mxu0 0.0
    %630 = vmatpush1.xpose.msra.mxu0 0.0
    %631 = vmatprep.subr.mxu0 0.0
    %632 = vmatpush1.xpose.msra.mxu0 0.0
    %633 = vmatprep.subr.mxu0 0.0
    %634 = vmatpush1.xpose.msra.mxu0 0.0
    %635 = vmatprep.subr.mxu0 0.0
    %636 = vmatpush1.xpose.msra.mxu0 0.0
    %637 = vmatprep.subr.mxu0 0.0
    %638 = vmatpush1.xpose.msra.mxu0 0.0
    %639 = vmatprep.subr.mxu0 0.0
    %640 = vmatpush1.xpose.msra.mxu0 0.0
    %641 = vmatprep.subr.mxu0 0.0
    %642 = vmatpush1.xpose.msra.mxu0 0.0
    %643 = vmatprep.subr.mxu0 0.0
    %644 = vmatpush1.xpose.msra.mxu0 0.0
    %645 = vmatprep.subr.mxu0 0.0
    %646 = vmatpush1.xpose.msra.mxu0 0.0
    %647 = vmatprep.subr.mxu0 0.0
    %648 = vmatpush1.xpose.msra.mxu0 0.0
    %649 = vmatprep.subr.mxu0 0.0
    %650 = vmatpush1.xpose.msra.mxu0 0.0
    %651 = vmatprep.subr.mxu0 0.0
    %652 = vmatpush1.xpose.msra.mxu0 0.0
    %653 = vmatprep.subr.mxu0 0.0
    %654 = vmatpush1.xpose.msra.mxu0 0.0
    %655 = vmatprep.subr.mxu0 0.0
    %656 = vmatpush1.xpose.msra.mxu0 0.0
    %657 = vmatprep.subr.mxu0 0.0
    %658 = vmatpush1.xpose.msra.mxu0 0.0
    %659 = vmatprep.subr.mxu0 0.0
    %660 = vmatpush1.xpose.msra.mxu0 0.0
    %661 = vmatprep.subr.mxu0 0.0
    %662 = vmatpush1.xpose.msra.mxu0 0.0
    %663 = vmatprep.subr.mxu0 0.0
    %664 = vmatpush1.xpose.msra.mxu0 0.0
    %665 = vmatprep.subr.mxu0 0.0
    %666 = vmatpush1.xpose.msra.mxu0 0.0
    %667 = vmatprep.mubr.f32.mxu0 0.0
    %668 = vmatmul.mubr.f32.gmra.mrb[0].mxu0 %v599
    %v669 = vpop.f32.mrb[0].mxu0
    %v670 = vadd.f32 0.0, %v669
    %v671 = vpop.f32.mrb[0].mxu0
    %672 = vdwg.mxu0
    %v673 = vsel %vm191, %v592, -inf
    %674 = vmax.xlane.f32.xlu0 %v673
    %v675 = vpop.xlane.xlu0 %674
    %v676 = vsel %vm191, %v670, -inf
    %677 = vmax.xlane.f32.xlu0 %v676
    %v678 = vpop.xlane.xlu0 %677
    %v679 = vsub.f32 %v592, %v675
    %v680 = vsub.f32 %v670, %v678
    %v681 = vmul.f32 %v679, 1.442695
    %v682 = vpow.pop %v681
    %v683 = vmul.f32 %v680, 1.442695
    %v684 = vpow.pop %v683
    %v685 = vsel %vm191, %v682, 0.0
    %686 = vadd.xlane.f32.xlu0 %v685
    %v687 = vpop.xlane.xlu0 %686
    %v688 = vsel %vm191, %v684, 0.0
    %689 = vadd.xlane.f32.xlu0 %v688
    %v690 = vpop.xlane.xlu0 %689
    %v691 = vrcp.pop %v687
    %v692 = vrcp.pop %v690
    %v693 = vmul.f32 %v682, %v691
    %v694 = vmul.f32 %v684, %v692
    %695 = vrot.lane.b32.xlu0 %v180, 56
    %v696 = vpop.permute.xlu0 %695
    %v699 = vsel %vm191, %v693, 0
    %701 = vmatprep.subr.mxu0 0.0
    %702 = vmatpush1.msra.mxu0 %v696
    %703 = vmatprep.subr.mxu0 0.0
    %704 = vmatpush1.msra.mxu0 0.0
    %705 = vmatprep.subr.mxu0 0.0
    %706 = vmatpush1.msra.mxu0 0.0
    %707 = vmatprep.subr.mxu0 0.0
    %708 = vmatpush1.msra.mxu0 0.0
    %709 = vmatprep.subr.mxu0 0.0
    %710 = vmatpush1.msra.mxu0 0.0
    %711 = vmatprep.subr.mxu0 0.0
    %712 = vmatpush1.msra.mxu0 0.0
    %713 = vmatprep.subr.mxu0 0.0
    %714 = vmatpush1.msra.mxu0 0.0
    %715 = vmatprep.subr.mxu0 0.0
    %716 = vmatpush1.msra.mxu0 0.0
    %717 = vmatprep.subr.mxu0 0.0
    %718 = vmatpush1.msra.mxu0 0.0
    %719 = vmatprep.subr.mxu0 0.0
    %720 = vmatpush1.msra.mxu0 0.0
    %721 = vmatprep.subr.mxu0 0.0
    %722 = vmatpush1.msra.mxu0 0.0
    %723 = vmatprep.subr.mxu0 0.0
    %724 = vmatpush1.msra.mxu0 0.0
    %725 = vmatprep.subr.mxu0 0.0
    %726 = vmatpush1.msra.mxu0 0.0
    %727 = vmatprep.subr.mxu0 0.0
    %728 = vmatpush1.msra.mxu0 0.0
    %729 = vmatprep.subr.mxu0 0.0
    %730 = vmatpush1.msra.mxu0 0.0
    %731 = vmatprep.subr.mxu0 0.0
    %732 = vmatpush1.msra.mxu0 0.0
    %733 = vmatprep.subr.mxu0 0.0
    %734 = vmatpush1.msra.mxu0 0.0
    %735 = vmatprep.subr.mxu0 0.0
    %736 = vmatpush1.msra.mxu0 0.0
    %737 = vmatprep.subr.mxu0 0.0
    %738 = vmatpush1.msra.mxu0 0.0
    %739 = vmatprep.subr.mxu0 0.0
    %740 = vmatpush1.msra.mxu0 0.0
    %741 = vmatprep.subr.mxu0 0.0
    %742 = vmatpush1.msra.mxu0 0.0
    %743 = vmatprep.subr.mxu0 0.0
    %744 = vmatpush1.msra.mxu0 0.0
    %745 = vmatprep.subr.mxu0 0.0
    %746 = vmatpush1.msra.mxu0 0.0
    %747 = vmatprep.subr.mxu0 0.0
    %748 = vmatpush1.msra.mxu0 0.0
    %749 = vmatprep.subr.mxu0 0.0
    %750 = vmatpush1.msra.mxu0 0.0
    %751 = vmatprep.subr.mxu0 0.0
    %752 = vmatpush1.msra.mxu0 0.0
    %753 = vmatprep.subr.mxu0 0.0
    %754 = vmatpush1.msra.mxu0 0.0
    %755 = vmatprep.subr.mxu0 0.0
    %756 = vmatpush1.msra.mxu0 0.0
    %757 = vmatprep.subr.mxu0 0.0
    %758 = vmatpush1.msra.mxu0 0.0
    %759 = vmatprep.subr.mxu0 0.0
    %760 = vmatpush1.msra.mxu0 0.0
    %761 = vmatprep.subr.mxu0 0.0
    %762 = vmatpush1.msra.mxu0 0.0
    %763 = vmatprep.subr.mxu0 0.0
    %764 = vmatpush1.msra.mxu0 0.0
    %765 = vmatprep.mubr.f32.mxu0 0.0
    %766 = vmatmul.mubr.f32.gmra.mrb[0].mxu0 %v699
    %v767 = vpop.f32.mrb[0].mxu0
    %v768 = vadd.f32 0.0, %v767
    %v769 = vpop.f32.mrb[0].mxu0
    %770 = vdwg.mxu0
    %771 = vrot.lane.b32.xlu0 %v185, 56
    %v772 = vpop.permute.xlu0 %771
    %v775 = vsel %vm191, %v694, 0
    %777 = vmatprep.subr.mxu0 0.0
    %778 = vmatpush1.msra.mxu0 %v772
    %779 = vmatprep.subr.mxu0 0.0
    %780 = vmatpush1.msra.mxu0 0.0
    %781 = vmatprep.subr.mxu0 0.0
    %782 = vmatpush1.msra.mxu0 0.0
    %783 = vmatprep.subr.mxu0 0.0
    %784 = vmatpush1.msra.mxu0 0.0
    %785 = vmatprep.subr.mxu0 0.0
    %786 = vmatpush1.msra.mxu0 0.0
    %787 = vmatprep.subr.mxu0 0.0
    %788 = vmatpush1.msra.mxu0 0.0
    %789 = vmatprep.subr.mxu0 0.0
    %790 = vmatpush1.msra.mxu0 0.0
    %791 = vmatprep.subr.mxu0 0.0
    %792 = vmatpush1.msra.mxu0 0.0
    %793 = vmatprep.subr.mxu0 0.0
    %794 = vmatpush1.msra.mxu0 0.0
    %795 = vmatprep.subr.mxu0 0.0
    %796 = vmatpush1.msra.mxu0 0.0
    %797 = vmatprep.subr.mxu0 0.0
    %798 = vmatpush1.msra.mxu0 0.0
    %799 = vmatprep.subr.mxu0 0.0
    %800 = vmatpush1.msra.mxu0 0.0
    %801 = vmatprep.subr.mxu0 0.0
    %802 = vmatpush1.msra.mxu0 0.0
    %803 = vmatprep.subr.mxu0 0.0
    %804 = vmatpush1.msra.mxu0 0.0
    %805 = vmatprep.subr.mxu0 0.0
    %806 = vmatpush1.msra.mxu0 0.0
    %807 = vmatprep.subr.mxu0 0.0
    %808 = vmatpush1.msra.mxu0 0.0
    %809 = vmatprep.subr.mxu0 0.0
    %810 = vmatpush1.msra.mxu0 0.0
    %811 = vmatprep.subr.mxu0 0.0
    %812 = vmatpush1.msra.mxu0 0.0
    %813 = vmatprep.subr.mxu0 0.0
    %814 = vmatpush1.msra.mxu0 0.0
    %815 = vmatprep.subr.mxu0 0.0
    %816 = vmatpush1.msra.mxu0 0.0
    %817 = vmatprep.subr.mxu0 0.0
    %818 = vmatpush1.msra.mxu0 0.0
    %819 = vmatprep.subr.mxu0 0.0
    %820 = vmatpush1.msra.mxu0 0.0
    %821 = vmatprep.subr.mxu0 0.0
    %822 = vmatpush1.msra.mxu0 0.0
    %823 = vmatprep.subr.mxu0 0.0
    %824 = vmatpush1.msra.mxu0 0.0
    %825 = vmatprep.subr.mxu0 0.0
    %826 = vmatpush1.msra.mxu0 0.0
    %827 = vmatprep.subr.mxu0 0.0
    %828 = vmatpush1.msra.mxu0 0.0
    %829 = vmatprep.subr.mxu0 0.0
    %830 = vmatpush1.msra.mxu0 0.0
    %831 = vmatprep.subr.mxu0 0.0
    %832 = vmatpush1.msra.mxu0 0.0
    %833 = vmatprep.subr.mxu0 0.0
    %834 = vmatpush1.msra.mxu0 0.0
    %835 = vmatprep.subr.mxu0 0.0
    %836 = vmatpush1.msra.mxu0 0.0
    %837 = vmatprep.subr.mxu0 0.0
    %838 = vmatpush1.msra.mxu0 0.0
    %839 = vmatprep.subr.mxu0 0.0
    %840 = vmatpush1.msra.mxu0 0.0
    %841 = vmatprep.mubr.f32.mxu0 0.0
    %842 = vmatmul.mubr.f32.gmra.mrb[0].mxu0 %v775
    %v843 = vpop.f32.mrb[0].mxu0
    %v844 = vadd.f32 0.0, %v843
    %v845 = vpop.f32.mrb[0].mxu0
    %846 = vdwg.mxu0
    %v848 = vsel %vm191, %v768, 0
    %v851 = vsel %vm191, %v844, 0
    %853 = vmatprep.subr.mxu0 0.0
    %854 = vmatpush1.msra.mxu0 %v55
    %855 = vmatprep.subr.mxu0 0.0
    %856 = vmatpush1.msra.mxu0 0.0
    %857 = vmatprep.subr.mxu0 0.0
    %858 = vmatpush1.msra.mxu0 0.0
    %859 = vmatprep.subr.mxu0 0.0
    %860 = vmatpush1.msra.mxu0 0.0
    %861 = vmatprep.subr.mxu0 0.0
    %862 = vmatpush1.msra.mxu0 0.0
    %863 = vmatprep.subr.mxu0 0.0
    %864 = vmatpush1.msra.mxu0 0.0
    %865 = vmatprep.subr.mxu0 0.0
    %866 = vmatpush1.msra.mxu0 0.0
    %867 = vmatprep.subr.mxu0 0.0
    %868 = vmatpush1.msra.mxu0 0.0
    %869 = vmatprep.subr.mxu0 0.0
    %870 = vmatpush1.msra.mxu0 0.0
    %871 = vmatprep.subr.mxu0 0.0
    %872 = vmatpush1.msra.mxu0 0.0
    %873 = vmatprep.subr.mxu0 0.0
    %874 = vmatpush1.msra.mxu0 0.0
    %875 = vmatprep.subr.mxu0 0.0
    %876 = vmatpush1.msra.mxu0 0.0
    %877 = vmatprep.subr.mxu0 0.0
    %878 = vmatpush1.msra.mxu0 0.0
    %879 = vmatprep.subr.mxu0 0.0
    %880 = vmatpush1.msra.mxu0 0.0
    %881 = vmatprep.subr.mxu0 0.0
    %882 = vmatpush1.msra.mxu0 0.0
    %883 = vmatprep.subr.mxu0 0.0
    %884 = vmatpush1.msra.mxu0 0.0
    %885 = vmatprep.subr.mxu0 0.0
    %886 = vmatpush1.msra.mxu0 0.0
    %887 = vmatprep.subr.mxu0 0.0
    %888 = vmatpush1.msra.mxu0 0.0
    %889 = vmatprep.subr.mxu0 0.0
    %890 = vmatpush1.msra.mxu0 0.0
    %891 = vmatprep.subr.mxu0 0.0
    %892 = vmatpush1.msra.mxu0 0.0
    %893 = vmatprep.subr.mxu0 0.0
    %894 = vmatpush1.msra.mxu0 0.0
    %895 = vmatprep.subr.mxu0 0.0
    %896 = vmatpush1.msra.mxu0 0.0
    %897 = vmatprep.subr.mxu0 0.0
    %898 = vmatpush1.msra.mxu0 0.0
    %899 = vmatprep.subr.mxu0 0.0
    %900 = vmatpush1.msra.mxu0 0.0
    %901 = vmatprep.subr.mxu0 0.0
    %902 = vmatpush1.msra.mxu0 0.0
    %903 = vmatprep.subr.mxu0 0.0
    %904 = vmatpush1.msra.mxu0 0.0
    %905 = vmatprep.subr.mxu0 0.0
    %906 = vmatpush1.msra.mxu0 0.0
    %907 = vmatprep.subr.mxu0 0.0
    %908 = vmatpush1.msra.mxu0 0.0
    %909 = vmatprep.subr.mxu0 0.0
    %910 = vmatpush1.msra.mxu0 0.0
    %911 = vmatprep.subr.mxu0 0.0
    %912 = vmatpush1.msra.mxu0 0.0
    %913 = vmatprep.subr.mxu0 0.0
    %914 = vmatpush1.msra.mxu0 0.0
    %915 = vmatprep.subr.mxu0 0.0
    %916 = vmatpush1.msra.mxu0 0.0
    %917 = vmatprep.mubr.f32.mxu0 0.0
    %918 = vmatmul.mubr.f32.gmra.mrb[0].mxu0 %v848
    %v919 = vpop.f32.mrb[0].mxu0
    %v920 = vadd.f32 0.0, %v919
    %v921 = vpop.f32.mrb[0].mxu0
    %922 = vmatprep.mubr.f32.mxu0 0.0
    %923 = vmatmul.mubr.f32.gmra.mrb[0].mxu0 %v851
    %v924 = vpop.f32.mrb[0].mxu0
    %v925 = vadd.f32 0.0, %v924
    %v926 = vpop.f32.mrb[0].mxu0
    %927 = vdwg.mxu0
    %v929 = vsel %vm191, %v438, 0
    %v932 = vsel %vm191, %v514, 0
    %934 = vmatprep.subr.mxu0 0.0
    %935 = vmatpush1.msra.mxu0 %v54
    %936 = vmatprep.subr.mxu0 0.0
    %937 = vmatpush1.msra.mxu0 0.0
    %938 = vmatprep.subr.mxu0 0.0
    %939 = vmatpush1.msra.mxu0 0.0
    %940 = vmatprep.subr.mxu0 0.0
    %941 = vmatpush1.msra.mxu0 0.0
    %942 = vmatprep.subr.mxu0 0.0
    %943 = vmatpush1.msra.mxu0 0.0
    %944 = vmatprep.subr.mxu0 0.0
    %945 = vmatpush1.msra.mxu0 0.0
    %946 = vmatprep.subr.mxu0 0.0
    %947 = vmatpush1.msra.mxu0 0.0
    %948 = vmatprep.subr.mxu0 0.0
    %949 = vmatpush1.msra.mxu0 0.0
    %950 = vmatprep.subr.mxu0 0.0
    %951 = vmatpush1.msra.mxu0 0.0
    %952 = vmatprep.subr.mxu0 0.0
    %953 = vmatpush1.msra.mxu0 0.0
    %954 = vmatprep.subr.mxu0 0.0
    %955 = vmatpush1.msra.mxu0 0.0
    %956 = vmatprep.subr.mxu0 0.0
    %957 = vmatpush1.msra.mxu0 0.0
    %958 = vmatprep.subr.mxu0 0.0
    %959 = vmatpush1.msra.mxu0 0.0
    %960 = vmatprep.subr.mxu0 0.0
    %961 = vmatpush1.msra.mxu0 0.0
    %962 = vmatprep.subr.mxu0 0.0
    %963 = vmatpush1.msra.mxu0 0.0
    %964 = vmatprep.subr.mxu0 0.0
    %965 = vmatpush1.msra.mxu0 0.0
    %966 = vmatprep.subr.mxu0 0.0
    %967 = vmatpush1.msra.mxu0 0.0
    %968 = vmatprep.subr.mxu0 0.0
    %969 = vmatpush1.msra.mxu0 0.0
    %970 = vmatprep.subr.mxu0 0.0
    %971 = vmatpush1.msra.mxu0 0.0
    %972 = vmatprep.subr.mxu0 0.0
    %973 = vmatpush1.msra.mxu0 0.0
    %974 = vmatprep.subr.mxu0 0.0
    %975 = vmatpush1.msra.mxu0 0.0
    %976 = vmatprep.subr.mxu0 0.0
    %977 = vmatpush1.msra.mxu0 0.0
    %978 = vmatprep.subr.mxu0 0.0
    %979 = vmatpush1.msra.mxu0 0.0
    %980 = vmatprep.subr.mxu0 0.0
    %981 = vmatpush1.msra.mxu0 0.0
    %982 = vmatprep.subr.mxu0 0.0
    %983 = vmatpush1.msra.mxu0 0.0
    %984 = vmatprep.subr.mxu0 0.0
    %985 = vmatpush1.msra.mxu0 0.0
    %986 = vmatprep.subr.mxu0 0.0
    %987 = vmatpush1.msra.mxu0 0.0
    %988 = vmatprep.subr.mxu0 0.0
    %989 = vmatpush1.msra.mxu0 0.0
    %990 = vmatprep.subr.mxu0 0.0
    %991 = vmatpush1.msra.mxu0 0.0
    %992 = vmatprep.subr.mxu0 0.0
    %993 = vmatpush1.msra.mxu0 0.0
    %994 = vmatprep.subr.mxu0 0.0
    %995 = vmatpush1.msra.mxu0 0.0
    %996 = vmatprep.subr.mxu0 0.0
    %997 = vmatpush1.msra.mxu0 0.0
    %998 = vmatprep.mubr.f32.mxu0 0.0
    %999 = vmatmul.mubr.f32.gmra.mrb[0].mxu0 %v929
    %v1000 = vpop.f32.mrb[0].mxu0
    %v1001 = vadd.f32 %v920, %v1000
    %v1002 = vpop.f32.mrb[0].mxu0
    %1003 = vmatprep.mubr.f32.mxu0 0.0
    %1004 = vmatmul.mubr.f32.gmra.mrb[0].mxu0 %v932
    %v1005 = vpop.f32.mrb[0].mxu0
    %v1006 = vadd.f32 %v925, %v1005
    %v1007 = vpop.f32.mrb[0].mxu0
    %1008 = vdwg.mxu0
    %1009 = vrot.lane.b32.xlu0 %v180, 112
    %v1010 = vpop.permute.xlu0 %1009
    %1011 = vrot.lane.b32.xlu0 %v180, 80
    %v1012 = vpop.permute.xlu0 %1011
    %v1013 = vsel %vm191, %v1010, 0
    %v1015 = vsel %vm191, %v1012, 0
    %1017 = vmatprep.subr.mxu0 0.0
    %1018 = vmatpush1.xpose.msra.mxu0 %v1015
    %1019 = vmatprep.subr.mxu0 0.0
    %1020 = vmatpush1.xpose.msra.mxu0 0.0
    %1021 = vmatprep.subr.mxu0 0.0
    %1022 = vmatpush1.xpose.msra.mxu0 0.0
    %1023 = vmatprep.subr.mxu0 0.0
    %1024 = vmatpush1.xpose.msra.mxu0 0.0
    %1025 = vmatprep.subr.mxu0 0.0
    %1026 = vmatpush1.xpose.msra.mxu0 0.0
    %1027 = vmatprep.subr.mxu0 0.0
    %1028 = vmatpush1.xpose.msra.mxu0 0.0
    %1029 = vmatprep.subr.mxu0 0.0
    %1030 = vmatpush1.xpose.msra.mxu0 0.0
    %1031 = vmatprep.subr.mxu0 0.0
    %1032 = vmatpush1.xpose.msra.mxu0 0.0
    %1033 = vmatprep.subr.mxu0 0.0
    %1034 = vmatpush1.xpose.msra.mxu0 0.0
    %1035 = vmatprep.subr.mxu0 0.0
    %1036 = vmatpush1.xpose.msra.mxu0 0.0
    %1037 = vmatprep.subr.mxu0 0.0
    %1038 = vmatpush1.xpose.msra.mxu0 0.0
    %1039 = vmatprep.subr.mxu0 0.0
    %1040 = vmatpush1.xpose.msra.mxu0 0.0
    %1041 = vmatprep.subr.mxu0 0.0
    %1042 = vmatpush1.xpose.msra.mxu0 0.0
    %1043 = vmatprep.subr.mxu0 0.0
    %1044 = vmatpush1.xpose.msra.mxu0 0.0
    %1045 = vmatprep.subr.mxu0 0.0
    %1046 = vmatpush1.xpose.msra.mxu0 0.0
    %1047 = vmatprep.subr.mxu0 0.0
    %1048 = vmatpush1.xpose.msra.mxu0 0.0
    %1049 = vmatprep.subr.mxu0 0.0
    %1050 = vmatpush1.xpose.msra.mxu0 0.0
    %1051 = vmatprep.subr.mxu0 0.0
    %1052 = vmatpush1.xpose.msra.mxu0 0.0
    %1053 = vmatprep.subr.mxu0 0.0
    %1054 = vmatpush1.xpose.msra.mxu0 0.0
    %1055 = vmatprep.subr.mxu0 0.0
    %1056 = vmatpush1.xpose.msra.mxu0 0.0
    %1057 = vmatprep.subr.mxu0 0.0
    %1058 = vmatpush1.xpose.msra.mxu0 0.0
    %1059 = vmatprep.subr.mxu0 0.0
    %1060 = vmatpush1.xpose.msra.mxu0 0.0
    %1061 = vmatprep.subr.mxu0 0.0
    %1062 = vmatpush1.xpose.msra.mxu0 0.0
    %1063 = vmatprep.subr.mxu0 0.0
    %1064 = vmatpush1.xpose.msra.mxu0 0.0
    %1065 = vmatprep.subr.mxu0 0.0
    %1066 = vmatpush1.xpose.msra.mxu0 0.0
    %1067 = vmatprep.subr.mxu0 0.0
    %1068 = vmatpush1.xpose.msra.mxu0 0.0
    %1069 = vmatprep.subr.mxu0 0.0
    %1070 = vmatpush1.xpose.msra.mxu0 0.0
    %1071 = vmatprep.subr.mxu0 0.0
    %1072 = vmatpush1.xpose.msra.mxu0 0.0
    %1073 = vmatprep.subr.mxu0 0.0
    %1074 = vmatpush1.xpose.msra.mxu0 0.0
    %1075 = vmatprep.subr.mxu0 0.0
    %1076 = vmatpush1.xpose.msra.mxu0 0.0
    %1077 = vmatprep.subr.mxu0 0.0
    %1078 = vmatpush1.xpose.msra.mxu0 0.0
    %1079 = vmatprep.subr.mxu0 0.0
    %1080 = vmatpush1.xpose.msra.mxu0 0.0
    %1081 = vmatprep.mubr.f32.mxu0 0.0
    %1082 = vmatmul.mubr.f32.gmra.mrb[0].mxu0 %v1013
    %v1083 = vpop.f32.mrb[0].mxu0
    %v1084 = vadd.f32 0.0, %v1083
    %v1085 = vpop.f32.mrb[0].mxu0
    %1086 = vdwg.mxu0
    %1087 = vrot.lane.b32.xlu0 %v185, 112
    %v1088 = vpop.permute.xlu0 %1087
    %1089 = vrot.lane.b32.xlu0 %v185, 80
    %v1090 = vpop.permute.xlu0 %1089
    %v1091 = vsel %vm191, %v1088, 0
    %v1093 = vsel %vm191, %v1090, 0
    %1095 = vmatprep.subr.mxu0 0.0
    %1096 = vmatpush1.xpose.msra.mxu0 %v1093
    %1097 = vmatprep.subr.mxu0 0.0
    %1098 = vmatpush1.xpose.msra.mxu0 0.0
    %1099 = vmatprep.subr.mxu0 0.0
    %1100 = vmatpush1.xpose.msra.mxu0 0.0
    %1101 = vmatprep.subr.mxu0 0.0
    %1102 = vmatpush1.xpose.msra.mxu0 0.0
    %1103 = vmatprep.subr.mxu0 0.0
    %1104 = vmatpush1.xpose.msra.mxu0 0.0
    %1105 = vmatprep.subr.mxu0 0.0
    %1106 = vmatpush1.xpose.msra.mxu0 0.0
    %1107 = vmatprep.subr.mxu0 0.0
    %1108 = vmatpush1.xpose.msra.mxu0 0.0
    %1109 = vmatprep.subr.mxu0 0.0
    %1110 = vmatpush1.xpose.msra.mxu0 0.0
    %1111 = vmatprep.subr.mxu0 0.0
    %1112 = vmatpush1.xpose.msra.mxu0 0.0
    %1113 = vmatprep.subr.mxu0 0.0
    %1114 = vmatpush1.xpose.msra.mxu0 0.0
    %1115 = vmatprep.subr.mxu0 0.0
    %1116 = vmatpush1.xpose.msra.mxu0 0.0
    %1117 = vmatprep.subr.mxu0 0.0
    %1118 = vmatpush1.xpose.msra.mxu0 0.0
    %1119 = vmatprep.subr.mxu0 0.0
    %1120 = vmatpush1.xpose.msra.mxu0 0.0
    %1121 = vmatprep.subr.mxu0 0.0
    %1122 = vmatpush1.xpose.msra.mxu0 0.0
    %1123 = vmatprep.subr.mxu0 0.0
    %1124 = vmatpush1.xpose.msra.mxu0 0.0
    %1125 = vmatprep.subr.mxu0 0.0
    %1126 = vmatpush1.xpose.msra.mxu0 0.0
    %1127 = vmatprep.subr.mxu0 0.0
    %1128 = vmatpush1.xpose.msra.mxu0 0.0
    %1129 = vmatprep.subr.mxu0 0.0
    %1130 = vmatpush1.xpose.msra.mxu0 0.0
    %1131 = vmatprep.subr.mxu0 0.0
    %1132 = vmatpush1.xpose.msra.mxu0 0.0
    %1133 = vmatprep.subr.mxu0 0.0
    %1134 = vmatpush1.xpose.msra.mxu0 0.0
    %1135 = vmatprep.subr.mxu0 0.0
    %1136 = vmatpush1.xpose.msra.mxu0 0.0
    %1137 = vmatprep.subr.mxu0 0.0
    %1138 = vmatpush1.xpose.msra.mxu0 0.0
    %1139 = vmatprep.subr.mxu0 0.0
    %1140 = vmatpush1.xpose.msra.mxu0 0.0
    %1141 = vmatprep.subr.mxu0 0.0
    %1142 = vmatpush1.xpose.msra.mxu0 0.0
    %1143 = vmatprep.subr.mxu0 0.0
    %1144 = vmatpush1.xpose.msra.mxu0 0.0
    %1145 = vmatprep.subr.mxu0 0.0
    %1146 = vmatpush1.xpose.msra.mxu0 0.0
    %1147 = vmatprep.subr.mxu0 0.0
    %1148 = vmatpush1.xpose.msra.mxu0 0.0
    %1149 = vmatprep.subr.mxu0 0.0
    %1150 = vmatpush1.xpose.msra.mxu0 0.0
    %1151 = vmatprep.subr.mxu0 0.0
    %1152 = vmatpush1.xpose.msra.mxu0 0.0
    %1153 = vmatprep.subr.mxu0 0.0
    %1154 = vmatpush1.xpose.msra.mxu0 0.0
    %1155 = vmatprep.subr.mxu0 0.0
    %1156 = vmatpush1.xpose.msra.mxu0 0.0
    %1157 = vmatprep.subr.mxu0 0.0
    %1158 = vmatpush1.xpose.msra.mxu0 0.0
    %1159 = vmatprep.mubr.f32.mxu0 0.0
    %1160 = vmatmul.mubr.f32.gmra.mrb[0].mxu0 %v1091
    %v1161 = vpop.f32.mrb[0].mxu0
    %v1162 = vadd.f32 0.0, %v1161
    %v1163 = vpop.f32.mrb[0].mxu0
    %1164 = vdwg.mxu0
    %v1165 = vsel %vm191, %v1084, -inf
    %1166 = vmax.xlane.f32.xlu0 %v1165
    %v1167 = vpop.xlane.xlu0 %1166
    %v1168 = vsel %vm191, %v1162, -inf
    %1169 = vmax.xlane.f32.xlu0 %v1168
    %v1170 = vpop.xlane.xlu0 %1169
    %v1171 = vsub.f32 %v1084, %v1167
    %v1172 = vsub.f32 %v1162, %v1170
    %v1173 = vmul.f32 %v1171, 1.442695
    %v1174 = vpow.pop %v1173
    %v1175 = vmul.f32 %v1172, 1.442695
    %v1176 = vpow.pop %v1175
    %v1177 = vsel %vm191, %v1174, 0.0
    %1178 = vadd.xlane.f32.xlu0 %v1177
    %v1179 = vpop.xlane.xlu0 %1178
    %v1180 = vsel %vm191, %v1176, 0.0
    %1181 = vadd.xlane.f32.xlu0 %v1180
    %v1182 = vpop.xlane.xlu0 %1181
    %v1183 = vrcp.pop %v1179
    %v1184 = vrcp.pop %v1182
    %v1185 = vmul.f32 %v1174, %v1183
    %v1186 = vmul.f32 %v1176, %v1184
    %1187 = vrot.lane.b32.xlu0 %v180, 48
    %v1188 = vpop.permute.xlu0 %1187
    %v1191 = vsel %vm191, %v1185, 0
    %1193 = vmatprep.subr.mxu0 0.0
    %1194 = vmatpush1.msra.mxu0 %v1188
    %1195 = vmatprep.subr.mxu0 0.0
    %1196 = vmatpush1.msra.mxu0 0.0
    %1197 = vmatprep.subr.mxu0 0.0
    %1198 = vmatpush1.msra.mxu0 0.0
    %1199 = vmatprep.subr.mxu0 0.0
    %1200 = vmatpush1.msra.mxu0 0.0
    %1201 = vmatprep.subr.mxu0 0.0
    %1202 = vmatpush1.msra.mxu0 0.0
    %1203 = vmatprep.subr.mxu0 0.0
    %1204 = vmatpush1.msra.mxu0 0.0
    %1205 = vmatprep.subr.mxu0 0.0
    %1206 = vmatpush1.msra.mxu0 0.0
    %1207 = vmatprep.subr.mxu0 0.0
    %1208 = vmatpush1.msra.mxu0 0.0
    %1209 = vmatprep.subr.mxu0 0.0
    %1210 = vmatpush1.msra.mxu0 0.0
    %1211 = vmatprep.subr.mxu0 0.0
    %1212 = vmatpush1.msra.mxu0 0.0
    %1213 = vmatprep.subr.mxu0 0.0
    %1214 = vmatpush1.msra.mxu0 0.0
    %1215 = vmatprep.subr.mxu0 0.0
    %1216 = vmatpush1.msra.mxu0 0.0
    %1217 = vmatprep.subr.mxu0 0.0
    %1218 = vmatpush1.msra.mxu0 0.0
    %1219 = vmatprep.subr.mxu0 0.0
    %1220 = vmatpush1.msra.mxu0 0.0
    %1221 = vmatprep.subr.mxu0 0.0
    %1222 = vmatpush1.msra.mxu0 0.0
    %1223 = vmatprep.subr.mxu0 0.0
    %1224 = vmatpush1.msra.mxu0 0.0
    %1225 = vmatprep.subr.mxu0 0.0
    %1226 = vmatpush1.msra.mxu0 0.0
    %1227 = vmatprep.subr.mxu0 0.0
    %1228 = vmatpush1.msra.mxu0 0.0
    %1229 = vmatprep.subr.mxu0 0.0
    %1230 = vmatpush1.msra.mxu0 0.0
    %1231 = vmatprep.subr.mxu0 0.0
    %1232 = vmatpush1.msra.mxu0 0.0
    %1233 = vmatprep.subr.mxu0 0.0
    %1234 = vmatpush1.msra.mxu0 0.0
    %1235 = vmatprep.subr.mxu0 0.0
    %1236 = vmatpush1.msra.mxu0 0.0
    %1237 = vmatprep.subr.mxu0 0.0
    %1238 = vmatpush1.msra.mxu0 0.0
    %1239 = vmatprep.subr.mxu0 0.0
    %1240 = vmatpush1.msra.mxu0 0.0
    %1241 = vmatprep.subr.mxu0 0.0
    %1242 = vmatpush1.msra.mxu0 0.0
    %1243 = vmatprep.subr.mxu0 0.0
    %1244 = vmatpush1.msra.mxu0 0.0
    %1245 = vmatprep.subr.mxu0 0.0
    %1246 = vmatpush1.msra.mxu0 0.0
    %1247 = vmatprep.subr.mxu0 0.0
    %1248 = vmatpush1.msra.mxu0 0.0
    %1249 = vmatprep.subr.mxu0 0.0
    %1250 = vmatpush1.msra.mxu0 0.0
    %1251 = vmatprep.subr.mxu0 0.0
    %1252 = vmatpush1.msra.mxu0 0.0
    %1253 = vmatprep.subr.mxu0 0.0
    %1254 = vmatpush1.msra.mxu0 0.0
    %1255 = vmatprep.subr.mxu0 0.0
    %1256 = vmatpush1.msra.mxu0 0.0
    %1257 = vmatprep.mubr.f32.mxu0 0.0
    %1258 = vmatmul.mubr.f32.gmra.mrb[0].mxu0 %v1191
    %v1259 = vpop.f32.mrb[0].mxu0
    %v1260 = vadd.f32 0.0, %v1259
    %v1261 = vpop.f32.mrb[0].mxu0
    %1262 = vdwg.mxu0
    %1263 = vrot.lane.b32.xlu0 %v185, 48
    %v1264 = vpop.permute.xlu0 %1263
    %v1267 = vsel %vm191, %v1186, 0
    %1269 = vmatprep.subr.mxu0 0.0
    %1270 = vmatpush1.msra.mxu0 %v1264
    %1271 = vmatprep.subr.mxu0 0.0
    %1272 = vmatpush1.msra.mxu0 0.0
    %1273 = vmatprep.subr.mxu0 0.0
    %1274 = vmatpush1.msra.mxu0 0.0
    %1275 = vmatprep.subr.mxu0 0.0
    %1276 = vmatpush1.msra.mxu0 0.0
    %1277 = vmatprep.subr.mxu0 0.0
    %1278 = vmatpush1.msra.mxu0 0.0
    %1279 = vmatprep.subr.mxu0 0.0
    %1280 = vmatpush1.msra.mxu0 0.0
    %1281 = vmatprep.subr.mxu0 0.0
    %1282 = vmatpush1.msra.mxu0 0.0
    %1283 = vmatprep.subr.mxu0 0.0
    %1284 = vmatpush1.msra.mxu0 0.0
    %1285 = vmatprep.subr.mxu0 0.0
    %1286 = vmatpush1.msra.mxu0 0.0
    %1287 = vmatprep.subr.mxu0 0.0
    %1288 = vmatpush1.msra.mxu0 0.0
    %1289 = vmatprep.subr.mxu0 0.0
    %1290 = vmatpush1.msra.mxu0 0.0
    %1291 = vmatprep.subr.mxu0 0.0
    %1292 = vmatpush1.msra.mxu0 0.0
    %1293 = vmatprep.subr.mxu0 0.0
    %1294 = vmatpush1.msra.mxu0 0.0
    %1295 = vmatprep.subr.mxu0 0.0
    %1296 = vmatpush1.msra.mxu0 0.0
    %1297 = vmatprep.subr.mxu0 0.0
    %1298 = vmatpush1.msra.mxu0 0.0
    %1299 = vmatprep.subr.mxu0 0.0
    %1300 = vmatpush1.msra.mxu0 0.0
    %1301 = vmatprep.subr.mxu0 0.0
    %1302 = vmatpush1.msra.mxu0 0.0
    %1303 = vmatprep.subr.mxu0 0.0
    %1304 = vmatpush1.msra.mxu0 0.0
    %1305 = vmatprep.subr.mxu0 0.0
    %1306 = vmatpush1.msra.mxu0 0.0
    %1307 = vmatprep.subr.mxu0 0.0
    %1308 = vmatpush1.msra.mxu0 0.0
    %1309 = vmatprep.subr.mxu0 0.0
    %1310 = vmatpush1.msra.mxu0 0.0
    %1311 = vmatprep.subr.mxu0 0.0
    %1312 = vmatpush1.msra.mxu0 0.0
    %1313 = vmatprep.subr.mxu0 0.0
    %1314 = vmatpush1.msra.mxu0 0.0
    %1315 = vmatprep.subr.mxu0 0.0
    %1316 = vmatpush1.msra.mxu0 0.0
    %1317 = vmatprep.subr.mxu0 0.0
    %1318 = vmatpush1.msra.mxu0 0.0
    %1319 = vmatprep.subr.mxu0 0.0
    %1320 = vmatpush1.msra.mxu0 0.0
    %1321 = vmatprep.subr.mxu0 0.0
    %1322 = vmatpush1.msra.mxu0 0.0
    %1323 = vmatprep.subr.mxu0 0.0
    %1324 = vmatpush1.msra.mxu0 0.0
    %1325 = vmatprep.subr.mxu0 0.0
    %1326 = vmatpush1.msra.mxu0 0.0
    %1327 = vmatprep.subr.mxu0 0.0
    %1328 = vmatpush1.msra.mxu0 0.0
    %1329 = vmatprep.subr.mxu0 0.0
    %1330 = vmatpush1.msra.mxu0 0.0
    %1331 = vmatprep.subr.mxu0 0.0
    %1332 = vmatpush1.msra.mxu0 0.0
    %1333 = vmatprep.mubr.f32.mxu0 0.0
    %1334 = vmatmul.mubr.f32.gmra.mrb[0].mxu0 %v1267
    %v1335 = vpop.f32.mrb[0].mxu0
    %v1336 = vadd.f32 0.0, %v1335
    %v1337 = vpop.f32.mrb[0].mxu0
    %1338 = vdwg.mxu0
    %v1340 = vsel %vm191, %v1260, 0
    %v1343 = vsel %vm191, %v1336, 0
    %1345 = vmatprep.subr.mxu0 0.0
    %1346 = vmatpush1.msra.mxu0 %v56
    %1347 = vmatprep.subr.mxu0 0.0
    %1348 = vmatpush1.msra.mxu0 0.0
    %1349 = vmatprep.subr.mxu0 0.0
    %1350 = vmatpush1.msra.mxu0 0.0
    %1351 = vmatprep.subr.mxu0 0.0
    %1352 = vmatpush1.msra.mxu0 0.0
    %1353 = vmatprep.subr.mxu0 0.0
    %1354 = vmatpush1.msra.mxu0 0.0
    %1355 = vmatprep.subr.mxu0 0.0
    %1356 = vmatpush1.msra.mxu0 0.0
    %1357 = vmatprep.subr.mxu0 0.0
    %1358 = vmatpush1.msra.mxu0 0.0
    %1359 = vmatprep.subr.mxu0 0.0
    %1360 = vmatpush1.msra.mxu0 0.0
    %1361 = vmatprep.subr.mxu0 0.0
    %1362 = vmatpush1.msra.mxu0 0.0
    %1363 = vmatprep.subr.mxu0 0.0
    %1364 = vmatpush1.msra.mxu0 0.0
    %1365 = vmatprep.subr.mxu0 0.0
    %1366 = vmatpush1.msra.mxu0 0.0
    %1367 = vmatprep.subr.mxu0 0.0
    %1368 = vmatpush1.msra.mxu0 0.0
    %1369 = vmatprep.subr.mxu0 0.0
    %1370 = vmatpush1.msra.mxu0 0.0
    %1371 = vmatprep.subr.mxu0 0.0
    %1372 = vmatpush1.msra.mxu0 0.0
    %1373 = vmatprep.subr.mxu0 0.0
    %1374 = vmatpush1.msra.mxu0 0.0
    %1375 = vmatprep.subr.mxu0 0.0
    %1376 = vmatpush1.msra.mxu0 0.0
    %1377 = vmatprep.subr.mxu0 0.0
    %1378 = vmatpush1.msra.mxu0 0.0
    %1379 = vmatprep.subr.mxu0 0.0
    %1380 = vmatpush1.msra.mxu0 0.0
    %1381 = vmatprep.subr.mxu0 0.0
    %1382 = vmatpush1.msra.mxu0 0.0
    %1383 = vmatprep.subr.mxu0 0.0
    %1384 = vmatpush1.msra.mxu0 0.0
    %1385 = vmatprep.subr.mxu0 0.0
    %1386 = vmatpush1.msra.mxu0 0.0
    %1387 = vmatprep.subr.mxu0 0.0
    %1388 = vmatpush1.msra.mxu0 0.0
    %1389 = vmatprep.subr.mxu0 0.0
    %1390 = vmatpush1.msra.mxu0 0.0
    %1391 = vmatprep.subr.mxu0 0.0
    %1392 = vmatpush1.msra.mxu0 0.0
    %1393 = vmatprep.subr.mxu0 0.0
    %1394 = vmatpush1.msra.mxu0 0.0
    %1395 = vmatprep.subr.mxu0 0.0
    %1396 = vmatpush1.msra.mxu0 0.0
    %1397 = vmatprep.subr.mxu0 0.0
    %1398 = vmatpush1.msra.mxu0 0.0
    %1399 = vmatprep.subr.mxu0 0.0
    %1400 = vmatpush1.msra.mxu0 0.0
    %1401 = vmatprep.subr.mxu0 0.0
    %1402 = vmatpush1.msra.mxu0 0.0
    %1403 = vmatprep.subr.mxu0 0.0
    %1404 = vmatpush1.msra.mxu0 0.0
    %1405 = vmatprep.subr.mxu0 0.0
    %1406 = vmatpush1.msra.mxu0 0.0
    %1407 = vmatprep.subr.mxu0 0.0
    %1408 = vmatpush1.msra.mxu0 0.0
    %1409 = vmatprep.mubr.f32.mxu0 0.0
    %1410 = vmatmul.mubr.f32.gmra.mrb[0].mxu0 %v1340
    %v1411 = vpop.f32.mrb[0].mxu0
    %v1412 = vadd.f32 0.0, %v1411
    %v1413 = vpop.f32.mrb[0].mxu0
    %1414 = vmatprep.mubr.f32.mxu0 0.0
    %1415 = vmatmul.mubr.f32.gmra.mrb[0].mxu0 %v1343
    %v1416 = vpop.f32.mrb[0].mxu0
    %v1417 = vadd.f32 0.0, %v1416
    %v1418 = vpop.f32.mrb[0].mxu0
    %1419 = vdwg.mxu0
    %v1420 = vadd.f32 %v1001, %v1412
    %v1421 = vadd.f32 %v1006, %v1417
    %1422 = vrot.lane.b32.xlu0 %v180, 104
    %v1423 = vpop.permute.xlu0 %1422
    %1424 = vrot.lane.b32.xlu0 %v180, 72
    %v1425 = vpop.permute.xlu0 %1424
    %v1426 = vsel %vm191, %v1423, 0
    %v1428 = vsel %vm191, %v1425, 0
    %1430 = vmatprep.subr.mxu0 0.0
    %1431 = vmatpush1.xpose.msra.mxu0 %v1428
    %1432 = vmatprep.subr.mxu0 0.0
    %1433 = vmatpush1.xpose.msra.mxu0 0.0
    %1434 = vmatprep.subr.mxu0 0.0
    %1435 = vmatpush1.xpose.msra.mxu0 0.0
    %1436 = vmatprep.subr.mxu0 0.0
    %1437 = vmatpush1.xpose.msra.mxu0 0.0
    %1438 = vmatprep.subr.mxu0 0.0
    %1439 = vmatpush1.xpose.msra.mxu0 0.0
    %1440 = vmatprep.subr.mxu0 0.0
    %1441 = vmatpush1.xpose.msra.mxu0 0.0
    %1442 = vmatprep.subr.mxu0 0.0
    %1443 = vmatpush1.xpose.msra.mxu0 0.0
    %1444 = vmatprep.subr.mxu0 0.0
    %1445 = vmatpush1.xpose.msra.mxu0 0.0
    %1446 = vmatprep.subr.mxu0 0.0
    %1447 = vmatpush1.xpose.msra.mxu0 0.0
    %1448 = vmatprep.subr.mxu0 0.0
    %1449 = vmatpush1.xpose.msra.mxu0 0.0
    %1450 = vmatprep.subr.mxu0 0.0
    %1451 = vmatpush1.xpose.msra.mxu0 0.0
    %1452 = vmatprep.subr.mxu0 0.0
    %1453 = vmatpush1.xpose.msra.mxu0 0.0
    %1454 = vmatprep.subr.mxu0 0.0
    %1455 = vmatpush1.xpose.msra.mxu0 0.0
    %1456 = vmatprep.subr.mxu0 0.0
    %1457 = vmatpush1.xpose.msra.mxu0 0.0
    %1458 = vmatprep.subr.mxu0 0.0
    %1459 = vmatpush1.xpose.msra.mxu0 0.0
    %1460 = vmatprep.subr.mxu0 0.0
    %1461 = vmatpush1.xpose.msra.mxu0 0.0
    %1462 = vmatprep.subr.mxu0 0.0
    %1463 = vmatpush1.xpose.msra.mxu0 0.0
    %1464 = vmatprep.subr.mxu0 0.0
    %1465 = vmatpush1.xpose.msra.mxu0 0.0
    %1466 = vmatprep.subr.mxu0 0.0
    %1467 = vmatpush1.xpose.msra.mxu0 0.0
    %1468 = vmatprep.subr.mxu0 0.0
    %1469 = vmatpush1.xpose.msra.mxu0 0.0
    %1470 = vmatprep.subr.mxu0 0.0
    %1471 = vmatpush1.xpose.msra.mxu0 0.0
    %1472 = vmatprep.subr.mxu0 0.0
    %1473 = vmatpush1.xpose.msra.mxu0 0.0
    %1474 = vmatprep.subr.mxu0 0.0
    %1475 = vmatpush1.xpose.msra.mxu0 0.0
    %1476 = vmatprep.subr.mxu0 0.0
    %1477 = vmatpush1.xpose.msra.mxu0 0.0
    %1478 = vmatprep.subr.mxu0 0.0
    %1479 = vmatpush1.xpose.msra.mxu0 0.0
    %1480 = vmatprep.subr.mxu0 0.0
    %1481 = vmatpush1.xpose.msra.mxu0 0.0
    %1482 = vmatprep.subr.mxu0 0.0
    %1483 = vmatpush1.xpose.msra.mxu0 0.0
    %1484 = vmatprep.subr.mxu0 0.0
    %1485 = vmatpush1.xpose.msra.mxu0 0.0
    %1486 = vmatprep.subr.mxu0 0.0
    %1487 = vmatpush1.xpose.msra.mxu0 0.0
    %1488 = vmatprep.subr.mxu0 0.0
    %1489 = vmatpush1.xpose.msra.mxu0 0.0
    %1490 = vmatprep.subr.mxu0 0.0
    %1491 = vmatpush1.xpose.msra.mxu0 0.0
    %1492 = vmatprep.subr.mxu0 0.0
    %1493 = vmatpush1.xpose.msra.mxu0 0.0
    %1494 = vmatprep.mubr.f32.mxu0 0.0
    %1495 = vmatmul.mubr.f32.gmra.mrb[0].mxu0 %v1426
    %v1496 = vpop.f32.mrb[0].mxu0
    %v1497 = vadd.f32 0.0, %v1496
    %v1498 = vpop.f32.mrb[0].mxu0
    %1499 = vdwg.mxu0
    %1500 = vrot.lane.b32.xlu0 %v185, 104
    %v1501 = vpop.permute.xlu0 %1500
    %1502 = vrot.lane.b32.xlu0 %v185, 72
    %v1503 = vpop.permute.xlu0 %1502
    %v1504 = vsel %vm191, %v1501, 0
    %v1506 = vsel %vm191, %v1503, 0
    %1508 = vmatprep.subr.mxu0 0.0
    %1509 = vmatpush1.xpose.msra.mxu0 %v1506
    %1510 = vmatprep.subr.mxu0 0.0
    %1511 = vmatpush1.xpose.msra.mxu0 0.0
    %1512 = vmatprep.subr.mxu0 0.0
    %1513 = vmatpush1.xpose.msra.mxu0 0.0
    %1514 = vmatprep.subr.mxu0 0.0
    %1515 = vmatpush1.xpose.msra.mxu0 0.0
    %1516 = vmatprep.subr.mxu0 0.0
    %1517 = vmatpush1.xpose.msra.mxu0 0.0
    %1518 = vmatprep.subr.mxu0 0.0
    %1519 = vmatpush1.xpose.msra.mxu0 0.0
    %1520 = vmatprep.subr.mxu0 0.0
    %1521 = vmatpush1.xpose.msra.mxu0 0.0
    %1522 = vmatprep.subr.mxu0 0.0
    %1523 = vmatpush1.xpose.msra.mxu0 0.0
    %1524 = vmatprep.subr.mxu0 0.0
    %1525 = vmatpush1.xpose.msra.mxu0 0.0
    %1526 = vmatprep.subr.mxu0 0.0
    %1527 = vmatpush1.xpose.msra.mxu0 0.0
    %1528 = vmatprep.subr.mxu0 0.0
    %1529 = vmatpush1.xpose.msra.mxu0 0.0
    %1530 = vmatprep.subr.mxu0 0.0
    %1531 = vmatpush1.xpose.msra.mxu0 0.0
    %1532 = vmatprep.subr.mxu0 0.0
    %1533 = vmatpush1.xpose.msra.mxu0 0.0
    %1534 = vmatprep.subr.mxu0 0.0
    %1535 = vmatpush1.xpose.msra.mxu0 0.0
    %1536 = vmatprep.subr.mxu0 0.0
    %1537 = vmatpush1.xpose.msra.mxu0 0.0
    %1538 = vmatprep.subr.mxu0 0.0
    %1539 = vmatpush1.xpose.msra.mxu0 0.0
    %1540 = vmatprep.subr.mxu0 0.0
    %1541 = vmatpush1.xpose.msra.mxu0 0.0
    %1542 = vmatprep.subr.mxu0 0.0
    %1543 = vmatpush1.xpose.msra.mxu0 0.0
    %1544 = vmatprep.subr.mxu0 0.0
    %1545 = vmatpush1.xpose.msra.mxu0 0.0
    %1546 = vmatprep.subr.mxu0 0.0
    %1547 = vmatpush1.xpose.msra.mxu0 0.0
    %1548 = vmatprep.subr.mxu0 0.0
    %1549 = vmatpush1.xpose.msra.mxu0 0.0
    %1550 = vmatprep.subr.mxu0 0.0
    %1551 = vmatpush1.xpose.msra.mxu0 0.0
    %1552 = vmatprep.subr.mxu0 0.0
    %1553 = vmatpush1.xpose.msra.mxu0 0.0
    %1554 = vmatprep.subr.mxu0 0.0
    %1555 = vmatpush1.xpose.msra.mxu0 0.0
    %1556 = vmatprep.subr.mxu0 0.0
    %1557 = vmatpush1.xpose.msra.mxu0 0.0
    %1558 = vmatprep.subr.mxu0 0.0
    %1559 = vmatpush1.xpose.msra.mxu0 0.0
    %1560 = vmatprep.subr.mxu0 0.0
    %1561 = vmatpush1.xpose.msra.mxu0 0.0
    %1562 = vmatprep.subr.mxu0 0.0
    %1563 = vmatpush1.xpose.msra.mxu0 0.0
    %1564 = vmatprep.subr.mxu0 0.0
    %1565 = vmatpush1.xpose.msra.mxu0 0.0
    %1566 = vmatprep.subr.mxu0 0.0
    %1567 = vmatpush1.xpose.msra.mxu0 0.0
    %1568 = vmatprep.subr.mxu0 0.0
    %1569 = vmatpush1.xpose.msra.mxu0 0.0
    %1570 = vmatprep.subr.mxu0 0.0
    %1571 = vmatpush1.xpose.msra.mxu0 0.0
    %1572 = vmatprep.mubr.f32.mxu0 0.0
    %1573 = vmatmul.mubr.f32.gmra.mrb[0].mxu0 %v1504
    %v1574 = vpop.f32.mrb[0].mxu0
    %v1575 = vadd.f32 0.0, %v1574
    %v1576 = vpop.f32.mrb[0].mxu0
    %1577 = vdwg.mxu0
    %v1578 = vsel %vm191, %v1497, -inf
    %1579 = vmax.xlane.f32.xlu0 %v1578
    %v1580 = vpop.xlane.xlu0 %1579
    %v1581 = vsel %vm191, %v1575, -inf
    %1582 = vmax.xlane.f32.xlu0 %v1581
    %v1583 = vpop.xlane.xlu0 %1582
    %v1584 = vsub.f32 %v1497, %v1580
    %v1585 = vsub.f32 %v1575, %v1583
    %v1586 = vmul.f32 %v1584, 1.442695
    %v1587 = vpow.pop %v1586
    %v1588 = vmul.f32 %v1585, 1.442695
    %v1589 = vpow.pop %v1588
    %v1590 = vsel %vm191, %v1587, 0.0
    %1591 = vadd.xlane.f32.xlu0 %v1590
    %v1592 = vpop.xlane.xlu0 %1591
    %v1593 = vsel %vm191, %v1589, 0.0
    %1594 = vadd.xlane.f32.xlu0 %v1593
    %v1595 = vpop.xlane.xlu0 %1594
    %v1596 = vrcp.pop %v1592
    %v1597 = vrcp.pop %v1595
    %v1598 = vmul.f32 %v1587, %v1596
    %v1599 = vmul.f32 %v1589, %v1597
    %1600 = vrot.lane.b32.xlu0 %v180, 40
    %v1601 = vpop.permute.xlu0 %1600
    %v1604 = vsel %vm191, %v1598, 0
    %1606 = vmatprep.subr.mxu0 0.0
    %1607 = vmatpush1.msra.mxu0 %v1601
    %1608 = vmatprep.subr.mxu0 0.0
    %1609 = vmatpush1.msra.mxu0 0.0
    %1610 = vmatprep.subr.mxu0 0.0
    %1611 = vmatpush1.msra.mxu0 0.0
    %1612 = vmatprep.subr.mxu0 0.0
    %1613 = vmatpush1.msra.mxu0 0.0
    %1614 = vmatprep.subr.mxu0 0.0
    %1615 = vmatpush1.msra.mxu0 0.0
    %1616 = vmatprep.subr.mxu0 0.0
    %1617 = vmatpush1.msra.mxu0 0.0
    %1618 = vmatprep.subr.mxu0 0.0
    %1619 = vmatpush1.msra.mxu0 0.0
    %1620 = vmatprep.subr.mxu0 0.0
    %1621 = vmatpush1.msra.mxu0 0.0
    %1622 = vmatprep.subr.mxu0 0.0
    %1623 = vmatpush1.msra.mxu0 0.0
    %1624 = vmatprep.subr.mxu0 0.0
    %1625 = vmatpush1.msra.mxu0 0.0
    %1626 = vmatprep.subr.mxu0 0.0
    %1627 = vmatpush1.msra.mxu0 0.0
    %1628 = vmatprep.subr.mxu0 0.0
    %1629 = vmatpush1.msra.mxu0 0.0
    %1630 = vmatprep.subr.mxu0 0.0
    %1631 = vmatpush1.msra.mxu0 0.0
    %1632 = vmatprep.subr.mxu0 0.0
    %1633 = vmatpush1.msra.mxu0 0.0
    %1634 = vmatprep.subr.mxu0 0.0
    %1635 = vmatpush1.msra.mxu0 0.0
    %1636 = vmatprep.subr.mxu0 0.0
    %1637 = vmatpush1.msra.mxu0 0.0
    %1638 = vmatprep.subr.mxu0 0.0
    %1639 = vmatpush1.msra.mxu0 0.0
    %1640 = vmatprep.subr.mxu0 0.0
    %1641 = vmatpush1.msra.mxu0 0.0
    %1642 = vmatprep.subr.mxu0 0.0
    %1643 = vmatpush1.msra.mxu0 0.0
    %1644 = vmatprep.subr.mxu0 0.0
    %1645 = vmatpush1.msra.mxu0 0.0
    %1646 = vmatprep.subr.mxu0 0.0
    %1647 = vmatpush1.msra.mxu0 0.0
    %1648 = vmatprep.subr.mxu0 0.0
    %1649 = vmatpush1.msra.mxu0 0.0
    %1650 = vmatprep.subr.mxu0 0.0
    %1651 = vmatpush1.msra.mxu0 0.0
    %1652 = vmatprep.subr.mxu0 0.0
    %1653 = vmatpush1.msra.mxu0 0.0
    %1654 = vmatprep.subr.mxu0 0.0
    %1655 = vmatpush1.msra.mxu0 0.0
    %1656 = vmatprep.subr.mxu0 0.0
    %1657 = vmatpush1.msra.mxu0 0.0
    %1658 = vmatprep.subr.mxu0 0.0
    %1659 = vmatpush1.msra.mxu0 0.0
    %1660 = vmatprep.subr.mxu0 0.0
    %1661 = vmatpush1.msra.mxu0 0.0
    %1662 = vmatprep.subr.mxu0 0.0
    %1663 = vmatpush1.msra.mxu0 0.0
    %1664 = vmatprep.subr.mxu0 0.0
    %1665 = vmatpush1.msra.mxu0 0.0
    %1666 = vmatprep.subr.mxu0 0.0
    %1667 = vmatpush1.msra.mxu0 0.0
    %1668 = vmatprep.subr.mxu0 0.0
    %1669 = vmatpush1.msra.mxu0 0.0
    %1670 = vmatprep.mubr.f32.mxu0 0.0
    %1671 = vmatmul.mubr.f32.gmra.mrb[0].mxu0 %v1604
    %v1672 = vpop.f32.mrb[0].mxu0
    %v1673 = vadd.f32 0.0, %v1672
    %v1674 = vpop.f32.mrb[0].mxu0
    %1675 = vdwg.mxu0
    %1676 = vrot.lane.b32.xlu0 %v185, 40
    %v1677 = vpop.permute.xlu0 %1676
    %v1680 = vsel %vm191, %v1599, 0
    %1682 = vmatprep.subr.mxu0 0.0
    %1683 = vmatpush1.msra.mxu0 %v1677
    %1684 = vmatprep.subr.mxu0 0.0
    %1685 = vmatpush1.msra.mxu0 0.0
    %1686 = vmatprep.subr.mxu0 0.0
    %1687 = vmatpush1.msra.mxu0 0.0
    %1688 = vmatprep.subr.mxu0 0.0
    %1689 = vmatpush1.msra.mxu0 0.0
    %1690 = vmatprep.subr.mxu0 0.0
    %1691 = vmatpush1.msra.mxu0 0.0
    %1692 = vmatprep.subr.mxu0 0.0
    %1693 = vmatpush1.msra.mxu0 0.0
    %1694 = vmatprep.subr.mxu0 0.0
    %1695 = vmatpush1.msra.mxu0 0.0
    %1696 = vmatprep.subr.mxu0 0.0
    %1697 = vmatpush1.msra.mxu0 0.0
    %1698 = vmatprep.subr.mxu0 0.0
    %1699 = vmatpush1.msra.mxu0 0.0
    %1700 = vmatprep.subr.mxu0 0.0
    %1701 = vmatpush1.msra.mxu0 0.0
    %1702 = vmatprep.subr.mxu0 0.0
    %1703 = vmatpush1.msra.mxu0 0.0
    %1704 = vmatprep.subr.mxu0 0.0
    %1705 = vmatpush1.msra.mxu0 0.0
    %1706 = vmatprep.subr.mxu0 0.0
    %1707 = vmatpush1.msra.mxu0 0.0
    %1708 = vmatprep.subr.mxu0 0.0
    %1709 = vmatpush1.msra.mxu0 0.0
    %1710 = vmatprep.subr.mxu0 0.0
    %1711 = vmatpush1.msra.mxu0 0.0
    %1712 = vmatprep.subr.mxu0 0.0
    %1713 = vmatpush1.msra.mxu0 0.0
    %1714 = vmatprep.subr.mxu0 0.0
    %1715 = vmatpush1.msra.mxu0 0.0
    %1716 = vmatprep.subr.mxu0 0.0
    %1717 = vmatpush1.msra.mxu0 0.0
    %1718 = vmatprep.subr.mxu0 0.0
    %1719 = vmatpush1.msra.mxu0 0.0
    %1720 = vmatprep.subr.mxu0 0.0
    %1721 = vmatpush1.msra.mxu0 0.0
    %1722 = vmatprep.subr.mxu0 0.0
    %1723 = vmatpush1.msra.mxu0 0.0
    %1724 = vmatprep.subr.mxu0 0.0
    %1725 = vmatpush1.msra.mxu0 0.0
    %1726 = vmatprep.subr.mxu0 0.0
    %1727 = vmatpush1.msra.mxu0 0.0
    %1728 = vmatprep.subr.mxu0 0.0
    %1729 = vmatpush1.msra.mxu0 0.0
    %1730 = vmatprep.subr.mxu0 0.0
    %1731 = vmatpush1.msra.mxu0 0.0
    %1732 = vmatprep.subr.mxu0 0.0
    %1733 = vmatpush1.msra.mxu0 0.0
    %1734 = vmatprep.subr.mxu0 0.0
    %1735 = vmatpush1.msra.mxu0 0.0
    %1736 = vmatprep.subr.mxu0 0.0
    %1737 = vmatpush1.msra.mxu0 0.0
    %1738 = vmatprep.subr.mxu0 0.0
    %1739 = vmatpush1.msra.mxu0 0.0
    %1740 = vmatprep.subr.mxu0 0.0
    %1741 = vmatpush1.msra.mxu0 0.0
    %1742 = vmatprep.subr.mxu0 0.0
    %1743 = vmatpush1.msra.mxu0 0.0
    %1744 = vmatprep.subr.mxu0 0.0
    %1745 = vmatpush1.msra.mxu0 0.0
    %1746 = vmatprep.mubr.f32.mxu0 0.0
    %1747 = vmatmul.mubr.f32.gmra.mrb[0].mxu0 %v1680
    %v1748 = vpop.f32.mrb[0].mxu0
    %v1749 = vadd.f32 0.0, %v1748
    %v1750 = vpop.f32.mrb[0].mxu0
    %1751 = vdwg.mxu0
    %v1753 = vsel %vm191, %v1673, 0
    %v1756 = vsel %vm191, %v1749, 0
    %1758 = vmatprep.subr.mxu0 0.0
    %1759 = vmatpush1.msra.mxu0 %v57
    %1760 = vmatprep.subr.mxu0 0.0
    %1761 = vmatpush1.msra.mxu0 0.0
    %1762 = vmatprep.subr.mxu0 0.0
    %1763 = vmatpush1.msra.mxu0 0.0
    %1764 = vmatprep.subr.mxu0 0.0
    %1765 = vmatpush1.msra.mxu0 0.0
    %1766 = vmatprep.subr.mxu0 0.0
    %1767 = vmatpush1.msra.mxu0 0.0
    %1768 = vmatprep.subr.mxu0 0.0
    %1769 = vmatpush1.msra.mxu0 0.0
    %1770 = vmatprep.subr.mxu0 0.0
    %1771 = vmatpush1.msra.mxu0 0.0
    %1772 = vmatprep.subr.mxu0 0.0
    %1773 = vmatpush1.msra.mxu0 0.0
    %1774 = vmatprep.subr.mxu0 0.0
    %1775 = vmatpush1.msra.mxu0 0.0
    %1776 = vmatprep.subr.mxu0 0.0
    %1777 = vmatpush1.msra.mxu0 0.0
    %1778 = vmatprep.subr.mxu0 0.0
    %1779 = vmatpush1.msra.mxu0 0.0
    %1780 = vmatprep.subr.mxu0 0.0
    %1781 = vmatpush1.msra.mxu0 0.0
    %1782 = vmatprep.subr.mxu0 0.0
    %1783 = vmatpush1.msra.mxu0 0.0
    %1784 = vmatprep.subr.mxu0 0.0
    %1785 = vmatpush1.msra.mxu0 0.0
    %1786 = vmatprep.subr.mxu0 0.0
    %1787 = vmatpush1.msra.mxu0 0.0
    %1788 = vmatprep.subr.mxu0 0.0
    %1789 = vmatpush1.msra.mxu0 0.0
    %1790 = vmatprep.subr.mxu0 0.0
    %1791 = vmatpush1.msra.mxu0 0.0
    %1792 = vmatprep.subr.mxu0 0.0
    %1793 = vmatpush1.msra.mxu0 0.0
    %1794 = vmatprep.subr.mxu0 0.0
    %1795 = vmatpush1.msra.mxu0 0.0
    %1796 = vmatprep.subr.mxu0 0.0
    %1797 = vmatpush1.msra.mxu0 0.0
    %1798 = vmatprep.subr.mxu0 0.0
    %1799 = vmatpush1.msra.mxu0 0.0
    %1800 = vmatprep.subr.mxu0 0.0
    %1801 = vmatpush1.msra.mxu0 0.0
    %1802 = vmatprep.subr.mxu0 0.0
    %1803 = vmatpush1.msra.mxu0 0.0
    %1804 = vmatprep.subr.mxu0 0.0
    %1805 = vmatpush1.msra.mxu0 0.0
    %1806 = vmatprep.subr.mxu0 0.0
    %1807 = vmatpush1.msra.mxu0 0.0
    %1808 = vmatprep.subr.mxu0 0.0
    %1809 = vmatpush1.msra.mxu0 0.0
    %1810 = vmatprep.subr.mxu0 0.0
    %1811 = vmatpush1.msra.mxu0 0.0
    %1812 = vmatprep.subr.mxu0 0.0
    %1813 = vmatpush1.msra.mxu0 0.0
    %1814 = vmatprep.subr.mxu0 0.0
    %1815 = vmatpush1.msra.mxu0 0.0
    %1816 = vmatprep.subr.mxu0 0.0
    %1817 = vmatpush1.msra.mxu0 0.0
    %1818 = vmatprep.subr.mxu0 0.0
    %1819 = vmatpush1.msra.mxu0 0.0
    %1820 = vmatprep.subr.mxu0 0.0
    %1821 = vmatpush1.msra.mxu0 0.0
    %1822 = vmatprep.mubr.f32.mxu0 0.0
    %1823 = vmatmul.mubr.f32.gmra.mrb[0].mxu0 %v1753
    %v1824 = vpop.f32.mrb[0].mxu0
    %v1825 = vadd.f32 0.0, %v1824
    %v1826 = vpop.f32.mrb[0].mxu0
    %1827 = vmatprep.mubr.f32.mxu0 0.0
    %1828 = vmatmul.mubr.f32.gmra.mrb[0].mxu0 %v1756
    %v1829 = vpop.f32.mrb[0].mxu0
    %v1830 = vadd.f32 0.0, %v1829
    %v1831 = vpop.f32.mrb[0].mxu0
    %1832 = vdwg.mxu0
    %v1833 = vadd.f32 %v1420, %v1825
    %v1834 = vadd.f32 %v1421, %v1830
    %v1835 = vadd.f32 %v47, %v1833
    %v1836 = vadd.f32 %v48, %v1834
    %v1838 = vlaneseq
    %v1839 = vshrl.u32 %v1838, 7
    %v1840 = vsub.s32 0, %v1839
    %v1841 = vrot.slane %v58, %v1840
    %v1843 = vadd.f32 %v1835, %v1841
    %v1844 = vadd.f32 %v1836, %v1841
    %v1845 = vsel %vm73, %v1843, 0.0
    %1846 = vadd.xlane.f32.xlu0 %v1845
    %v1847 = vpop.xlane.xlu0 %1846
    %v1848 = vsel %vm73, %v1844, 0.0
    %1849 = vadd.xlane.f32.xlu0 %v1848
    %v1850 = vpop.xlane.xlu0 %1849
    %v1851 = vmul.f32 %v1847, %v80
    %v1852 = vmul.f32 %v1850, %v80
    %v1853 = vsub.f32 %v1843, %v1851
    %v1854 = vsub.f32 %v1844, %v1852
    %v1855 = vmul.f32 %v1853, %v1853
    %v1856 = vmul.f32 %v1854, %v1854
    %v1857 = vsel %vm73, %v1855, 0.0
    %1858 = vadd.xlane.f32.xlu0 %v1857
    %v1859 = vpop.xlane.xlu0 %1858
    %v1860 = vsel %vm73, %v1856, 0.0
    %1861 = vadd.xlane.f32.xlu0 %v1860
    %v1862 = vpop.xlane.xlu0 %1861
    %v1863 = vmul.f32 %v1859, %v80
    %v1864 = vmul.f32 %v1862, %v80
    %v1865 = vadd.f32 %v1863, 1e-05
    %v1866 = vadd.f32 %v1864, 1e-05
    %v1867 = vrsqrt.pop %v1865
    %v1868 = vrsqrt.pop %v1866
    %v1869 = vmul.f32 %v1853, %v1867
    %v1870 = vmul.f32 %v1854, %v1868
    %v1872 = vlaneseq
    %v1873 = vshrl.u32 %v1872, 7
    %v1874 = vsub.s32 0, %v1873
    %v1875 = vrot.slane %v63, %v1874
    %v1878 = vsel %vm73, %v1869, 0
    %v1881 = vsel %vm73, %v1870, 0
    %1883 = vmatprep.subr.mxu0 0.0
    %1884 = vmatpush1.msra.mxu0 %v59
    %1885 = vmatprep.subr.mxu0 0.0
    %1886 = vmatpush1.msra.mxu0 %v60
    %1887 = vmatprep.subr.mxu0 0.0
    %1888 = vmatpush1.msra.mxu0 %v61
    %1889 = vmatprep.subr.mxu0 0.0
    %1890 = vmatpush1.msra.mxu0 %v62
    %1891 = vmatprep.subr.mxu0 0.0
    %1892 = vmatpush1.msra.mxu0 0.0
    %1893 = vmatprep.subr.mxu0 0.0
    %1894 = vmatpush1.msra.mxu0 0.0
    %1895 = vmatprep.subr.mxu0 0.0
    %1896 = vmatpush1.msra.mxu0 0.0
    %1897 = vmatprep.subr.mxu0 0.0
    %1898 = vmatpush1.msra.mxu0 0.0
    %1899 = vmatprep.subr.mxu0 0.0
    %1900 = vmatpush1.msra.mxu0 0.0
    %1901 = vmatprep.subr.mxu0 0.0
    %1902 = vmatpush1.msra.mxu0 0.0
    %1903 = vmatprep.subr.mxu0 0.0
    %1904 = vmatpush1.msra.mxu0 0.0
    %1905 = vmatprep.subr.mxu0 0.0
    %1906 = vmatpush1.msra.mxu0 0.0
    %1907 = vmatprep.subr.mxu0 0.0
    %1908 = vmatpush1.msra.mxu0 0.0
    %1909 = vmatprep.subr.mxu0 0.0
    %1910 = vmatpush1.msra.mxu0 0.0
    %1911 = vmatprep.subr.mxu0 0.0
    %1912 = vmatpush1.msra.mxu0 0.0
    %1913 = vmatprep.subr.mxu0 0.0
    %1914 = vmatpush1.msra.mxu0 0.0
    %1915 = vmatprep.subr.mxu0 0.0
    %1916 = vmatpush1.msra.mxu0 0.0
    %1917 = vmatprep.subr.mxu0 0.0
    %1918 = vmatpush1.msra.mxu0 0.0
    %1919 = vmatprep.subr.mxu0 0.0
    %1920 = vmatpush1.msra.mxu0 0.0
    %1921 = vmatprep.subr.mxu0 0.0
    %1922 = vmatpush1.msra.mxu0 0.0
    %1923 = vmatprep.subr.mxu0 0.0
    %1924 = vmatpush1.msra.mxu0 0.0
    %1925 = vmatprep.subr.mxu0 0.0
    %1926 = vmatpush1.msra.mxu0 0.0
    %1927 = vmatprep.subr.mxu0 0.0
    %1928 = vmatpush1.msra.mxu0 0.0
    %1929 = vmatprep.subr.mxu0 0.0
    %1930 = vmatpush1.msra.mxu0 0.0
    %1931 = vmatprep.subr.mxu0 0.0
    %1932 = vmatpush1.msra.mxu0 0.0
    %1933 = vmatprep.subr.mxu0 0.0
    %1934 = vmatpush1.msra.mxu0 0.0
    %1935 = vmatprep.subr.mxu0 0.0
    %1936 = vmatpush1.msra.mxu0 0.0
    %1937 = vmatprep.subr.mxu0 0.0
    %1938 = vmatpush1.msra.mxu0 0.0
    %1939 = vmatprep.subr.mxu0 0.0
    %1940 = vmatpush1.msra.mxu0 0.0
    %1941 = vmatprep.subr.mxu0 0.0
    %1942 = vmatpush1.msra.mxu0 0.0
    %1943 = vmatprep.subr.mxu0 0.0
    %1944 = vmatpush1.msra.mxu0 0.0
    %1945 = vmatprep.subr.mxu0 0.0
    %1946 = vmatpush1.msra.mxu0 0.0
    %1947 = vmatprep.mubr.f32.mxu0 0.0
    %1948 = vmatmul.mubr.f32.gmra.mrb[0].mxu0 %v1878
    %v1949 = vpop.f32.mrb[0].mxu0
    %v1950 = vadd.f32 %v1875, %v1949
    %v1951 = vpop.f32.mrb[0].mxu0
    %1952 = vmatprep.mubr.f32.mxu0 0.0
    %1953 = vmatmul.mubr.f32.gmra.mrb[0].mxu0 %v1881
    %v1954 = vpop.f32.mrb[0].mxu0
    %v1955 = vadd.f32 %v1875, %v1954
    %v1956 = vpop.f32.mrb[0].mxu0
    %1957 = vdwg.mxu0
    %v1958 = vmul.f32 %v1950, 0.5
    %v1959 = vmul.f32 %v1955, 0.5
    %v1960 = vmul.f32 %v1950, 0.70710677
    %v1961 = vmul.f32 %v1955, 0.70710677
    %v1962 = verf.f32.pop %v1960
    %v1963 = verf.f32.pop %v1961
    %v1964 = vadd.f32 %v1962, 1.0
    %v1965 = vadd.f32 %v1963, 1.0
    %v1966 = vmul.f32 %v1958, %v1964
    %v1967 = vmul.f32 %v1959, %v1965
    %vm1968 = vcmask 523264
    %v1970 = vsel %vm1968, %v1966, 0
    %v1973 = vsel %vm1968, %v1967, 0
    %1975 = vmatprep.subr.mxu0 0.0
    %1976 = vmatpush1.msra.mxu0 %v64
    %1977 = vmatprep.subr.mxu0 0.0
    %1978 = vmatpush1.msra.mxu0 %v65
    %1979 = vmatprep.subr.mxu0 0.0
    %1980 = vmatpush1.msra.mxu0 %v66
    %1981 = vmatprep.subr.mxu0 0.0
    %1982 = vmatpush1.msra.mxu0 %v67
    %1983 = vmatprep.subr.mxu0 0.0
    %1984 = vmatpush1.msra.mxu0 %v68
    %1985 = vmatprep.subr.mxu0 0.0
    %1986 = vmatpush1.msra.mxu0 %v69
    %1987 = vmatprep.subr.mxu0 0.0
    %1988 = vmatpush1.msra.mxu0 %v70
    %1989 = vmatprep.subr.mxu0 0.0
    %1990 = vmatpush1.msra.mxu0 %v71
    %1991 = vmatprep.subr.mxu0 0.0
    %1992 = vmatpush1.msra.mxu0 0.0
    %1993 = vmatprep.subr.mxu0 0.0
    %1994 = vmatpush1.msra.mxu0 0.0
    %1995 = vmatprep.subr.mxu0 0.0
    %1996 = vmatpush1.msra.mxu0 0.0
    %1997 = vmatprep.subr.mxu0 0.0
    %1998 = vmatpush1.msra.mxu0 0.0
    %1999 = vmatprep.subr.mxu0 0.0
    %2000 = vmatpush1.msra.mxu0 0.0
    %2001 = vmatprep.subr.mxu0 0.0
    %2002 = vmatpush1.msra.mxu0 0.0
    %2003 = vmatprep.subr.mxu0 0.0
    %2004 = vmatpush1.msra.mxu0 0.0
    %2005 = vmatprep.subr.mxu0 0.0
    %2006 = vmatpush1.msra.mxu0 0.0
    %2007 = vmatprep.subr.mxu0 0.0
    %2008 = vmatpush1.msra.mxu0 0.0
    %2009 = vmatprep.subr.mxu0 0.0
    %2010 = vmatpush1.msra.mxu0 0.0
    %2011 = vmatprep.subr.mxu0 0.0
    %2012 = vmatpush1.msra.mxu0 0.0
    %2013 = vmatprep.subr.mxu0 0.0
    %2014 = vmatpush1.msra.mxu0 0.0
    %2015 = vmatprep.subr.mxu0 0.0
    %2016 = vmatpush1.msra.mxu0 0.0
    %2017 = vmatprep.subr.mxu0 0.0
    %2018 = vmatpush1.msra.mxu0 0.0
    %2019 = vmatprep.subr.mxu0 0.0
    %2020 = vmatpush1.msra.mxu0 0.0
    %2021 = vmatprep.subr.mxu0 0.0
    %2022 = vmatpush1.msra.mxu0 0.0
    %2023 = vmatprep.subr.mxu0 0.0
    %2024 = vmatpush1.msra.mxu0 0.0
    %2025 = vmatprep.subr.mxu0 0.0
    %2026 = vmatpush1.msra.mxu0 0.0
    %2027 = vmatprep.subr.mxu0 0.0
    %2028 = vmatpush1.msra.mxu0 0.0
    %2029 = vmatprep.subr.mxu0 0.0
    %2030 = vmatpush1.msra.mxu0 0.0
    %2031 = vmatprep.subr.mxu0 0.0
    %2032 = vmatpush1.msra.mxu0 0.0
    %2033 = vmatprep.subr.mxu0 0.0
    %2034 = vmatpush1.msra.mxu0 0.0
    %2035 = vmatprep.subr.mxu0 0.0
    %2036 = vmatpush1.msra.mxu0 0.0
    %2037 = vmatprep.subr.mxu0 0.0
    %2038 = vmatpush1.msra.mxu0 0.0
    %2039 = vmatprep.mubr.f32.mxu0 0.0
    %2040 = vmatmul.mubr.f32.gmra.mrb[0].mxu0 %v1970
    %v2041 = vpop.f32.mrb[0].mxu0
    %v2042 = vadd.f32 0.0, %v2041
    %v2043 = vpop.f32.mrb[0].mxu0
    %2044 = vmatprep.mubr.f32.mxu0 0.0
    %2045 = vmatmul.mubr.f32.gmra.mrb[0].mxu0 %v1973
    %v2046 = vpop.f32.mrb[0].mxu0
    %v2047 = vadd.f32 0.0, %v2046
    %v2048 = vpop.f32.mrb[0].mxu0
    %2049 = vdwg.mxu0
    %v2050 = vadd.f32 %v1843, %v2042
    %v2051 = vadd.f32 %v1844, %v2047
    %v2053 = vlaneseq
    %v2054 = vshrl.u32 %v2053, 7
    %v2055 = vsub.s32 0, %v2054
    %v2056 = vrot.slane %v72, %v2055
    %v2058 = vadd.f32 %v2050, %v2056
    %v2059 = vadd.f32 %v2051, %v2056
    %s2060 = scalar_lea.vmem %s1, 32
    %v2061 = vld [vmem:[%s2060] sm:$0xff]
    %v2062 = vld [vmem:[%s2060 + $0x8] sm:$0xff]
    %v2063 = vld [vmem:[%s2060 + $0x10] sm:$0xff]
    %v2064 = vld [vmem:[%s2060 + $0x18] sm:$0xff]
    %s2065 = scalar_lea.vmem %s2, 1
    %v2066 = vld [vmem:[%s2065] sm:$0x1]
    %s2067 = scalar_lea.vmem %s3, 32
    %v2068 = vld [vmem:[%s2067] sm:$0xff]
    %v2069 = vld [vmem:[%s2067 + $0x8] sm:$0xff]
    %v2070 = vld [vmem:[%s2067 + $0x10] sm:$0xff]
    %v2071 = vld [vmem:[%s2067 + $0x18] sm:$0xff]
    %s2072 = scalar_lea.vmem %s4, 1
    %v2073 = vld [vmem:[%s2072] sm:$0x1]
    %s2074 = scalar_lea.vmem %s5, 32
    %v2075 = vld [vmem:[%s2074] sm:$0xff]
    %v2076 = vld [vmem:[%s2074 + $0x8] sm:$0xff]
    %v2077 = vld [vmem:[%s2074 + $0x10] sm:$0xff]
    %v2078 = vld [vmem:[%s2074 + $0x18] sm:$0xff]
    %s2079 = scalar_lea.vmem %s6, 1
    %v2080 = vld [vmem:[%s2079] sm:$0x1]
    %s2081 = scalar_lea.vmem %s7, 64
    %v2082 = vld [vmem:[%s2081] sm:$0xff]
    %v2083 = vld [vmem:[%s2081 + $0x8] sm:$0xff]
    %v2084 = vld [vmem:[%s2081 + $0x10] sm:$0xff]
    %v2085 = vld [vmem:[%s2081 + $0x18] sm:$0xff]
    %v2086 = vld [vmem:[%s2081 + $0x20] sm:$0xff]
    %v2087 = vld [vmem:[%s2081 + $0x28] sm:$0xff]
    %v2088 = vld [vmem:[%s2081 + $0x30] sm:$0xff]
    %v2089 = vld [vmem:[%s2081 + $0x38] sm:$0xff]
    %s2090 = scalar_lea.vmem %s8, 1
    %v2091 = vld [vmem:[%s2090] sm:$0x1]
    %v2092 = vsel %vm73, %v2058, 0.0
    %2093 = vadd.xlane.f32.xlu0 %v2092
    %v2094 = vpop.xlane.xlu0 %2093
    %v2095 = vsel %vm73, %v2059, 0.0
    %2096 = vadd.xlane.f32.xlu0 %v2095
    %v2097 = vpop.xlane.xlu0 %2096
    %v2098 = vmul.f32 %v2094, %v80
    %v2099 = vmul.f32 %v2097, %v80
    %v2100 = vsub.f32 %v2058, %v2098
    %v2101 = vsub.f32 %v2059, %v2099
    %v2102 = vmul.f32 %v2100, %v2100
    %v2103 = vmul.f32 %v2101, %v2101
    %v2104 = vsel %vm73, %v2102, 0.0
    %2105 = vadd.xlane.f32.xlu0 %v2104
    %v2106 = vpop.xlane.xlu0 %2105
    %v2107 = vsel %vm73, %v2103, 0.0
    %2108 = vadd.xlane.f32.xlu0 %v2107
    %v2109 = vpop.xlane.xlu0 %2108
    %v2110 = vmul.f32 %v2106, %v80
    %v2111 = vmul.f32 %v2109, %v80
    %v2112 = vadd.f32 %v2110, 1e-05
    %v2113 = vadd.f32 %v2111, 1e-05
    %v2114 = vrsqrt.pop %v2112
    %v2115 = vrsqrt.pop %v2113
    %v2116 = vmul.f32 %v2100, %v2114
    %v2117 = vmul.f32 %v2101, %v2115
    %v2119 = vlaneseq
    %v2120 = vshrl.u32 %v2119, 7
    %v2121 = vsub.s32 0, %v2120
    %v2122 = vrot.slane %v2066, %v2121
    %v2125 = vsel %vm73, %v2116, 0
    %v2128 = vsel %vm73, %v2117, 0
    %2130 = vmatprep.subr.mxu0 0.0
    %2131 = vmatpush1.msra.mxu0 %v2061
    %2132 = vmatprep.subr.mxu0 0.0
    %2133 = vmatpush1.msra.mxu0 %v2062
    %2134 = vmatprep.subr.mxu0 0.0
    %2135 = vmatpush1.msra.mxu0 %v2063
    %2136 = vmatprep.subr.mxu0 0.0
    %2137 = vmatpush1.msra.mxu0 %v2064
    %2138 = vmatprep.subr.mxu0 0.0
    %2139 = vmatpush1.msra.mxu0 0.0
    %2140 = vmatprep.subr.mxu0 0.0
    %2141 = vmatpush1.msra.mxu0 0.0
    %2142 = vmatprep.subr.mxu0 0.0
    %2143 = vmatpush1.msra.mxu0 0.0
    %2144 = vmatprep.subr.mxu0 0.0
    %2145 = vmatpush1.msra.mxu0 0.0
    %2146 = vmatprep.subr.mxu0 0.0
    %2147 = vmatpush1.msra.mxu0 0.0
    %2148 = vmatprep.subr.mxu0 0.0
    %2149 = vmatpush1.msra.mxu0 0.0
    %2150 = vmatprep.subr.mxu0 0.0
    %2151 = vmatpush1.msra.mxu0 0.0
    %2152 = vmatprep.subr.mxu0 0.0
    %2153 = vmatpush1.msra.mxu0 0.0
    %2154 = vmatprep.subr.mxu0 0.0
    %2155 = vmatpush1.msra.mxu0 0.0
    %2156 = vmatprep.subr.mxu0 0.0
    %2157 = vmatpush1.msra.mxu0 0.0
    %2158 = vmatprep.subr.mxu0 0.0
    %2159 = vmatpush1.msra.mxu0 0.0
    %2160 = vmatprep.subr.mxu0 0.0
    %2161 = vmatpush1.msra.mxu0 0.0
    %2162 = vmatprep.subr.mxu0 0.0
    %2163 = vmatpush1.msra.mxu0 0.0
    %2164 = vmatprep.subr.mxu0 0.0
    %2165 = vmatpush1.msra.mxu0 0.0
    %2166 = vmatprep.subr.mxu0 0.0
    %2167 = vmatpush1.msra.mxu0 0.0
    %2168 = vmatprep.subr.mxu0 0.0
    %2169 = vmatpush1.msra.mxu0 0.0
    %2170 = vmatprep.subr.mxu0 0.0
    %2171 = vmatpush1.msra.mxu0 0.0
    %2172 = vmatprep.subr.mxu0 0.0
    %2173 = vmatpush1.msra.mxu0 0.0
    %2174 = vmatprep.subr.mxu0 0.0
    %2175 = vmatpush1.msra.mxu0 0.0
    %2176 = vmatprep.subr.mxu0 0.0
    %2177 = vmatpush1.msra.mxu0 0.0
    %2178 = vmatprep.subr.mxu0 0.0
    %2179 = vmatpush1.msra.mxu0 0.0
    %2180 = vmatprep.subr.mxu0 0.0
    %2181 = vmatpush1.msra.mxu0 0.0
    %2182 = vmatprep.subr.mxu0 0.0
    %2183 = vmatpush1.msra.mxu0 0.0
    %2184 = vmatprep.subr.mxu0 0.0
    %2185 = vmatpush1.msra.mxu0 0.0
    %2186 = vmatprep.subr.mxu0 0.0
    %2187 = vmatpush1.msra.mxu0 0.0
    %2188 = vmatprep.subr.mxu0 0.0
    %2189 = vmatpush1.msra.mxu0 0.0
    %2190 = vmatprep.subr.mxu0 0.0
    %2191 = vmatpush1.msra.mxu0 0.0
    %2192 = vmatprep.subr.mxu0 0.0
    %2193 = vmatpush1.msra.mxu0 0.0
    %2194 = vmatprep.mubr.f32.mxu0 0.0
    %2195 = vmatmul.mubr.f32.gmra.mrb[0].mxu0 %v2125
    %v2196 = vpop.f32.mrb[0].mxu0
    %v2197 = vadd.f32 %v2122, %v2196
    %v2198 = vpop.f32.mrb[0].mxu0
    %2199 = vmatprep.mubr.f32.mxu0 0.0
    %2200 = vmatmul.mubr.f32.gmra.mrb[0].mxu0 %v2128
    %v2201 = vpop.f32.mrb[0].mxu0
    %v2202 = vadd.f32 %v2122, %v2201
    %v2203 = vpop.f32.mrb[0].mxu0
    %2204 = vdwg.mxu0
    %2206 = vrot.lane.b32.xlu0 %v2197, 96
    %v2207 = vpop.permute.xlu0 %2206
    %v2208 = vsel %vm191, %v2197, 0
    %v2210 = vsel %vm191, %v2207, 0
    %2212 = vmatprep.subr.mxu0 0.0
    %2213 = vmatpush1.xpose.msra.mxu0 %v2210
    %2214 = vmatprep.subr.mxu0 0.0
    %2215 = vmatpush1.xpose.msra.mxu0 0.0
    %2216 = vmatprep.subr.mxu0 0.0
    %2217 = vmatpush1.xpose.msra.mxu0 0.0
    %2218 = vmatprep.subr.mxu0 0.0
    %2219 = vmatpush1.xpose.msra.mxu0 0.0
    %2220 = vmatprep.subr.mxu0 0.0
    %2221 = vmatpush1.xpose.msra.mxu0 0.0
    %2222 = vmatprep.subr.mxu0 0.0
    %2223 = vmatpush1.xpose.msra.mxu0 0.0
    %2224 = vmatprep.subr.mxu0 0.0
    %2225 = vmatpush1.xpose.msra.mxu0 0.0
    %2226 = vmatprep.subr.mxu0 0.0
    %2227 = vmatpush1.xpose.msra.mxu0 0.0
    %2228 = vmatprep.subr.mxu0 0.0
    %2229 = vmatpush1.xpose.msra.mxu0 0.0
    %2230 = vmatprep.subr.mxu0 0.0
    %2231 = vmatpush1.xpose.msra.mxu0 0.0
    %2232 = vmatprep.subr.mxu0 0.0
    %2233 = vmatpush1.xpose.msra.mxu0 0.0
    %2234 = vmatprep.subr.mxu0 0.0
    %2235 = vmatpush1.xpose.msra.mxu0 0.0
    %2236 = vmatprep.subr.mxu0 0.0
    %2237 = vmatpush1.xpose.msra.mxu0 0.0
    %2238 = vmatprep.subr.mxu0 0.0
    %2239 = vmatpush1.xpose.msra.mxu0 0.0
    %2240 = vmatprep.subr.mxu0 0.0
    %2241 = vmatpush1.xpose.msra.mxu0 0.0
    %2242 = vmatprep.subr.mxu0 0.0
    %2243 = vmatpush1.xpose.msra.mxu0 0.0
    %2244 = vmatprep.subr.mxu0 0.0
    %2245 = vmatpush1.xpose.msra.mxu0 0.0
    %2246 = vmatprep.subr.mxu0 0.0
    %2247 = vmatpush1.xpose.msra.mxu0 0.0
    %2248 = vmatprep.subr.mxu0 0.0
    %2249 = vmatpush1.xpose.msra.mxu0 0.0
    %2250 = vmatprep.subr.mxu0 0.0
    %2251 = vmatpush1.xpose.msra.mxu0 0.0
    %2252 = vmatprep.subr.mxu0 0.0
    %2253 = vmatpush1.xpose.msra.mxu0 0.0
    %2254 = vmatprep.subr.mxu0 0.0
    %2255 = vmatpush1.xpose.msra.mxu0 0.0
    %2256 = vmatprep.subr.mxu0 0.0
    %2257 = vmatpush1.xpose.msra.mxu0 0.0
    %2258 = vmatprep.subr.mxu0 0.0
    %2259 = vmatpush1.xpose.msra.mxu0 0.0
    %2260 = vmatprep.subr.mxu0 0.0
    %2261 = vmatpush1.xpose.msra.mxu0 0.0
    %2262 = vmatprep.subr.mxu0 0.0
    %2263 = vmatpush1.xpose.msra.mxu0 0.0
    %2264 = vmatprep.subr.mxu0 0.0
    %2265 = vmatpush1.xpose.msra.mxu0 0.0
    %2266 = vmatprep.subr.mxu0 0.0
    %2267 = vmatpush1.xpose.msra.mxu0 0.0
    %2268 = vmatprep.subr.mxu0 0.0
    %2269 = vmatpush1.xpose.msra.mxu0 0.0
    %2270 = vmatprep.subr.mxu0 0.0
    %2271 = vmatpush1.xpose.msra.mxu0 0.0
    %2272 = vmatprep.subr.mxu0 0.0
    %2273 = vmatpush1.xpose.msra.mxu0 0.0
    %2274 = vmatprep.subr.mxu0 0.0
    %2275 = vmatpush1.xpose.msra.mxu0 0.0
    %2276 = vmatprep.mubr.f32.mxu0 0.0
    %2277 = vmatmul.mubr.f32.gmra.mrb[0].mxu0 %v2208
    %v2278 = vpop.f32.mrb[0].mxu0
    %v2279 = vadd.f32 0.0, %v2278
    %v2280 = vpop.f32.mrb[0].mxu0
    %2281 = vdwg.mxu0
    %2283 = vrot.lane.b32.xlu0 %v2202, 96
    %v2284 = vpop.permute.xlu0 %2283
    %v2285 = vsel %vm191, %v2202, 0
    %v2287 = vsel %vm191, %v2284, 0
    %2289 = vmatprep.subr.mxu0 0.0
    %2290 = vmatpush1.xpose.msra.mxu0 %v2287
    %2291 = vmatprep.subr.mxu0 0.0
    %2292 = vmatpush1.xpose.msra.mxu0 0.0
    %2293 = vmatprep.subr.mxu0 0.0
    %2294 = vmatpush1.xpose.msra.mxu0 0.0
    %2295 = vmatprep.subr.mxu0 0.0
    %2296 = vmatpush1.xpose.msra.mxu0 0.0
    %2297 = vmatprep.subr.mxu0 0.0
    %2298 = vmatpush1.xpose.msra.mxu0 0.0
    %2299 = vmatprep.subr.mxu0 0.0
    %2300 = vmatpush1.xpose.msra.mxu0 0.0
    %2301 = vmatprep.subr.mxu0 0.0
    %2302 = vmatpush1.xpose.msra.mxu0 0.0
    %2303 = vmatprep.subr.mxu0 0.0
    %2304 = vmatpush1.xpose.msra.mxu0 0.0
    %2305 = vmatprep.subr.mxu0 0.0
    %2306 = vmatpush1.xpose.msra.mxu0 0.0
    %2307 = vmatprep.subr.mxu0 0.0
    %2308 = vmatpush1.xpose.msra.mxu0 0.0
    %2309 = vmatprep.subr.mxu0 0.0
    %2310 = vmatpush1.xpose.msra.mxu0 0.0
    %2311 = vmatprep.subr.mxu0 0.0
    %2312 = vmatpush1.xpose.msra.mxu0 0.0
    %2313 = vmatprep.subr.mxu0 0.0
    %2314 = vmatpush1.xpose.msra.mxu0 0.0
    %2315 = vmatprep.subr.mxu0 0.0
    %2316 = vmatpush1.xpose.msra.mxu0 0.0
    %2317 = vmatprep.subr.mxu0 0.0
    %2318 = vmatpush1.xpose.msra.mxu0 0.0
    %2319 = vmatprep.subr.mxu0 0.0
    %2320 = vmatpush1.xpose.msra.mxu0 0.0
    %2321 = vmatprep.subr.mxu0 0.0
    %2322 = vmatpush1.xpose.msra.mxu0 0.0
    %2323 = vmatprep.subr.mxu0 0.0
    %2324 = vmatpush1.xpose.msra.mxu0 0.0
    %2325 = vmatprep.subr.mxu0 0.0
    %2326 = vmatpush1.xpose.msra.mxu0 0.0
    %2327 = vmatprep.subr.mxu0 0.0
    %2328 = vmatpush1.xpose.msra.mxu0 0.0
    %2329 = vmatprep.subr.mxu0 0.0
    %2330 = vmatpush1.xpose.msra.mxu0 0.0
    %2331 = vmatprep.subr.mxu0 0.0
    %2332 = vmatpush1.xpose.msra.mxu0 0.0
    %2333 = vmatprep.subr.mxu0 0.0
    %2334 = vmatpush1.xpose.msra.mxu0 0.0
    %2335 = vmatprep.subr.mxu0 0.0
    %2336 = vmatpush1.xpose.msra.mxu0 0.0
    %2337 = vmatprep.subr.mxu0 0.0
    %2338 = vmatpush1.xpose.msra.mxu0 0.0
    %2339 = vmatprep.subr.mxu0 0.0
    %2340 = vmatpush1.xpose.msra.mxu0 0.0
    %2341 = vmatprep.subr.mxu0 0.0
    %2342 = vmatpush1.xpose.msra.mxu0 0.0
    %2343 = vmatprep.subr.mxu0 0.0
    %2344 = vmatpush1.xpose.msra.mxu0 0.0
    %2345 = vmatprep.subr.mxu0 0.0
    %2346 = vmatpush1.xpose.msra.mxu0 0.0
    %2347 = vmatprep.subr.mxu0 0.0
    %2348 = vmatpush1.xpose.msra.mxu0 0.0
    %2349 = vmatprep.subr.mxu0 0.0
    %2350 = vmatpush1.xpose.msra.mxu0 0.0
    %2351 = vmatprep.subr.mxu0 0.0
    %2352 = vmatpush1.xpose.msra.mxu0 0.0
    %2353 = vmatprep.mubr.f32.mxu0 0.0
    %2354 = vmatmul.mubr.f32.gmra.mrb[0].mxu0 %v2285
    %v2355 = vpop.f32.mrb[0].mxu0
    %v2356 = vadd.f32 0.0, %v2355
    %v2357 = vpop.f32.mrb[0].mxu0
    %2358 = vdwg.mxu0
    %v2359 = vsel %vm191, %v2279, -inf
    %2360 = vmax.xlane.f32.xlu0 %v2359
    %v2361 = vpop.xlane.xlu0 %2360
    %v2362 = vsel %vm191, %v2356, -inf
    %2363 = vmax.xlane.f32.xlu0 %v2362
    %v2364 = vpop.xlane.xlu0 %2363
    %v2365 = vsub.f32 %v2279, %v2361
    %v2366 = vsub.f32 %v2356, %v2364
    %v2367 = vmul.f32 %v2365, 1.442695
    %v2368 = vpow.pop %v2367
    %v2369 = vmul.f32 %v2366, 1.442695
    %v2370 = vpow.pop %v2369
    %v2371 = vsel %vm191, %v2368, 0.0
    %2372 = vadd.xlane.f32.xlu0 %v2371
    %v2373 = vpop.xlane.xlu0 %2372
    %v2374 = vsel %vm191, %v2370, 0.0
    %2375 = vadd.xlane.f32.xlu0 %v2374
    %v2376 = vpop.xlane.xlu0 %2375
    %v2377 = vrcp.pop %v2373
    %v2378 = vrcp.pop %v2376
    %v2379 = vmul.f32 %v2368, %v2377
    %v2380 = vmul.f32 %v2370, %v2378
    %2381 = vrot.lane.b32.xlu0 %v2197, 64
    %v2382 = vpop.permute.xlu0 %2381
    %v2385 = vsel %vm191, %v2379, 0
    %2387 = vmatprep.subr.mxu0 0.0
    %2388 = vmatpush1.msra.mxu0 %v2382
    %2389 = vmatprep.subr.mxu0 0.0
    %2390 = vmatpush1.msra.mxu0 0.0
    %2391 = vmatprep.subr.mxu0 0.0
    %2392 = vmatpush1.msra.mxu0 0.0
    %2393 = vmatprep.subr.mxu0 0.0
    %2394 = vmatpush1.msra.mxu0 0.0
    %2395 = vmatprep.subr.mxu0 0.0
    %2396 = vmatpush1.msra.mxu0 0.0
    %2397 = vmatprep.subr.mxu0 0.0
    %2398 = vmatpush1.msra.mxu0 0.0
    %2399 = vmatprep.subr.mxu0 0.0
    %2400 = vmatpush1.msra.mxu0 0.0
    %2401 = vmatprep.subr.mxu0 0.0
    %2402 = vmatpush1.msra.mxu0 0.0
    %2403 = vmatprep.subr.mxu0 0.0
    %2404 = vmatpush1.msra.mxu0 0.0
    %2405 = vmatprep.subr.mxu0 0.0
    %2406 = vmatpush1.msra.mxu0 0.0
    %2407 = vmatprep.subr.mxu0 0.0
    %2408 = vmatpush1.msra.mxu0 0.0
    %2409 = vmatprep.subr.mxu0 0.0
    %2410 = vmatpush1.msra.mxu0 0.0
    %2411 = vmatprep.subr.mxu0 0.0
    %2412 = vmatpush1.msra.mxu0 0.0
    %2413 = vmatprep.subr.mxu0 0.0
    %2414 = vmatpush1.msra.mxu0 0.0
    %2415 = vmatprep.subr.mxu0 0.0
    %2416 = vmatpush1.msra.mxu0 0.0
    %2417 = vmatprep.subr.mxu0 0.0
    %2418 = vmatpush1.msra.mxu0 0.0
    %2419 = vmatprep.subr.mxu0 0.0
    %2420 = vmatpush1.msra.mxu0 0.0
    %2421 = vmatprep.subr.mxu0 0.0
    %2422 = vmatpush1.msra.mxu0 0.0
    %2423 = vmatprep.subr.mxu0 0.0
    %2424 = vmatpush1.msra.mxu0 0.0
    %2425 = vmatprep.subr.mxu0 0.0
    %2426 = vmatpush1.msra.mxu0 0.0
    %2427 = vmatprep.subr.mxu0 0.0
    %2428 = vmatpush1.msra.mxu0 0.0
    %2429 = vmatprep.subr.mxu0 0.0
    %2430 = vmatpush1.msra.mxu0 0.0
    %2431 = vmatprep.subr.mxu0 0.0
    %2432 = vmatpush1.msra.mxu0 0.0
    %2433 = vmatprep.subr.mxu0 0.0
    %2434 = vmatpush1.msra.mxu0 0.0
    %2435 = vmatprep.subr.mxu0 0.0
    %2436 = vmatpush1.msra.mxu0 0.0
    %2437 = vmatprep.subr.mxu0 0.0
    %2438 = vmatpush1.msra.mxu0 0.0
    %2439 = vmatprep.subr.mxu0 0.0
    %2440 = vmatpush1.msra.mxu0 0.0
    %2441 = vmatprep.subr.mxu0 0.0
    %2442 = vmatpush1.msra.mxu0 0.0
    %2443 = vmatprep.subr.mxu0 0.0
    %2444 = vmatpush1.msra.mxu0 0.0
    %2445 = vmatprep.subr.mxu0 0.0
    %2446 = vmatpush1.msra.mxu0 0.0
    %2447 = vmatprep.subr.mxu0 0.0
    %2448 = vmatpush1.msra.mxu0 0.0
    %2449 = vmatprep.subr.mxu0 0.0
    %2450 = vmatpush1.msra.mxu0 0.0
    %2451 = vmatprep.mubr.f32.mxu0 0.0
    %2452 = vmatmul.mubr.f32.gmra.mrb[0].mxu0 %v2385
    %v2453 = vpop.f32.mrb[0].mxu0
    %v2454 = vadd.f32 0.0, %v2453
    %v2455 = vpop.f32.mrb[0].mxu0
    %2456 = vdwg.mxu0
    %2457 = vrot.lane.b32.xlu0 %v2202, 64
    %v2458 = vpop.permute.xlu0 %2457
    %v2461 = vsel %vm191, %v2380, 0
    %2463 = vmatprep.subr.mxu0 0.0
    %2464 = vmatpush1.msra.mxu0 %v2458
    %2465 = vmatprep.subr.mxu0 0.0
    %2466 = vmatpush1.msra.mxu0 0.0
    %2467 = vmatprep.subr.mxu0 0.0
    %2468 = vmatpush1.msra.mxu0 0.0
    %2469 = vmatprep.subr.mxu0 0.0
    %2470 = vmatpush1.msra.mxu0 0.0
    %2471 = vmatprep.subr.mxu0 0.0
    %2472 = vmatpush1.msra.mxu0 0.0
    %2473 = vmatprep.subr.mxu0 0.0
    %2474 = vmatpush1.msra.mxu0 0.0
    %2475 = vmatprep.subr.mxu0 0.0
    %2476 = vmatpush1.msra.mxu0 0.0
    %2477 = vmatprep.subr.mxu0 0.0
    %2478 = vmatpush1.msra.mxu0 0.0
    %2479 = vmatprep.subr.mxu0 0.0
    %2480 = vmatpush1.msra.mxu0 0.0
    %2481 = vmatprep.subr.mxu0 0.0
    %2482 = vmatpush1.msra.mxu0 0.0
    %2483 = vmatprep.subr.mxu0 0.0
    %2484 = vmatpush1.msra.mxu0 0.0
    %2485 = vmatprep.subr.mxu0 0.0
    %2486 = vmatpush1.msra.mxu0 0.0
    %2487 = vmatprep.subr.mxu0 0.0
    %2488 = vmatpush1.msra.mxu0 0.0
    %2489 = vmatprep.subr.mxu0 0.0
    %2490 = vmatpush1.msra.mxu0 0.0
    %2491 = vmatprep.subr.mxu0 0.0
    %2492 = vmatpush1.msra.mxu0 0.0
    %2493 = vmatprep.subr.mxu0 0.0
    %2494 = vmatpush1.msra.mxu0 0.0
    %2495 = vmatprep.subr.mxu0 0.0
    %2496 = vmatpush1.msra.mxu0 0.0
    %2497 = vmatprep.subr.mxu0 0.0
    %2498 = vmatpush1.msra.mxu0 0.0
    %2499 = vmatprep.subr.mxu0 0.0
    %2500 = vmatpush1.msra.mxu0 0.0
    %2501 = vmatprep.subr.mxu0 0.0
    %2502 = vmatpush1.msra.mxu0 0.0
    %2503 = vmatprep.subr.mxu0 0.0
    %2504 = vmatpush1.msra.mxu0 0.0
    %2505 = vmatprep.subr.mxu0 0.0
    %2506 = vmatpush1.msra.mxu0 0.0
    %2507 = vmatprep.subr.mxu0 0.0
    %2508 = vmatpush1.msra.mxu0 0.0
    %2509 = vmatprep.subr.mxu0 0.0
    %2510 = vmatpush1.msra.mxu0 0.0
    %2511 = vmatprep.subr.mxu0 0.0
    %2512 = vmatpush1.msra.mxu0 0.0
    %2513 = vmatprep.subr.mxu0 0.0
    %2514 = vmatpush1.msra.mxu0 0.0
    %2515 = vmatprep.subr.mxu0 0.0
    %2516 = vmatpush1.msra.mxu0 0.0
    %2517 = vmatprep.subr.mxu0 0.0
    %2518 = vmatpush1.msra.mxu0 0.0
    %2519 = vmatprep.subr.mxu0 0.0
    %2520 = vmatpush1.msra.mxu0 0.0
    %2521 = vmatprep.subr.mxu0 0.0
    %2522 = vmatpush1.msra.mxu0 0.0
    %2523 = vmatprep.subr.mxu0 0.0
    %2524 = vmatpush1.msra.mxu0 0.0
    %2525 = vmatprep.subr.mxu0 0.0
    %2526 = vmatpush1.msra.mxu0 0.0
    %2527 = vmatprep.mubr.f32.mxu0 0.0
    %2528 = vmatmul.mubr.f32.gmra.mrb[0].mxu0 %v2461
    %v2529 = vpop.f32.mrb[0].mxu0
    %v2530 = vadd.f32 0.0, %v2529
    %v2531 = vpop.f32.mrb[0].mxu0
    %2532 = vdwg.mxu0
    %2533 = vrot.lane.b32.xlu0 %v2197, 120
    %v2534 = vpop.permute.xlu0 %2533
    %2535 = vrot.lane.b32.xlu0 %v2197, 88
    %v2536 = vpop.permute.xlu0 %2535
    %v2537 = vsel %vm191, %v2534, 0
    %v2539 = vsel %vm191, %v2536, 0
    %2541 = vmatprep.subr.mxu0 0.0
    %2542 = vmatpush1.xpose.msra.mxu0 %v2539
    %2543 = vmatprep.subr.mxu0 0.0
    %2544 = vmatpush1.xpose.msra.mxu0 0.0
    %2545 = vmatprep.subr.mxu0 0.0
    %2546 = vmatpush1.xpose.msra.mxu0 0.0
    %2547 = vmatprep.subr.mxu0 0.0
    %2548 = vmatpush1.xpose.msra.mxu0 0.0
    %2549 = vmatprep.subr.mxu0 0.0
    %2550 = vmatpush1.xpose.msra.mxu0 0.0
    %2551 = vmatprep.subr.mxu0 0.0
    %2552 = vmatpush1.xpose.msra.mxu0 0.0
    %2553 = vmatprep.subr.mxu0 0.0
    %2554 = vmatpush1.xpose.msra.mxu0 0.0
    %2555 = vmatprep.subr.mxu0 0.0
    %2556 = vmatpush1.xpose.msra.mxu0 0.0
    %2557 = vmatprep.subr.mxu0 0.0
    %2558 = vmatpush1.xpose.msra.mxu0 0.0
    %2559 = vmatprep.subr.mxu0 0.0
    %2560 = vmatpush1.xpose.msra.mxu0 0.0
    %2561 = vmatprep.subr.mxu0 0.0
    %2562 = vmatpush1.xpose.msra.mxu0 0.0
    %2563 = vmatprep.subr.mxu0 0.0
    %2564 = vmatpush1.xpose.msra.mxu0 0.0
    %2565 = vmatprep.subr.mxu0 0.0
    %2566 = vmatpush1.xpose.msra.mxu0 0.0
    %2567 = vmatprep.subr.mxu0 0.0
    %2568 = vmatpush1.xpose.msra.mxu0 0.0
    %2569 = vmatprep.subr.mxu0 0.0
    %2570 = vmatpush1.xpose.msra.mxu0 0.0
    %2571 = vmatprep.subr.mxu0 0.0
    %2572 = vmatpush1.xpose.msra.mxu0 0.0
    %2573 = vmatprep.subr.mxu0 0.0
    %2574 = vmatpush1.xpose.msra.mxu0 0.0
    %2575 = vmatprep.subr.mxu0 0.0
    %2576 = vmatpush1.xpose.msra.mxu0 0.0
    %2577 = vmatprep.subr.mxu0 0.0
    %2578 = vmatpush1.xpose.msra.mxu0 0.0
    %2579 = vmatprep.subr.mxu0 0.0
    %2580 = vmatpush1.xpose.msra.mxu0 0.0
    %2581 = vmatprep.subr.mxu0 0.0
    %2582 = vmatpush1.xpose.msra.mxu0 0.0
    %2583 = vmatprep.subr.mxu0 0.0
    %2584 = vmatpush1.xpose.msra.mxu0 0.0
    %2585 = vmatprep.subr.mxu0 0.0
    %2586 = vmatpush1.xpose.msra.mxu0 0.0
    %2587 = vmatprep.subr.mxu0 0.0
    %2588 = vmatpush1.xpose.msra.mxu0 0.0
    %2589 = vmatprep.subr.mxu0 0.0
    %2590 = vmatpush1.xpose.msra.mxu0 0.0
    %2591 = vmatprep.subr.mxu0 0.0
    %2592 = vmatpush1.xpose.msra.mxu0 0.0
    %2593 = vmatprep.subr.mxu0 0.0
    %2594 = vmatpush1.xpose.msra.mxu0 0.0
    %2595 = vmatprep.subr.mxu0 0.0
    %2596 = vmatpush1.xpose.msra.mxu0 0.0
    %2597 = vmatprep.subr.mxu0 0.0
    %2598 = vmatpush1.xpose.msra.mxu0 0.0
    %2599 = vmatprep.subr.mxu0 0.0
    %2600 = vmatpush1.xpose.msra.mxu0 0.0
    %2601 = vmatprep.subr.mxu0 0.0
    %2602 = vmatpush1.xpose.msra.mxu0 0.0
    %2603 = vmatprep.subr.mxu0 0.0
    %2604 = vmatpush1.xpose.msra.mxu0 0.0
    %2605 = vmatprep.mubr.f32.mxu0 0.0
    %2606 = vmatmul.mubr.f32.gmra.mrb[0].mxu0 %v2537
    %v2607 = vpop.f32.mrb[0].mxu0
    %v2608 = vadd.f32 0.0, %v2607
    %v2609 = vpop.f32.mrb[0].mxu0
    %2610 = vdwg.mxu0
    %2611 = vrot.lane.b32.xlu0 %v2202, 120
    %v2612 = vpop.permute.xlu0 %2611
    %2613 = vrot.lane.b32.xlu0 %v2202, 88
    %v2614 = vpop.permute.xlu0 %2613
    %v2615 = vsel %vm191, %v2612, 0
    %v2617 = vsel %vm191, %v2614, 0
    %2619 = vmatprep.subr.mxu0 0.0
    %2620 = vmatpush1.xpose.msra.mxu0 %v2617
    %2621 = vmatprep.subr.mxu0 0.0
    %2622 = vmatpush1.xpose.msra.mxu0 0.0
    %2623 = vmatprep.subr.mxu0 0.0
    %2624 = vmatpush1.xpose.msra.mxu0 0.0
    %2625 = vmatprep.subr.mxu0 0.0
    %2626 = vmatpush1.xpose.msra.mxu0 0.0
    %2627 = vmatprep.subr.mxu0 0.0
    %2628 = vmatpush1.xpose.msra.mxu0 0.0
    %2629 = vmatprep.subr.mxu0 0.0
    %2630 = vmatpush1.xpose.msra.mxu0 0.0
    %2631 = vmatprep.subr.mxu0 0.0
    %2632 = vmatpush1.xpose.msra.mxu0 0.0
    %2633 = vmatprep.subr.mxu0 0.0
    %2634 = vmatpush1.xpose.msra.mxu0 0.0
    %2635 = vmatprep.subr.mxu0 0.0
    %2636 = vmatpush1.xpose.msra.mxu0 0.0
    %2637 = vmatprep.subr.mxu0 0.0
    %2638 = vmatpush1.xpose.msra.mxu0 0.0
    %2639 = vmatprep.subr.mxu0 0.0
    %2640 = vmatpush1.xpose.msra.mxu0 0.0
    %2641 = vmatprep.subr.mxu0 0.0
    %2642 = vmatpush1.xpose.msra.mxu0 0.0
    %2643 = vmatprep.subr.mxu0 0.0
    %2644 = vmatpush1.xpose.msra.mxu0 0.0
    %2645 = vmatprep.subr.mxu0 0.0
    %2646 = vmatpush1.xpose.msra.mxu0 0.0
    %2647 = vmatprep.subr.mxu0 0.0
    %2648 = vmatpush1.xpose.msra.mxu0 0.0
    %2649 = vmatprep.subr.mxu0 0.0
    %2650 = vmatpush1.xpose.msra.mxu0 0.0
    %2651 = vmatprep.subr.mxu0 0.0
    %2652 = vmatpush1.xpose.msra.mxu0 0.0
    %2653 = vmatprep.subr.mxu0 0.0
    %2654 = vmatpush1.xpose.msra.mxu0 0.0
    %2655 = vmatprep.subr.mxu0 0.0
    %2656 = vmatpush1.xpose.msra.mxu0 0.0
    %2657 = vmatprep.subr.mxu0 0.0
    %2658 = vmatpush1.xpose.msra.mxu0 0.0
    %2659 = vmatprep.subr.mxu0 0.0
    %2660 = vmatpush1.xpose.msra.mxu0 0.0
    %2661 = vmatprep.subr.mxu0 0.0
    %2662 = vmatpush1.xpose.msra.mxu0 0.0
    %2663 = vmatprep.subr.mxu0 0.0
    %2664 = vmatpush1.xpose.msra.mxu0 0.0
    %2665 = vmatprep.subr.mxu0 0.0
    %2666 = vmatpush1.xpose.msra.mxu0 0.0
    %2667 = vmatprep.subr.mxu0 0.0
    %2668 = vmatpush1.xpose.msra.mxu0 0.0
    %2669 = vmatprep.subr.mxu0 0.0
    %2670 = vmatpush1.xpose.msra.mxu0 0.0
    %2671 = vmatprep.subr.mxu0 0.0
    %2672 = vmatpush1.xpose.msra.mxu0 0.0
    %2673 = vmatprep.subr.mxu0 0.0
    %2674 = vmatpush1.xpose.msra.mxu0 0.0
    %2675 = vmatprep.subr.mxu0 0.0
    %2676 = vmatpush1.xpose.msra.mxu0 0.0
    %2677 = vmatprep.subr.mxu0 0.0
    %2678 = vmatpush1.xpose.msra.mxu0 0.0
    %2679 = vmatprep.subr.mxu0 0.0
    %2680 = vmatpush1.xpose.msra.mxu0 0.0
    %2681 = vmatprep.subr.mxu0 0.0
    %2682 = vmatpush1.xpose.msra.mxu0 0.0
    %2683 = vmatprep.mubr.f32.mxu0 0.0
    %2684 = vmatmul.mubr.f32.gmra.mrb[0].mxu0 %v2615
    %v2685 = vpop.f32.mrb[0].mxu0
    %v2686 = vadd.f32 0.0, %v2685
    %v2687 = vpop.f32.mrb[0].mxu0
    %2688 = vdwg.mxu0
    %v2689 = vsel %vm191, %v2608, -inf
    %2690 = vmax.xlane.f32.xlu0 %v2689
    %v2691 = vpop.xlane.xlu0 %2690
    %v2692 = vsel %vm191, %v2686, -inf
    %2693 = vmax.xlane.f32.xlu0 %v2692
    %v2694 = vpop.xlane.xlu0 %2693
    %v2695 = vsub.f32 %v2608, %v2691
    %v2696 = vsub.f32 %v2686, %v2694
    %v2697 = vmul.f32 %v2695, 1.442695
    %v2698 = vpow.pop %v2697
    %v2699 = vmul.f32 %v2696, 1.442695
    %v2700 = vpow.pop %v2699
    %v2701 = vsel %vm191, %v2698, 0.0
    %2702 = vadd.xlane.f32.xlu0 %v2701
    %v2703 = vpop.xlane.xlu0 %2702
    %v2704 = vsel %vm191, %v2700, 0.0
    %2705 = vadd.xlane.f32.xlu0 %v2704
    %v2706 = vpop.xlane.xlu0 %2705
    %v2707 = vrcp.pop %v2703
    %v2708 = vrcp.pop %v2706
    %v2709 = vmul.f32 %v2698, %v2707
    %v2710 = vmul.f32 %v2700, %v2708
    %2711 = vrot.lane.b32.xlu0 %v2197, 56
    %v2712 = vpop.permute.xlu0 %2711
    %v2715 = vsel %vm191, %v2709, 0
    %2717 = vmatprep.subr.mxu0 0.0
    %2718 = vmatpush1.msra.mxu0 %v2712
    %2719 = vmatprep.subr.mxu0 0.0
    %2720 = vmatpush1.msra.mxu0 0.0
    %2721 = vmatprep.subr.mxu0 0.0
    %2722 = vmatpush1.msra.mxu0 0.0
    %2723 = vmatprep.subr.mxu0 0.0
    %2724 = vmatpush1.msra.mxu0 0.0
    %2725 = vmatprep.subr.mxu0 0.0
    %2726 = vmatpush1.msra.mxu0 0.0
    %2727 = vmatprep.subr.mxu0 0.0
    %2728 = vmatpush1.msra.mxu0 0.0
    %2729 = vmatprep.subr.mxu0 0.0
    %2730 = vmatpush1.msra.mxu0 0.0
    %2731 = vmatprep.subr.mxu0 0.0
    %2732 = vmatpush1.msra.mxu0 0.0
    %2733 = vmatprep.subr.mxu0 0.0
    %2734 = vmatpush1.msra.mxu0 0.0
    %2735 = vmatprep.subr.mxu0 0.0
    %2736 = vmatpush1.msra.mxu0 0.0
    %2737 = vmatprep.subr.mxu0 0.0
    %2738 = vmatpush1.msra.mxu0 0.0
    %2739 = vmatprep.subr.mxu0 0.0
    %2740 = vmatpush1.msra.mxu0 0.0
    %2741 = vmatprep.subr.mxu0 0.0
    %2742 = vmatpush1.msra.mxu0 0.0
    %2743 = vmatprep.subr.mxu0 0.0
    %2744 = vmatpush1.msra.mxu0 0.0
    %2745 = vmatprep.subr.mxu0 0.0
    %2746 = vmatpush1.msra.mxu0 0.0
    %2747 = vmatprep.subr.mxu0 0.0
    %2748 = vmatpush1.msra.mxu0 0.0
    %2749 = vmatprep.subr.mxu0 0.0
    %2750 = vmatpush1.msra.mxu0 0.0
    %2751 = vmatprep.subr.mxu0 0.0
    %2752 = vmatpush1.msra.mxu0 0.0
    %2753 = vmatprep.subr.mxu0 0.0
    %2754 = vmatpush1.msra.mxu0 0.0
    %2755 = vmatprep.subr.mxu0 0.0
    %2756 = vmatpush1.msra.mxu0 0.0
    %2757 = vmatprep.subr.mxu0 0.0
    %2758 = vmatpush1.msra.mxu0 0.0
    %2759 = vmatprep.subr.mxu0 0.0
    %2760 = vmatpush1.msra.mxu0 0.0
    %2761 = vmatprep.subr.mxu0 0.0
    %2762 = vmatpush1.msra.mxu0 0.0
    %2763 = vmatprep.subr.mxu0 0.0
    %2764 = vmatpush1.msra.mxu0 0.0
    %2765 = vmatprep.subr.mxu0 0.0
    %2766 = vmatpush1.msra.mxu0 0.0
    %2767 = vmatprep.subr.mxu0 0.0
    %2768 = vmatpush1.msra.mxu0 0.0
    %2769 = vmatprep.subr.mxu0 0.0
    %2770 = vmatpush1.msra.mxu0 0.0
    %2771 = vmatprep.subr.mxu0 0.0
    %2772 = vmatpush1.msra.mxu0 0.0
    %2773 = vmatprep.subr.mxu0 0.0
    %2774 = vmatpush1.msra.mxu0 0.0
    %2775 = vmatprep.subr.mxu0 0.0
    %2776 = vmatpush1.msra.mxu0 0.0
    %2777 = vmatprep.subr.mxu0 0.0
    %2778 = vmatpush1.msra.mxu0 0.0
    %2779 = vmatprep.subr.mxu0 0.0
    %2780 = vmatpush1.msra.mxu0 0.0
    %2781 = vmatprep.mubr.f32.mxu0 0.0
    %2782 = vmatmul.mubr.f32.gmra.mrb[0].mxu0 %v2715
    %v2783 = vpop.f32.mrb[0].mxu0
    %v2784 = vadd.f32 0.0, %v2783
    %v2785 = vpop.f32.mrb[0].mxu0
    %2786 = vdwg.mxu0
    %2787 = vrot.lane.b32.xlu0 %v2202, 56
    %v2788 = vpop.permute.xlu0 %2787
    %v2791 = vsel %vm191, %v2710, 0
    %2793 = vmatprep.subr.mxu0 0.0
    %2794 = vmatpush1.msra.mxu0 %v2788
    %2795 = vmatprep.subr.mxu0 0.0
    %2796 = vmatpush1.msra.mxu0 0.0
    %2797 = vmatprep.subr.mxu0 0.0
    %2798 = vmatpush1.msra.mxu0 0.0
    %2799 = vmatprep.subr.mxu0 0.0
    %2800 = vmatpush1.msra.mxu0 0.0
    %2801 = vmatprep.subr.mxu0 0.0
    %2802 = vmatpush1.msra.mxu0 0.0
    %2803 = vmatprep.subr.mxu0 0.0
    %2804 = vmatpush1.msra.mxu0 0.0
    %2805 = vmatprep.subr.mxu0 0.0
    %2806 = vmatpush1.msra.mxu0 0.0
    %2807 = vmatprep.subr.mxu0 0.0
    %2808 = vmatpush1.msra.mxu0 0.0
    %2809 = vmatprep.subr.mxu0 0.0
    %2810 = vmatpush1.msra.mxu0 0.0
    %2811 = vmatprep.subr.mxu0 0.0
    %2812 = vmatpush1.msra.mxu0 0.0
    %2813 = vmatprep.subr.mxu0 0.0
    %2814 = vmatpush1.msra.mxu0 0.0
    %2815 = vmatprep.subr.mxu0 0.0
    %2816 = vmatpush1.msra.mxu0 0.0
    %2817 = vmatprep.subr.mxu0 0.0
    %2818 = vmatpush1.msra.mxu0 0.0
    %2819 = vmatprep.subr.mxu0 0.0
    %2820 = vmatpush1.msra.mxu0 0.0
    %2821 = vmatprep.subr.mxu0 0.0
    %2822 = vmatpush1.msra.mxu0 0.0
    %2823 = vmatprep.subr.mxu0 0.0
    %2824 = vmatpush1.msra.mxu0 0.0
    %2825 = vmatprep.subr.mxu0 0.0
    %2826 = vmatpush1.msra.mxu0 0.0
    %2827 = vmatprep.subr.mxu0 0.0
    %2828 = vmatpush1.msra.mxu0 0.0
    %2829 = vmatprep.subr.mxu0 0.0
    %2830 = vmatpush1.msra.mxu0 0.0
    %2831 = vmatprep.subr.mxu0 0.0
    %2832 = vmatpush1.msra.mxu0 0.0
    %2833 = vmatprep.subr.mxu0 0.0
    %2834 = vmatpush1.msra.mxu0 0.0
    %2835 = vmatprep.subr.mxu0 0.0
    %2836 = vmatpush1.msra.mxu0 0.0
    %2837 = vmatprep.subr.mxu0 0.0
    %2838 = vmatpush1.msra.mxu0 0.0
    %2839 = vmatprep.subr.mxu0 0.0
    %2840 = vmatpush1.msra.mxu0 0.0
    %2841 = vmatprep.subr.mxu0 0.0
    %2842 = vmatpush1.msra.mxu0 0.0
    %2843 = vmatprep.subr.mxu0 0.0
    %2844 = vmatpush1.msra.mxu0 0.0
    %2845 = vmatprep.subr.mxu0 0.0
    %2846 = vmatpush1.msra.mxu0 0.0
    %2847 = vmatprep.subr.mxu0 0.0
    %2848 = vmatpush1.msra.mxu0 0.0
    %2849 = vmatprep.subr.mxu0 0.0
    %2850 = vmatpush1.msra.mxu0 0.0
    %2851 = vmatprep.subr.mxu0 0.0
    %2852 = vmatpush1.msra.mxu0 0.0
    %2853 = vmatprep.subr.mxu0 0.0
    %2854 = vmatpush1.msra.mxu0 0.0
    %2855 = vmatprep.subr.mxu0 0.0
    %2856 = vmatpush1.msra.mxu0 0.0
    %2857 = vmatprep.mubr.f32.mxu0 0.0
    %2858 = vmatmul.mubr.f32.gmra.mrb[0].mxu0 %v2791
    %v2859 = vpop.f32.mrb[0].mxu0
    %v2860 = vadd.f32 0.0, %v2859
    %v2861 = vpop.f32.mrb[0].mxu0
    %2862 = vdwg.mxu0
    %v2864 = vsel %vm191, %v2784, 0
    %v2867 = vsel %vm191, %v2860, 0
    %2869 = vmatprep.subr.mxu0 0.0
    %2870 = vmatpush1.msra.mxu0 %v2069
    %2871 = vmatprep.subr.mxu0 0.0
    %2872 = vmatpush1.msra.mxu0 0.0
    %2873 = vmatprep.subr.mxu0 0.0
    %2874 = vmatpush1.msra.mxu0 0.0
    %2875 = vmatprep.subr.mxu0 0.0
    %2876 = vmatpush1.msra.mxu0 0.0
    %2877 = vmatprep.subr.mxu0 0.0
    %2878 = vmatpush1.msra.mxu0 0.0
    %2879 = vmatprep.subr.mxu0 0.0
    %2880 = vmatpush1.msra.mxu0 0.0
    %2881 = vmatprep.subr.mxu0 0.0
    %2882 = vmatpush1.msra.mxu0 0.0
    %2883 = vmatprep.subr.mxu0 0.0
    %2884 = vmatpush1.msra.mxu0 0.0
    %2885 = vmatprep.subr.mxu0 0.0
    %2886 = vmatpush1.msra.mxu0 0.0
    %2887 = vmatprep.subr.mxu0 0.0
    %2888 = vmatpush1.msra.mxu0 0.0
    %2889 = vmatprep.subr.mxu0 0.0
    %2890 = vmatpush1.msra.mxu0 0.0
    %2891 = vmatprep.subr.mxu0 0.0
    %2892 = vmatpush1.msra.mxu0 0.0
    %2893 = vmatprep.subr.mxu0 0.0
    %2894 = vmatpush1.msra.mxu0 0.0
    %2895 = vmatprep.subr.mxu0 0.0
    %2896 = vmatpush1.msra.mxu0 0.0
    %2897 = vmatprep.subr.mxu0 0.0
    %2898 = vmatpush1.msra.mxu0 0.0
    %2899 = vmatprep.subr.mxu0 0.0
    %2900 = vmatpush1.msra.mxu0 0.0
    %2901 = vmatprep.subr.mxu0 0.0
    %2902 = vmatpush1.msra.mxu0 0.0
    %2903 = vmatprep.subr.mxu0 0.0
    %2904 = vmatpush1.msra.mxu0 0.0
    %2905 = vmatprep.subr.mxu0 0.0
    %2906 = vmatpush1.msra.mxu0 0.0
    %2907 = vmatprep.subr.mxu0 0.0
    %2908 = vmatpush1.msra.mxu0 0.0
    %2909 = vmatprep.subr.mxu0 0.0
    %2910 = vmatpush1.msra.mxu0 0.0
    %2911 = vmatprep.subr.mxu0 0.0
    %2912 = vmatpush1.msra.mxu0 0.0
    %2913 = vmatprep.subr.mxu0 0.0
    %2914 = vmatpush1.msra.mxu0 0.0
    %2915 = vmatprep.subr.mxu0 0.0
    %2916 = vmatpush1.msra.mxu0 0.0
    %2917 = vmatprep.subr.mxu0 0.0
    %2918 = vmatpush1.msra.mxu0 0.0
    %2919 = vmatprep.subr.mxu0 0.0
    %2920 = vmatpush1.msra.mxu0 0.0
    %2921 = vmatprep.subr.mxu0 0.0
    %2922 = vmatpush1.msra.mxu0 0.0
    %2923 = vmatprep.subr.mxu0 0.0
    %2924 = vmatpush1.msra.mxu0 0.0
    %2925 = vmatprep.subr.mxu0 0.0
    %2926 = vmatpush1.msra.mxu0 0.0
    %2927 = vmatprep.subr.mxu0 0.0
    %2928 = vmatpush1.msra.mxu0 0.0
    %2929 = vmatprep.subr.mxu0 0.0
    %2930 = vmatpush1.msra.mxu0 0.0
    %2931 = vmatprep.subr.mxu0 0.0
    %2932 = vmatpush1.msra.mxu0 0.0
    %2933 = vmatprep.mubr.f32.mxu0 0.0
    %2934 = vmatmul.mubr.f32.gmra.mrb[0].mxu0 %v2864
    %v2935 = vpop.f32.mrb[0].mxu0
    %v2936 = vadd.f32 0.0, %v2935
    %v2937 = vpop.f32.mrb[0].mxu0
    %2938 = vmatprep.mubr.f32.mxu0 0.0
    %2939 = vmatmul.mubr.f32.gmra.mrb[0].mxu0 %v2867
    %v2940 = vpop.f32.mrb[0].mxu0
    %v2941 = vadd.f32 0.0, %v2940
    %v2942 = vpop.f32.mrb[0].mxu0
    %2943 = vdwg.mxu0
    %v2945 = vsel %vm191, %v2454, 0
    %v2948 = vsel %vm191, %v2530, 0
    %2950 = vmatprep.subr.mxu0 0.0
    %2951 = vmatpush1.msra.mxu0 %v2068
    %2952 = vmatprep.subr.mxu0 0.0
    %2953 = vmatpush1.msra.mxu0 0.0
    %2954 = vmatprep.subr.mxu0 0.0
    %2955 = vmatpush1.msra.mxu0 0.0
    %2956 = vmatprep.subr.mxu0 0.0
    %2957 = vmatpush1.msra.mxu0 0.0
    %2958 = vmatprep.subr.mxu0 0.0
    %2959 = vmatpush1.msra.mxu0 0.0
    %2960 = vmatprep.subr.mxu0 0.0
    %2961 = vmatpush1.msra.mxu0 0.0
    %2962 = vmatprep.subr.mxu0 0.0
    %2963 = vmatpush1.msra.mxu0 0.0
    %2964 = vmatprep.subr.mxu0 0.0
    %2965 = vmatpush1.msra.mxu0 0.0
    %2966 = vmatprep.subr.mxu0 0.0
    %2967 = vmatpush1.msra.mxu0 0.0
    %2968 = vmatprep.subr.mxu0 0.0
    %2969 = vmatpush1.msra.mxu0 0.0
    %2970 = vmatprep.subr.mxu0 0.0
    %2971 = vmatpush1.msra.mxu0 0.0
    %2972 = vmatprep.subr.mxu0 0.0
    %2973 = vmatpush1.msra.mxu0 0.0
    %2974 = vmatprep.subr.mxu0 0.0
    %2975 = vmatpush1.msra.mxu0 0.0
    %2976 = vmatprep.subr.mxu0 0.0
    %2977 = vmatpush1.msra.mxu0 0.0
    %2978 = vmatprep.subr.mxu0 0.0
    %2979 = vmatpush1.msra.mxu0 0.0
    %2980 = vmatprep.subr.mxu0 0.0
    %2981 = vmatpush1.msra.mxu0 0.0
    %2982 = vmatprep.subr.mxu0 0.0
    %2983 = vmatpush1.msra.mxu0 0.0
    %2984 = vmatprep.subr.mxu0 0.0
    %2985 = vmatpush1.msra.mxu0 0.0
    %2986 = vmatprep.subr.mxu0 0.0
    %2987 = vmatpush1.msra.mxu0 0.0
    %2988 = vmatprep.subr.mxu0 0.0
    %2989 = vmatpush1.msra.mxu0 0.0
    %2990 = vmatprep.subr.mxu0 0.0
    %2991 = vmatpush1.msra.mxu0 0.0
    %2992 = vmatprep.subr.mxu0 0.0
    %2993 = vmatpush1.msra.mxu0 0.0
    %2994 = vmatprep.subr.mxu0 0.0
    %2995 = vmatpush1.msra.mxu0 0.0
    %2996 = vmatprep.subr.mxu0 0.0
    %2997 = vmatpush1.msra.mxu0 0.0
    %2998 = vmatprep.subr.mxu0 0.0
    %2999 = vmatpush1.msra.mxu0 0.0
    %3000 = vmatprep.subr.mxu0 0.0
    %3001 = vmatpush1.msra.mxu0 0.0
    %3002 = vmatprep.subr.mxu0 0.0
    %3003 = vmatpush1.msra.mxu0 0.0
    %3004 = vmatprep.subr.mxu0 0.0
    %3005 = vmatpush1.msra.mxu0 0.0
    %3006 = vmatprep.subr.mxu0 0.0
    %3007 = vmatpush1.msra.mxu0 0.0
    %3008 = vmatprep.subr.mxu0 0.0
    %3009 = vmatpush1.msra.mxu0 0.0
    %3010 = vmatprep.subr.mxu0 0.0
    %3011 = vmatpush1.msra.mxu0 0.0
    %3012 = vmatprep.subr.mxu0 0.0
    %3013 = vmatpush1.msra.mxu0 0.0
    %3014 = vmatprep.mubr.f32.mxu0 0.0
    %3015 = vmatmul.mubr.f32.gmra.mrb[0].mxu0 %v2945
    %v3016 = vpop.f32.mrb[0].mxu0
    %v3017 = vadd.f32 %v2936, %v3016
    %v3018 = vpop.f32.mrb[0].mxu0
    %3019 = vmatprep.mubr.f32.mxu0 0.0
    %3020 = vmatmul.mubr.f32.gmra.mrb[0].mxu0 %v2948
    %v3021 = vpop.f32.mrb[0].mxu0
    %v3022 = vadd.f32 %v2941, %v3021
    %v3023 = vpop.f32.mrb[0].mxu0
    %3024 = vdwg.mxu0
    %3025 = vrot.lane.b32.xlu0 %v2197, 112
    %v3026 = vpop.permute.xlu0 %3025
    %3027 = vrot.lane.b32.xlu0 %v2197, 80
    %v3028 = vpop.permute.xlu0 %3027
    %v3029 = vsel %vm191, %v3026, 0
    %v3031 = vsel %vm191, %v3028, 0
    %3033 = vmatprep.subr.mxu0 0.0
    %3034 = vmatpush1.xpose.msra.mxu0 %v3031
    %3035 = vmatprep.subr.mxu0 0.0
    %3036 = vmatpush1.xpose.msra.mxu0 0.0
    %3037 = vmatprep.subr.mxu0 0.0
    %3038 = vmatpush1.xpose.msra.mxu0 0.0
    %3039 = vmatprep.subr.mxu0 0.0
    %3040 = vmatpush1.xpose.msra.mxu0 0.0
    %3041 = vmatprep.subr.mxu0 0.0
    %3042 = vmatpush1.xpose.msra.mxu0 0.0
    %3043 = vmatprep.subr.mxu0 0.0
    %3044 = vmatpush1.xpose.msra.mxu0 0.0
    %3045 = vmatprep.subr.mxu0 0.0
    %3046 = vmatpush1.xpose.msra.mxu0 0.0
    %3047 = vmatprep.subr.mxu0 0.0
    %3048 = vmatpush1.xpose.msra.mxu0 0.0
    %3049 = vmatprep.subr.mxu0 0.0
    %3050 = vmatpush1.xpose.msra.mxu0 0.0
    %3051 = vmatprep.subr.mxu0 0.0
    %3052 = vmatpush1.xpose.msra.mxu0 0.0
    %3053 = vmatprep.subr.mxu0 0.0
    %3054 = vmatpush1.xpose.msra.mxu0 0.0
    %3055 = vmatprep.subr.mxu0 0.0
    %3056 = vmatpush1.xpose.msra.mxu0 0.0
    %3057 = vmatprep.subr.mxu0 0.0
    %3058 = vmatpush1.xpose.msra.mxu0 0.0
    %3059 = vmatprep.subr.mxu0 0.0
    %3060 = vmatpush1.xpose.msra.mxu0 0.0
    %3061 = vmatprep.subr.mxu0 0.0
    %3062 = vmatpush1.xpose.msra.mxu0 0.0
    %3063 = vmatprep.subr.mxu0 0.0
    %3064 = vmatpush1.xpose.msra.mxu0 0.0
    %3065 = vmatprep.subr.mxu0 0.0
    %3066 = vmatpush1.xpose.msra.mxu0 0.0
    %3067 = vmatprep.subr.mxu0 0.0
    %3068 = vmatpush1.xpose.msra.mxu0 0.0
    %3069 = vmatprep.subr.mxu0 0.0
    %3070 = vmatpush1.xpose.msra.mxu0 0.0
    %3071 = vmatprep.subr.mxu0 0.0
    %3072 = vmatpush1.xpose.msra.mxu0 0.0
    %3073 = vmatprep.subr.mxu0 0.0
    %3074 = vmatpush1.xpose.msra.mxu0 0.0
    %3075 = vmatprep.subr.mxu0 0.0
    %3076 = vmatpush1.xpose.msra.mxu0 0.0
    %3077 = vmatprep.subr.mxu0 0.0
    %3078 = vmatpush1.xpose.msra.mxu0 0.0
    %3079 = vmatprep.subr.mxu0 0.0
    %3080 = vmatpush1.xpose.msra.mxu0 0.0
    %3081 = vmatprep.subr.mxu0 0.0
    %3082 = vmatpush1.xpose.msra.mxu0 0.0
    %3083 = vmatprep.subr.mxu0 0.0
    %3084 = vmatpush1.xpose.msra.mxu0 0.0
    %3085 = vmatprep.subr.mxu0 0.0
    %3086 = vmatpush1.xpose.msra.mxu0 0.0
    %3087 = vmatprep.subr.mxu0 0.0
    %3088 = vmatpush1.xpose.msra.mxu0 0.0
    %3089 = vmatprep.subr.mxu0 0.0
    %3090 = vmatpush1.xpose.msra.mxu0 0.0
    %3091 = vmatprep.subr.mxu0 0.0
    %3092 = vmatpush1.xpose.msra.mxu0 0.0
    %3093 = vmatprep.subr.mxu0 0.0
    %3094 = vmatpush1.xpose.msra.mxu0 0.0
    %3095 = vmatprep.subr.mxu0 0.0
    %3096 = vmatpush1.xpose.msra.mxu0 0.0
    %3097 = vmatprep.mubr.f32.mxu0 0.0
    %3098 = vmatmul.mubr.f32.gmra.mrb[0].mxu0 %v3029
    %v3099 = vpop.f32.mrb[0].mxu0
    %v3100 = vadd.f32 0.0, %v3099
    %v3101 = vpop.f32.mrb[0].mxu0
    %3102 = vdwg.mxu0
    %3103 = vrot.lane.b32.xlu0 %v2202, 112
    %v3104 = vpop.permute.xlu0 %3103
    %3105 = vrot.lane.b32.xlu0 %v2202, 80
    %v3106 = vpop.permute.xlu0 %3105
    %v3107 = vsel %vm191, %v3104, 0
    %v3109 = vsel %vm191, %v3106, 0
    %3111 = vmatprep.subr.mxu0 0.0
    %3112 = vmatpush1.xpose.msra.mxu0 %v3109
    %3113 = vmatprep.subr.mxu0 0.0
    %3114 = vmatpush1.xpose.msra.mxu0 0.0
    %3115 = vmatprep.subr.mxu0 0.0
    %3116 = vmatpush1.xpose.msra.mxu0 0.0
    %3117 = vmatprep.subr.mxu0 0.0
    %3118 = vmatpush1.xpose.msra.mxu0 0.0
    %3119 = vmatprep.subr.mxu0 0.0
    %3120 = vmatpush1.xpose.msra.mxu0 0.0
    %3121 = vmatprep.subr.mxu0 0.0
    %3122 = vmatpush1.xpose.msra.mxu0 0.0
    %3123 = vmatprep.subr.mxu0 0.0
    %3124 = vmatpush1.xpose.msra.mxu0 0.0
    %3125 = vmatprep.subr.mxu0 0.0
    %3126 = vmatpush1.xpose.msra.mxu0 0.0
    %3127 = vmatprep.subr.mxu0 0.0
    %3128 = vmatpush1.xpose.msra.mxu0 0.0
    %3129 = vmatprep.subr.mxu0 0.0
    %3130 = vmatpush1.xpose.msra.mxu0 0.0
    %3131 = vmatprep.subr.mxu0 0.0
    %3132 = vmatpush1.xpose.msra.mxu0 0.0
    %3133 = vmatprep.subr.mxu0 0.0
    %3134 = vmatpush1.xpose.msra.mxu0 0.0
    %3135 = vmatprep.subr.mxu0 0.0
    %3136 = vmatpush1.xpose.msra.mxu0 0.0
    %3137 = vmatprep.subr.mxu0 0.0
    %3138 = vmatpush1.xpose.msra.mxu0 0.0
    %3139 = vmatprep.subr.mxu0 0.0
    %3140 = vmatpush1.xpose.msra.mxu0 0.0
    %3141 = vmatprep.subr.mxu0 0.0
    %3142 = vmatpush1.xpose.msra.mxu0 0.0
    %3143 = vmatprep.subr.mxu0 0.0
    %3144 = vmatpush1.xpose.msra.mxu0 0.0
    %3145 = vmatprep.subr.mxu0 0.0
    %3146 = vmatpush1.xpose.msra.mxu0 0.0
    %3147 = vmatprep.subr.mxu0 0.0
    %3148 = vmatpush1.xpose.msra.mxu0 0.0
    %3149 = vmatprep.subr.mxu0 0.0
    %3150 = vmatpush1.xpose.msra.mxu0 0.0
    %3151 = vmatprep.subr.mxu0 0.0
    %3152 = vmatpush1.xpose.msra.mxu0 0.0
    %3153 = vmatprep.subr.mxu0 0.0
    %3154 = vmatpush1.xpose.msra.mxu0 0.0
    %3155 = vmatprep.subr.mxu0 0.0
    %3156 = vmatpush1.xpose.msra.mxu0 0.0
    %3157 = vmatprep.subr.mxu0 0.0
    %3158 = vmatpush1.xpose.msra.mxu0 0.0
    %3159 = vmatprep.subr.mxu0 0.0
    %3160 = vmatpush1.xpose.msra.mxu0 0.0
    %3161 = vmatprep.subr.mxu0 0.0
    %3162 = vmatpush1.xpose.msra.mxu0 0.0
    %3163 = vmatprep.subr.mxu0 0.0
    %3164 = vmatpush1.xpose.msra.mxu0 0.0
    %3165 = vmatprep.subr.mxu0 0.0
    %3166 = vmatpush1.xpose.msra.mxu0 0.0
    %3167 = vmatprep.subr.mxu0 0.0
    %3168 = vmatpush1.xpose.msra.mxu0 0.0
    %3169 = vmatprep.subr.mxu0 0.0
    %3170 = vmatpush1.xpose.msra.mxu0 0.0
    %3171 = vmatprep.subr.mxu0 0.0
    %3172 = vmatpush1.xpose.msra.mxu0 0.0
    %3173 = vmatprep.subr.mxu0 0.0
    %3174 = vmatpush1.xpose.msra.mxu0 0.0
    %3175 = vmatprep.mubr.f32.mxu0 0.0
    %3176 = vmatmul.mubr.f32.gmra.mrb[0].mxu0 %v3107
    %v3177 = vpop.f32.mrb[0].mxu0
    %v3178 = vadd.f32 0.0, %v3177
    %v3179 = vpop.f32.mrb[0].mxu0
    %3180 = vdwg.mxu0
    %v3181 = vsel %vm191, %v3100, -inf
    %3182 = vmax.xlane.f32.xlu0 %v3181
    %v3183 = vpop.xlane.xlu0 %3182
    %v3184 = vsel %vm191, %v3178, -inf
    %3185 = vmax.xlane.f32.xlu0 %v3184
    %v3186 = vpop.xlane.xlu0 %3185
    %v3187 = vsub.f32 %v3100, %v3183
    %v3188 = vsub.f32 %v3178, %v3186
    %v3189 = vmul.f32 %v3187, 1.442695
    %v3190 = vpow.pop %v3189
    %v3191 = vmul.f32 %v3188, 1.442695
    %v3192 = vpow.pop %v3191
    %v3193 = vsel %vm191, %v3190, 0.0
    %3194 = vadd.xlane.f32.xlu0 %v3193
    %v3195 = vpop.xlane.xlu0 %3194
    %v3196 = vsel %vm191, %v3192, 0.0
    %3197 = vadd.xlane.f32.xlu0 %v3196
    %v3198 = vpop.xlane.xlu0 %3197
    %v3199 = vrcp.pop %v3195
    %v3200 = vrcp.pop %v3198
    %v3201 = vmul.f32 %v3190, %v3199
    %v3202 = vmul.f32 %v3192, %v3200
    %3203 = vrot.lane.b32.xlu0 %v2197, 48
    %v3204 = vpop.permute.xlu0 %3203
    %v3207 = vsel %vm191, %v3201, 0
    %3209 = vmatprep.subr.mxu0 0.0
    %3210 = vmatpush1.msra.mxu0 %v3204
    %3211 = vmatprep.subr.mxu0 0.0
    %3212 = vmatpush1.msra.mxu0 0.0
    %3213 = vmatprep.subr.mxu0 0.0
    %3214 = vmatpush1.msra.mxu0 0.0
    %3215 = vmatprep.subr.mxu0 0.0
    %3216 = vmatpush1.msra.mxu0 0.0
    %3217 = vmatprep.subr.mxu0 0.0
    %3218 = vmatpush1.msra.mxu0 0.0
    %3219 = vmatprep.subr.mxu0 0.0
    %3220 = vmatpush1.msra.mxu0 0.0
    %3221 = vmatprep.subr.mxu0 0.0
    %3222 = vmatpush1.msra.mxu0 0.0
    %3223 = vmatprep.subr.mxu0 0.0
    %3224 = vmatpush1.msra.mxu0 0.0
    %3225 = vmatprep.subr.mxu0 0.0
    %3226 = vmatpush1.msra.mxu0 0.0
    %3227 = vmatprep.subr.mxu0 0.0
    %3228 = vmatpush1.msra.mxu0 0.0
    %3229 = vmatprep.subr.mxu0 0.0
    %3230 = vmatpush1.msra.mxu0 0.0
    %3231 = vmatprep.subr.mxu0 0.0
    %3232 = vmatpush1.msra.mxu0 0.0
    %3233 = vmatprep.subr.mxu0 0.0
    %3234 = vmatpush1.msra.mxu0 0.0
    %3235 = vmatprep.subr.mxu0 0.0
    %3236 = vmatpush1.msra.mxu0 0.0
    %3237 = vmatprep.subr.mxu0 0.0
    %3238 = vmatpush1.msra.mxu0 0.0
    %3239 = vmatprep.subr.mxu0 0.0
    %3240 = vmatpush1.msra.mxu0 0.0
    %3241 = vmatprep.subr.mxu0 0.0
    %3242 = vmatpush1.msra.mxu0 0.0
    %3243 = vmatprep.subr.mxu0 0.0
    %3244 = vmatpush1.msra.mxu0 0.0
    %3245 = vmatprep.subr.mxu0 0.0
    %3246 = vmatpush1.msra.mxu0 0.0
    %3247 = vmatprep.subr.mxu0 0.0
    %3248 = vmatpush1.msra.mxu0 0.0
    %3249 = vmatprep.subr.mxu0 0.0
    %3250 = vmatpush1.msra.mxu0 0.0
    %3251 = vmatprep.subr.mxu0 0.0
    %3252 = vmatpush1.msra.mxu0 0.0
    %3253 = vmatprep.subr.mxu0 0.0
    %3254 = vmatpush1.msra.mxu0 0.0
    %3255 = vmatprep.subr.mxu0 0.0
    %3256 = vmatpush1.msra.mxu0 0.0
    %3257 = vmatprep.subr.mxu0 0.0
    %3258 = vmatpush1.msra.mxu0 0.0
    %3259 = vmatprep.subr.mxu0 0.0
    %3260 = vmatpush1.msra.mxu0 0.0
    %3261 = vmatprep.subr.mxu0 0.0
    %3262 = vmatpush1.msra.mxu0 0.0
    %3263 = vmatprep.subr.mxu0 0.0
    %3264 = vmatpush1.msra.mxu0 0.0
    %3265 = vmatprep.subr.mxu0 0.0
    %3266 = vmatpush1.msra.mxu0 0.0
    %3267 = vmatprep.subr.mxu0 0.0
    %3268 = vmatpush1.msra.mxu0 0.0
    %3269 = vmatprep.subr.mxu0 0.0
    %3270 = vmatpush1.msra.mxu0 0.0
    %3271 = vmatprep.subr.mxu0 0.0
    %3272 = vmatpush1.msra.mxu0 0.0
    %3273 = vmatprep.mubr.f32.mxu0 0.0
    %3274 = vmatmul.mubr.f32.gmra.mrb[0].mxu0 %v3207
    %v3275 = vpop.f32.mrb[0].mxu0
    %v3276 = vadd.f32 0.0, %v3275
    %v3277 = vpop.f32.mrb[0].mxu0
    %3278 = vdwg.mxu0
    %3279 = vrot.lane.b32.xlu0 %v2202, 48
    %v3280 = vpop.permute.xlu0 %3279
    %v3283 = vsel %vm191, %v3202, 0
    %3285 = vmatprep.subr.mxu0 0.0
    %3286 = vmatpush1.msra.mxu0 %v3280
    %3287 = vmatprep.subr.mxu0 0.0
    %3288 = vmatpush1.msra.mxu0 0.0
    %3289 = vmatprep.subr.mxu0 0.0
    %3290 = vmatpush1.msra.mxu0 0.0
    %3291 = vmatprep.subr.mxu0 0.0
    %3292 = vmatpush1.msra.mxu0 0.0
    %3293 = vmatprep.subr.mxu0 0.0
    %3294 = vmatpush1.msra.mxu0 0.0
    %3295 = vmatprep.subr.mxu0 0.0
    %3296 = vmatpush1.msra.mxu0 0.0
    %3297 = vmatprep.subr.mxu0 0.0
    %3298 = vmatpush1.msra.mxu0 0.0
    %3299 = vmatprep.subr.mxu0 0.0
    %3300 = vmatpush1.msra.mxu0 0.0
    %3301 = vmatprep.subr.mxu0 0.0
    %3302 = vmatpush1.msra.mxu0 0.0
    %3303 = vmatprep.subr.mxu0 0.0
    %3304 = vmatpush1.msra.mxu0 0.0
    %3305 = vmatprep.subr.mxu0 0.0
    %3306 = vmatpush1.msra.mxu0 0.0
    %3307 = vmatprep.subr.mxu0 0.0
    %3308 = vmatpush1.msra.mxu0 0.0
    %3309 = vmatprep.subr.mxu0 0.0
    %3310 = vmatpush1.msra.mxu0 0.0
    %3311 = vmatprep.subr.mxu0 0.0
    %3312 = vmatpush1.msra.mxu0 0.0
    %3313 = vmatprep.subr.mxu0 0.0
    %3314 = vmatpush1.msra.mxu0 0.0
    %3315 = vmatprep.subr.mxu0 0.0
    %3316 = vmatpush1.msra.mxu0 0.0
    %3317 = vmatprep.subr.mxu0 0.0
    %3318 = vmatpush1.msra.mxu0 0.0
    %3319 = vmatprep.subr.mxu0 0.0
    %3320 = vmatpush1.msra.mxu0 0.0
    %3321 = vmatprep.subr.mxu0 0.0
    %3322 = vmatpush1.msra.mxu0 0.0
    %3323 = vmatprep.subr.mxu0 0.0
    %3324 = vmatpush1.msra.mxu0 0.0
    %3325 = vmatprep.subr.mxu0 0.0
    %3326 = vmatpush1.msra.mxu0 0.0
    %3327 = vmatprep.subr.mxu0 0.0
    %3328 = vmatpush1.msra.mxu0 0.0
    %3329 = vmatprep.subr.mxu0 0.0
    %3330 = vmatpush1.msra.mxu0 0.0
    %3331 = vmatprep.subr.mxu0 0.0
    %3332 = vmatpush1.msra.mxu0 0.0
    %3333 = vmatprep.subr.mxu0 0.0
    %3334 = vmatpush1.msra.mxu0 0.0
    %3335 = vmatprep.subr.mxu0 0.0
    %3336 = vmatpush1.msra.mxu0 0.0
    %3337 = vmatprep.subr.mxu0 0.0
    %3338 = vmatpush1.msra.mxu0 0.0
    %3339 = vmatprep.subr.mxu0 0.0
    %3340 = vmatpush1.msra.mxu0 0.0
    %3341 = vmatprep.subr.mxu0 0.0
    %3342 = vmatpush1.msra.mxu0 0.0
    %3343 = vmatprep.subr.mxu0 0.0
    %3344 = vmatpush1.msra.mxu0 0.0
    %3345 = vmatprep.subr.mxu0 0.0
    %3346 = vmatpush1.msra.mxu0 0.0
    %3347 = vmatprep.subr.mxu0 0.0
    %3348 = vmatpush1.msra.mxu0 0.0
    %3349 = vmatprep.mubr.f32.mxu0 0.0
    %3350 = vmatmul.mubr.f32.gmra.mrb[0].mxu0 %v3283
    %v3351 = vpop.f32.mrb[0].mxu0
    %v3352 = vadd.f32 0.0, %v3351
    %v3353 = vpop.f32.mrb[0].mxu0
    %3354 = vdwg.mxu0
    %v3356 = vsel %vm191, %v3276, 0
    %v3359 = vsel %vm191, %v3352, 0
    %3361 = vmatprep.subr.mxu0 0.0
    %3362 = vmatpush1.msra.mxu0 %v2070
    %3363 = vmatprep.subr.mxu0 0.0
    %3364 = vmatpush1.msra.mxu0 0.0
    %3365 = vmatprep.subr.mxu0 0.0
    %3366 = vmatpush1.msra.mxu0 0.0
    %3367 = vmatprep.subr.mxu0 0.0
    %3368 = vmatpush1.msra.mxu0 0.0
    %3369 = vmatprep.subr.mxu0 0.0
    %3370 = vmatpush1.msra.mxu0 0.0
    %3371 = vmatprep.subr.mxu0 0.0
    %3372 = vmatpush1.msra.mxu0 0.0
    %3373 = vmatprep.subr.mxu0 0.0
    %3374 = vmatpush1.msra.mxu0 0.0
    %3375 = vmatprep.subr.mxu0 0.0
    %3376 = vmatpush1.msra.mxu0 0.0
    %3377 = vmatprep.subr.mxu0 0.0
    %3378 = vmatpush1.msra.mxu0 0.0
    %3379 = vmatprep.subr.mxu0 0.0
    %3380 = vmatpush1.msra.mxu0 0.0
    %3381 = vmatprep.subr.mxu0 0.0
    %3382 = vmatpush1.msra.mxu0 0.0
    %3383 = vmatprep.subr.mxu0 0.0
    %3384 = vmatpush1.msra.mxu0 0.0
    %3385 = vmatprep.subr.mxu0 0.0
    %3386 = vmatpush1.msra.mxu0 0.0
    %3387 = vmatprep.subr.mxu0 0.0
    %3388 = vmatpush1.msra.mxu0 0.0
    %3389 = vmatprep.subr.mxu0 0.0
    %3390 = vmatpush1.msra.mxu0 0.0
    %3391 = vmatprep.subr.mxu0 0.0
    %3392 = vmatpush1.msra.mxu0 0.0
    %3393 = vmatprep.subr.mxu0 0.0
    %3394 = vmatpush1.msra.mxu0 0.0
    %3395 = vmatprep.subr.mxu0 0.0
    %3396 = vmatpush1.msra.mxu0 0.0
    %3397 = vmatprep.subr.mxu0 0.0
    %3398 = vmatpush1.msra.mxu0 0.0
    %3399 = vmatprep.subr.mxu0 0.0
    %3400 = vmatpush1.msra.mxu0 0.0
    %3401 = vmatprep.subr.mxu0 0.0
    %3402 = vmatpush1.msra.mxu0 0.0
    %3403 = vmatprep.subr.mxu0 0.0
    %3404 = vmatpush1.msra.mxu0 0.0
    %3405 = vmatprep.subr.mxu0 0.0
    %3406 = vmatpush1.msra.mxu0 0.0
    %3407 = vmatprep.subr.mxu0 0.0
    %3408 = vmatpush1.msra.mxu0 0.0
    %3409 = vmatprep.subr.mxu0 0.0
    %3410 = vmatpush1.msra.mxu0 0.0
    %3411 = vmatprep.subr.mxu0 0.0
    %3412 = vmatpush1.msra.mxu0 0.0
    %3413 = vmatprep.subr.mxu0 0.0
    %3414 = vmatpush1.msra.mxu0 0.0
    %3415 = vmatprep.subr.mxu0 0.0
    %3416 = vmatpush1.msra.mxu0 0.0
    %3417 = vmatprep.subr.mxu0 0.0
    %3418 = vmatpush1.msra.mxu0 0.0
    %3419 = vmatprep.subr.mxu0 0.0
    %3420 = vmatpush1.msra.mxu0 0.0
    %3421 = vmatprep.subr.mxu0 0.0
    %3422 = vmatpush1.msra.mxu0 0.0
    %3423 = vmatprep.subr.mxu0 0.0
    %3424 = vmatpush1.msra.mxu0 0.0
    %3425 = vmatprep.mubr.f32.mxu0 0.0
    %3426 = vmatmul.mubr.f32.gmra.mrb[0].mxu0 %v3356
    %v3427 = vpop.f32.mrb[0].mxu0
    %v3428 = vadd.f32 0.0, %v3427
    %v3429 = vpop.f32.mrb[0].mxu0
    %3430 = vmatprep.mubr.f32.mxu0 0.0
    %3431 = vmatmul.mubr.f32.gmra.mrb[0].mxu0 %v3359
    %v3432 = vpop.f32.mrb[0].mxu0
    %v3433 = vadd.f32 0.0, %v3432
    %v3434 = vpop.f32.mrb[0].mxu0
    %3435 = vdwg.mxu0
    %v3436 = vadd.f32 %v3017, %v3428
    %v3437 = vadd.f32 %v3022, %v3433
    %3438 = vrot.lane.b32.xlu0 %v2197, 104
    %v3439 = vpop.permute.xlu0 %3438
    %3440 = vrot.lane.b32.xlu0 %v2197, 72
    %v3441 = vpop.permute.xlu0 %3440
    %v3442 = vsel %vm191, %v3439, 0
    %v3444 = vsel %vm191, %v3441, 0
    %3446 = vmatprep.subr.mxu0 0.0
    %3447 = vmatpush1.xpose.msra.mxu0 %v3444
    %3448 = vmatprep.subr.mxu0 0.0
    %3449 = vmatpush1.xpose.msra.mxu0 0.0
    %3450 = vmatprep.subr.mxu0 0.0
    %3451 = vmatpush1.xpose.msra.mxu0 0.0
    %3452 = vmatprep.subr.mxu0 0.0
    %3453 = vmatpush1.xpose.msra.mxu0 0.0
    %3454 = vmatprep.subr.mxu0 0.0
    %3455 = vmatpush1.xpose.msra.mxu0 0.0
    %3456 = vmatprep.subr.mxu0 0.0
    %3457 = vmatpush1.xpose.msra.mxu0 0.0
    %3458 = vmatprep.subr.mxu0 0.0
    %3459 = vmatpush1.xpose.msra.mxu0 0.0
    %3460 = vmatprep.subr.mxu0 0.0
    %3461 = vmatpush1.xpose.msra.mxu0 0.0
    %3462 = vmatprep.subr.mxu0 0.0
    %3463 = vmatpush1.xpose.msra.mxu0 0.0
    %3464 = vmatprep.subr.mxu0 0.0
    %3465 = vmatpush1.xpose.msra.mxu0 0.0
    %3466 = vmatprep.subr.mxu0 0.0
    %3467 = vmatpush1.xpose.msra.mxu0 0.0
    %3468 = vmatprep.subr.mxu0 0.0
    %3469 = vmatpush1.xpose.msra.mxu0 0.0
    %3470 = vmatprep.subr.mxu0 0.0
    %3471 = vmatpush1.xpose.msra.mxu0 0.0
    %3472 = vmatprep.subr.mxu0 0.0
    %3473 = vmatpush1.xpose.msra.mxu0 0.0
    %3474 = vmatprep.subr.mxu0 0.0
    %3475 = vmatpush1.xpose.msra.mxu0 0.0
    %3476 = vmatprep.subr.mxu0 0.0
    %3477 = vmatpush1.xpose.msra.mxu0 0.0
    %3478 = vmatprep.subr.mxu0 0.0
    %3479 = vmatpush1.xpose.msra.mxu0 0.0
    %3480 = vmatprep.subr.mxu0 0.0
    %3481 = vmatpush1.xpose.msra.mxu0 0.0
    %3482 = vmatprep.subr.mxu0 0.0
    %3483 = vmatpush1.xpose.msra.mxu0 0.0
    %3484 = vmatprep.subr.mxu0 0.0
    %3485 = vmatpush1.xpose.msra.mxu0 0.0
    %3486 = vmatprep.subr.mxu0 0.0
    %3487 = vmatpush1.xpose.msra.mxu0 0.0
    %3488 = vmatprep.subr.mxu0 0.0
    %3489 = vmatpush1.xpose.msra.mxu0 0.0
    %3490 = vmatprep.subr.mxu0 0.0
    %3491 = vmatpush1.xpose.msra.mxu0 0.0
    %3492 = vmatprep.subr.mxu0 0.0
    %3493 = vmatpush1.xpose.msra.mxu0 0.0
    %3494 = vmatprep.subr.mxu0 0.0
    %3495 = vmatpush1.xpose.msra.mxu0 0.0
    %3496 = vmatprep.subr.mxu0 0.0
    %3497 = vmatpush1.xpose.msra.mxu0 0.0
    %3498 = vmatprep.subr.mxu0 0.0
    %3499 = vmatpush1.xpose.msra.mxu0 0.0
    %3500 = vmatprep.subr.mxu0 0.0
    %3501 = vmatpush1.xpose.msra.mxu0 0.0
    %3502 = vmatprep.subr.mxu0 0.0
    %3503 = vmatpush1.xpose.msra.mxu0 0.0
    %3504 = vmatprep.subr.mxu0 0.0
    %3505 = vmatpush1.xpose.msra.mxu0 0.0
    %3506 = vmatprep.subr.mxu0 0.0
    %3507 = vmatpush1.xpose.msra.mxu0 0.0
    %3508 = vmatprep.subr.mxu0 0.0
    %3509 = vmatpush1.xpose.msra.mxu0 0.0
    %3510 = vmatprep.mubr.f32.mxu0 0.0
    %3511 = vmatmul.mubr.f32.gmra.mrb[0].mxu0 %v3442
    %v3512 = vpop.f32.mrb[0].mxu0
    %v3513 = vadd.f32 0.0, %v3512
    %v3514 = vpop.f32.mrb[0].mxu0
    %3515 = vdwg.mxu0
    %3516 = vrot.lane.b32.xlu0 %v2202, 104
    %v3517 = vpop.permute.xlu0 %3516
    %3518 = vrot.lane.b32.xlu0 %v2202, 72
    %v3519 = vpop.permute.xlu0 %3518
    %v3520 = vsel %vm191, %v3517, 0
    %v3522 = vsel %vm191, %v3519, 0
    %3524 = vmatprep.subr.mxu0 0.0
    %3525 = vmatpush1.xpose.msra.mxu0 %v3522
    %3526 = vmatprep.subr.mxu0 0.0
    %3527 = vmatpush1.xpose.msra.mxu0 0.0
    %3528 = vmatprep.subr.mxu0 0.0
    %3529 = vmatpush1.xpose.msra.mxu0 0.0
    %3530 = vmatprep.subr.mxu0 0.0
    %3531 = vmatpush1.xpose.msra.mxu0 0.0
    %3532 = vmatprep.subr.mxu0 0.0
    %3533 = vmatpush1.xpose.msra.mxu0 0.0
    %3534 = vmatprep.subr.mxu0 0.0
    %3535 = vmatpush1.xpose.msra.mxu0 0.0
    %3536 = vmatprep.subr.mxu0 0.0
    %3537 = vmatpush1.xpose.msra.mxu0 0.0
    %3538 = vmatprep.subr.mxu0 0.0
    %3539 = vmatpush1.xpose.msra.mxu0 0.0
    %3540 = vmatprep.subr.mxu0 0.0
    %3541 = vmatpush1.xpose.msra.mxu0 0.0
    %3542 = vmatprep.subr.mxu0 0.0
    %3543 = vmatpush1.xpose.msra.mxu0 0.0
    %3544 = vmatprep.subr.mxu0 0.0
    %3545 = vmatpush1.xpose.msra.mxu0 0.0
    %3546 = vmatprep.subr.mxu0 0.0
    %3547 = vmatpush1.xpose.msra.mxu0 0.0
    %3548 = vmatprep.subr.mxu0 0.0
    %3549 = vmatpush1.xpose.msra.mxu0 0.0
    %3550 = vmatprep.subr.mxu0 0.0
    %3551 = vmatpush1.xpose.msra.mxu0 0.0
    %3552 = vmatprep.subr.mxu0 0.0
    %3553 = vmatpush1.xpose.msra.mxu0 0.0
    %3554 = vmatprep.subr.mxu0 0.0
    %3555 = vmatpush1.xpose.msra.mxu0 0.0
    %3556 = vmatprep.subr.mxu0 0.0
    %3557 = vmatpush1.xpose.msra.mxu0 0.0
    %3558 = vmatprep.subr.mxu0 0.0
    %3559 = vmatpush1.xpose.msra.mxu0 0.0
    %3560 = vmatprep.subr.mxu0 0.0
    %3561 = vmatpush1.xpose.msra.mxu0 0.0
    %3562 = vmatprep.subr.mxu0 0.0
    %3563 = vmatpush1.xpose.msra.mxu0 0.0
    %3564 = vmatprep.subr.mxu0 0.0
    %3565 = vmatpush1.xpose.msra.mxu0 0.0
    %3566 = vmatprep.subr.mxu0 0.0
    %3567 = vmatpush1.xpose.msra.mxu0 0.0
    %3568 = vmatprep.subr.mxu0 0.0
    %3569 = vmatpush1.xpose.msra.mxu0 0.0
    %3570 = vmatprep.subr.mxu0 0.0
    %3571 = vmatpush1.xpose.msra.mxu0 0.0
    %3572 = vmatprep.subr.mxu0 0.0
    %3573 = vmatpush1.xpose.msra.mxu0 0.0
    %3574 = vmatprep.subr.mxu0 0.0
    %3575 = vmatpush1.xpose.msra.mxu0 0.0
    %3576 = vmatprep.subr.mxu0 0.0
    %3577 = vmatpush1.xpose.msra.mxu0 0.0
    %3578 = vmatprep.subr.mxu0 0.0
    %3579 = vmatpush1.xpose.msra.mxu0 0.0
    %3580 = vmatprep.subr.mxu0 0.0
    %3581 = vmatpush1.xpose.msra.mxu0 0.0
    %3582 = vmatprep.subr.mxu0 0.0
    %3583 = vmatpush1.xpose.msra.mxu0 0.0
    %3584 = vmatprep.subr.mxu0 0.0
    %3585 = vmatpush1.xpose.msra.mxu0 0.0
    %3586 = vmatprep.subr.mxu0 0.0
    %3587 = vmatpush1.xpose.msra.mxu0 0.0
    %3588 = vmatprep.mubr.f32.mxu0 0.0
    %3589 = vmatmul.mubr.f32.gmra.mrb[0].mxu0 %v3520
    %v3590 = vpop.f32.mrb[0].mxu0
    %v3591 = vadd.f32 0.0, %v3590
    %v3592 = vpop.f32.mrb[0].mxu0
    %3593 = vdwg.mxu0
    %v3594 = vsel %vm191, %v3513, -inf
    %3595 = vmax.xlane.f32.xlu0 %v3594
    %v3596 = vpop.xlane.xlu0 %3595
    %v3597 = vsel %vm191, %v3591, -inf
    %3598 = vmax.xlane.f32.xlu0 %v3597
    %v3599 = vpop.xlane.xlu0 %3598
    %v3600 = vsub.f32 %v3513, %v3596
    %v3601 = vsub.f32 %v3591, %v3599
    %v3602 = vmul.f32 %v3600, 1.442695
    %v3603 = vpow.pop %v3602
    %v3604 = vmul.f32 %v3601, 1.442695
    %v3605 = vpow.pop %v3604
    %v3606 = vsel %vm191, %v3603, 0.0
    %3607 = vadd.xlane.f32.xlu0 %v3606
    %v3608 = vpop.xlane.xlu0 %3607
    %v3609 = vsel %vm191, %v3605, 0.0
    %3610 = vadd.xlane.f32.xlu0 %v3609
    %v3611 = vpop.xlane.xlu0 %3610
    %v3612 = vrcp.pop %v3608
    %v3613 = vrcp.pop %v3611
    %v3614 = vmul.f32 %v3603, %v3612
    %v3615 = vmul.f32 %v3605, %v3613
    %3616 = vrot.lane.b32.xlu0 %v2197, 40
    %v3617 = vpop.permute.xlu0 %3616
    %v3620 = vsel %vm191, %v3614, 0
    %3622 = vmatprep.subr.mxu0 0.0
    %3623 = vmatpush1.msra.mxu0 %v3617
    %3624 = vmatprep.subr.mxu0 0.0
    %3625 = vmatpush1.msra.mxu0 0.0
    %3626 = vmatprep.subr.mxu0 0.0
    %3627 = vmatpush1.msra.mxu0 0.0
    %3628 = vmatprep.subr.mxu0 0.0
    %3629 = vmatpush1.msra.mxu0 0.0
    %3630 = vmatprep.subr.mxu0 0.0
    %3631 = vmatpush1.msra.mxu0 0.0
    %3632 = vmatprep.subr.mxu0 0.0
    %3633 = vmatpush1.msra.mxu0 0.0
    %3634 = vmatprep.subr.mxu0 0.0
    %3635 = vmatpush1.msra.mxu0 0.0
    %3636 = vmatprep.subr.mxu0 0.0
    %3637 = vmatpush1.msra.mxu0 0.0
    %3638 = vmatprep.subr.mxu0 0.0
    %3639 = vmatpush1.msra.mxu0 0.0
    %3640 = vmatprep.subr.mxu0 0.0
    %3641 = vmatpush1.msra.mxu0 0.0
    %3642 = vmatprep.subr.mxu0 0.0
    %3643 = vmatpush1.msra.mxu0 0.0
    %3644 = vmatprep.subr.mxu0 0.0
    %3645 = vmatpush1.msra.mxu0 0.0
    %3646 = vmatprep.subr.mxu0 0.0
    %3647 = vmatpush1.msra.mxu0 0.0
    %3648 = vmatprep.subr.mxu0 0.0
    %3649 = vmatpush1.msra.mxu0 0.0
    %3650 = vmatprep.subr.mxu0 0.0
    %3651 = vmatpush1.msra.mxu0 0.0
    %3652 = vmatprep.subr.mxu0 0.0
    %3653 = vmatpush1.msra.mxu0 0.0
    %3654 = vmatprep.subr.mxu0 0.0
    %3655 = vmatpush1.msra.mxu0 0.0
    %3656 = vmatprep.subr.mxu0 0.0
    %3657 = vmatpush1.msra.mxu0 0.0
    %3658 = vmatprep.subr.mxu0 0.0
    %3659 = vmatpush1.msra.mxu0 0.0
    %3660 = vmatprep.subr.mxu0 0.0
    %3661 = vmatpush1.msra.mxu0 0.0
    %3662 = vmatprep.subr.mxu0 0.0
    %3663 = vmatpush1.msra.mxu0 0.0
    %3664 = vmatprep.subr.mxu0 0.0
    %3665 = vmatpush1.msra.mxu0 0.0
    %3666 = vmatprep.subr.mxu0 0.0
    %3667 = vmatpush1.msra.mxu0 0.0
    %3668 = vmatprep.subr.mxu0 0.0
    %3669 = vmatpush1.msra.mxu0 0.0
    %3670 = vmatprep.subr.mxu0 0.0
    %3671 = vmatpush1.msra.mxu0 0.0
    %3672 = vmatprep.subr.mxu0 0.0
    %3673 = vmatpush1.msra.mxu0 0.0
    %3674 = vmatprep.subr.mxu0 0.0
    %3675 = vmatpush1.msra.mxu0 0.0
    %3676 = vmatprep.subr.mxu0 0.0
    %3677 = vmatpush1.msra.mxu0 0.0
    %3678 = vmatprep.subr.mxu0 0.0
    %3679 = vmatpush1.msra.mxu0 0.0
    %3680 = vmatprep.subr.mxu0 0.0
    %3681 = vmatpush1.msra.mxu0 0.0
    %3682 = vmatprep.subr.mxu0 0.0
    %3683 = vmatpush1.msra.mxu0 0.0
    %3684 = vmatprep.subr.mxu0 0.0
    %3685 = vmatpush1.msra.mxu0 0.0
    %3686 = vmatprep.mubr.f32.mxu0 0.0
    %3687 = vmatmul.mubr.f32.gmra.mrb[0].mxu0 %v3620
    %v3688 = vpop.f32.mrb[0].mxu0
    %v3689 = vadd.f32 0.0, %v3688
    %v3690 = vpop.f32.mrb[0].mxu0
    %3691 = vdwg.mxu0
    %3692 = vrot.lane.b32.xlu0 %v2202, 40
    %v3693 = vpop.permute.xlu0 %3692
    %v3696 = vsel %vm191, %v3615, 0
    %3698 = vmatprep.subr.mxu0 0.0
    %3699 = vmatpush1.msra.mxu0 %v3693
    %3700 = vmatprep.subr.mxu0 0.0
    %3701 = vmatpush1.msra.mxu0 0.0
    %3702 = vmatprep.subr.mxu0 0.0
    %3703 = vmatpush1.msra.mxu0 0.0
    %3704 = vmatprep.subr.mxu0 0.0
    %3705 = vmatpush1.msra.mxu0 0.0
    %3706 = vmatprep.subr.mxu0 0.0
    %3707 = vmatpush1.msra.mxu0 0.0
    %3708 = vmatprep.subr.mxu0 0.0
    %3709 = vmatpush1.msra.mxu0 0.0
    %3710 = vmatprep.subr.mxu0 0.0
    %3711 = vmatpush1.msra.mxu0 0.0
    %3712 = vmatprep.subr.mxu0 0.0
    %3713 = vmatpush1.msra.mxu0 0.0
    %3714 = vmatprep.subr.mxu0 0.0
    %3715 = vmatpush1.msra.mxu0 0.0
    %3716 = vmatprep.subr.mxu0 0.0
    %3717 = vmatpush1.msra.mxu0 0.0
    %3718 = vmatprep.subr.mxu0 0.0
    %3719 = vmatpush1.msra.mxu0 0.0
    %3720 = vmatprep.subr.mxu0 0.0
    %3721 = vmatpush1.msra.mxu0 0.0
    %3722 = vmatprep.subr.mxu0 0.0
    %3723 = vmatpush1.msra.mxu0 0.0
    %3724 = vmatprep.subr.mxu0 0.0
    %3725 = vmatpush1.msra.mxu0 0.0
    %3726 = vmatprep.subr.mxu0 0.0
    %3727 = vmatpush1.msra.mxu0 0.0
    %3728 = vmatprep.subr.mxu0 0.0
    %3729 = vmatpush1.msra.mxu0 0.0
    %3730 = vmatprep.subr.mxu0 0.0
    %3731 = vmatpush1.msra.mxu0 0.0
    %3732 = vmatprep.subr.mxu0 0.0
    %3733 = vmatpush1.msra.mxu0 0.0
    %3734 = vmatprep.subr.mxu0 0.0
    %3735 = vmatpush1.msra.mxu0 0.0
    %3736 = vmatprep.subr.mxu0 0.0
    %3737 = vmatpush1.msra.mxu0 0.0
    %3738 = vmatprep.subr.mxu0 0.0
    %3739 = vmatpush1.msra.mxu0 0.0
    %3740 = vmatprep.subr.mxu0 0.0
    %3741 = vmatpush1.msra.mxu0 0.0
    %3742 = vmatprep.subr.mxu0 0.0
    %3743 = vmatpush1.msra.mxu0 0.0
    %3744 = vmatprep.subr.mxu0 0.0
    %3745 = vmatpush1.msra.mxu0 0.0
    %3746 = vmatprep.subr.mxu0 0.0
    %3747 = vmatpush1.msra.mxu0 0.0
    %3748 = vmatprep.subr.mxu0 0.0
    %3749 = vmatpush1.msra.mxu0 0.0
    %3750 = vmatprep.subr.mxu0 0.0
    %3751 = vmatpush1.msra.mxu0 0.0
    %3752 = vmatprep.subr.mxu0 0.0
    %3753 = vmatpush1.msra.mxu0 0.0
    %3754 = vmatprep.subr.mxu0 0.0
    %3755 = vmatpush1.msra.mxu0 0.0
    %3756 = vmatprep.subr.mxu0 0.0
    %3757 = vmatpush1.msra.mxu0 0.0
    %3758 = vmatprep.subr.mxu0 0.0
    %3759 = vmatpush1.msra.mxu0 0.0
    %3760 = vmatprep.subr.mxu0 0.0
    %3761 = vmatpush1.msra.mxu0 0.0
    %3762 = vmatprep.mubr.f32.mxu0 0.0
    %3763 = vmatmul.mubr.f32.gmra.mrb[0].mxu0 %v3696
    %v3764 = vpop.f32.mrb[0].mxu0
    %v3765 = vadd.f32 0.0, %v3764
    %v3766 = vpop.f32.mrb[0].mxu0
    %3767 = vdwg.mxu0
    %v3769 = vsel %vm191, %v3689, 0
    %v3772 = vsel %vm191, %v3765, 0
    %3774 = vmatprep.subr.mxu0 0.0
    %3775 = vmatpush1.msra.mxu0 %v2071
    %3776 = vmatprep.subr.mxu0 0.0
    %3777 = vmatpush1.msra.mxu0 0.0
    %3778 = vmatprep.subr.mxu0 0.0
    %3779 = vmatpush1.msra.mxu0 0.0
    %3780 = vmatprep.subr.mxu0 0.0
    %3781 = vmatpush1.msra.mxu0 0.0
    %3782 = vmatprep.subr.mxu0 0.0
    %3783 = vmatpush1.msra.mxu0 0.0
    %3784 = vmatprep.subr.mxu0 0.0
    %3785 = vmatpush1.msra.mxu0 0.0
    %3786 = vmatprep.subr.mxu0 0.0
    %3787 = vmatpush1.msra.mxu0 0.0
    %3788 = vmatprep.subr.mxu0 0.0
    %3789 = vmatpush1.msra.mxu0 0.0
    %3790 = vmatprep.subr.mxu0 0.0
    %3791 = vmatpush1.msra.mxu0 0.0
    %3792 = vmatprep.subr.mxu0 0.0
    %3793 = vmatpush1.msra.mxu0 0.0
    %3794 = vmatprep.subr.mxu0 0.0
    %3795 = vmatpush1.msra.mxu0 0.0
    %3796 = vmatprep.subr.mxu0 0.0
    %3797 = vmatpush1.msra.mxu0 0.0
    %3798 = vmatprep.subr.mxu0 0.0
    %3799 = vmatpush1.msra.mxu0 0.0
    %3800 = vmatprep.subr.mxu0 0.0
    %3801 = vmatpush1.msra.mxu0 0.0
    %3802 = vmatprep.subr.mxu0 0.0
    %3803 = vmatpush1.msra.mxu0 0.0
    %3804 = vmatprep.subr.mxu0 0.0
    %3805 = vmatpush1.msra.mxu0 0.0
    %3806 = vmatprep.subr.mxu0 0.0
    %3807 = vmatpush1.msra.mxu0 0.0
    %3808 = vmatprep.subr.mxu0 0.0
    %3809 = vmatpush1.msra.mxu0 0.0
    %3810 = vmatprep.subr.mxu0 0.0
    %3811 = vmatpush1.msra.mxu0 0.0
    %3812 = vmatprep.subr.mxu0 0.0
    %3813 = vmatpush1.msra.mxu0 0.0
    %3814 = vmatprep.subr.mxu0 0.0
    %3815 = vmatpush1.msra.mxu0 0.0
    %3816 = vmatprep.subr.mxu0 0.0
    %3817 = vmatpush1.msra.mxu0 0.0
    %3818 = vmatprep.subr.mxu0 0.0
    %3819 = vmatpush1.msra.mxu0 0.0
    %3820 = vmatprep.subr.mxu0 0.0
    %3821 = vmatpush1.msra.mxu0 0.0
    %3822 = vmatprep.subr.mxu0 0.0
    %3823 = vmatpush1.msra.mxu0 0.0
    %3824 = vmatprep.subr.mxu0 0.0
    %3825 = vmatpush1.msra.mxu0 0.0
    %3826 = vmatprep.subr.mxu0 0.0
    %3827 = vmatpush1.msra.mxu0 0.0
    %3828 = vmatprep.subr.mxu0 0.0
    %3829 = vmatpush1.msra.mxu0 0.0
    %3830 = vmatprep.subr.mxu0 0.0
    %3831 = vmatpush1.msra.mxu0 0.0
    %3832 = vmatprep.subr.mxu0 0.0
    %3833 = vmatpush1.msra.mxu0 0.0
    %3834 = vmatprep.subr.mxu0 0.0
    %3835 = vmatpush1.msra.mxu0 0.0
    %3836 = vmatprep.subr.mxu0 0.0
    %3837 = vmatpush1.msra.mxu0 0.0
    %3838 = vmatprep.mubr.f32.mxu0 0.0
    %3839 = vmatmul.mubr.f32.gmra.mrb[0].mxu0 %v3769
    %v3840 = vpop.f32.mrb[0].mxu0
    %v3841 = vadd.f32 0.0, %v3840
    %v3842 = vpop.f32.mrb[0].mxu0
    %3843 = vmatprep.mubr.f32.mxu0 0.0
    %3844 = vmatmul.mubr.f32.gmra.mrb[0].mxu0 %v3772
    %v3845 = vpop.f32.mrb[0].mxu0
    %v3846 = vadd.f32 0.0, %v3845
    %v3847 = vpop.f32.mrb[0].mxu0
    %3848 = vdwg.mxu0
    %v3849 = vadd.f32 %v3436, %v3841
    %v3850 = vadd.f32 %v3437, %v3846
    %v3851 = vadd.f32 %v2058, %v3849
    %v3852 = vadd.f32 %v2059, %v3850
    %v3854 = vlaneseq
    %v3855 = vshrl.u32 %v3854, 7
    %v3856 = vsub.s32 0, %v3855
    %v3857 = vrot.slane %v2073, %v3856
    %v3859 = vadd.f32 %v3851, %v3857
    %v3860 = vadd.f32 %v3852, %v3857
    %v3861 = vsel %vm73, %v3859, 0.0
    %3862 = vadd.xlane.f32.xlu0 %v3861
    %v3863 = vpop.xlane.xlu0 %3862
    %v3864 = vsel %vm73, %v3860, 0.0
    %3865 = vadd.xlane.f32.xlu0 %v3864
    %v3866 = vpop.xlane.xlu0 %3865
    %v3867 = vmul.f32 %v3863, %v80
    %v3868 = vmul.f32 %v3866, %v80
    %v3869 = vsub.f32 %v3859, %v3867
    %v3870 = vsub.f32 %v3860, %v3868
    %v3871 = vmul.f32 %v3869, %v3869
    %v3872 = vmul.f32 %v3870, %v3870
    %v3873 = vsel %vm73, %v3871, 0.0
    %3874 = vadd.xlane.f32.xlu0 %v3873
    %v3875 = vpop.xlane.xlu0 %3874
    %v3876 = vsel %vm73, %v3872, 0.0
    %3877 = vadd.xlane.f32.xlu0 %v3876
    %v3878 = vpop.xlane.xlu0 %3877
    %v3879 = vmul.f32 %v3875, %v80
    %v3880 = vmul.f32 %v3878, %v80
    %v3881 = vadd.f32 %v3879, 1e-05
    %v3882 = vadd.f32 %v3880, 1e-05
    %v3883 = vrsqrt.pop %v3881
    %v3884 = vrsqrt.pop %v3882
    %v3885 = vmul.f32 %v3869, %v3883
    %v3886 = vmul.f32 %v3870, %v3884
    %v3888 = vlaneseq
    %v3889 = vshrl.u32 %v3888, 7
    %v3890 = vsub.s32 0, %v3889
    %v3891 = vrot.slane %v2080, %v3890
    %v3894 = vsel %vm73, %v3885, 0
    %v3897 = vsel %vm73, %v3886, 0
    %3899 = vmatprep.subr.mxu0 0.0
    %3900 = vmatpush1.msra.mxu0 %v2075
    %3901 = vmatprep.subr.mxu0 0.0
    %3902 = vmatpush1.msra.mxu0 %v2076
    %3903 = vmatprep.subr.mxu0 0.0
    %3904 = vmatpush1.msra.mxu0 %v2077
    %3905 = vmatprep.subr.mxu0 0.0
    %3906 = vmatpush1.msra.mxu0 %v2078
    %3907 = vmatprep.subr.mxu0 0.0
    %3908 = vmatpush1.msra.mxu0 0.0
    %3909 = vmatprep.subr.mxu0 0.0
    %3910 = vmatpush1.msra.mxu0 0.0
    %3911 = vmatprep.subr.mxu0 0.0
    %3912 = vmatpush1.msra.mxu0 0.0
    %3913 = vmatprep.subr.mxu0 0.0
    %3914 = vmatpush1.msra.mxu0 0.0
    %3915 = vmatprep.subr.mxu0 0.0
    %3916 = vmatpush1.msra.mxu0 0.0
    %3917 = vmatprep.subr.mxu0 0.0
    %3918 = vmatpush1.msra.mxu0 0.0
    %3919 = vmatprep.subr.mxu0 0.0
    %3920 = vmatpush1.msra.mxu0 0.0
    %3921 = vmatprep.subr.mxu0 0.0
    %3922 = vmatpush1.msra.mxu0 0.0
    %3923 = vmatprep.subr.mxu0 0.0
    %3924 = vmatpush1.msra.mxu0 0.0
    %3925 = vmatprep.subr.mxu0 0.0
    %3926 = vmatpush1.msra.mxu0 0.0
    %3927 = vmatprep.subr.mxu0 0.0
    %3928 = vmatpush1.msra.mxu0 0.0
    %3929 = vmatprep.subr.mxu0 0.0
    %3930 = vmatpush1.msra.mxu0 0.0
    %3931 = vmatprep.subr.mxu0 0.0
    %3932 = vmatpush1.msra.mxu0 0.0
    %3933 = vmatprep.subr.mxu0 0.0
    %3934 = vmatpush1.msra.mxu0 0.0
    %3935 = vmatprep.subr.mxu0 0.0
    %3936 = vmatpush1.msra.mxu0 0.0
    %3937 = vmatprep.subr.mxu0 0.0
    %3938 = vmatpush1.msra.mxu0 0.0
    %3939 = vmatprep.subr.mxu0 0.0
    %3940 = vmatpush1.msra.mxu0 0.0
    %3941 = vmatprep.subr.mxu0 0.0
    %3942 = vmatpush1.msra.mxu0 0.0
    %3943 = vmatprep.subr.mxu0 0.0
    %3944 = vmatpush1.msra.mxu0 0.0
    %3945 = vmatprep.subr.mxu0 0.0
    %3946 = vmatpush1.msra.mxu0 0.0
    %3947 = vmatprep.subr.mxu0 0.0
    %3948 = vmatpush1.msra.mxu0 0.0
    %3949 = vmatprep.subr.mxu0 0.0
    %3950 = vmatpush1.msra.mxu0 0.0
    %3951 = vmatprep.subr.mxu0 0.0
    %3952 = vmatpush1.msra.mxu0 0.0
    %3953 = vmatprep.subr.mxu0 0.0
    %3954 = vmatpush1.msra.mxu0 0.0
    %3955 = vmatprep.subr.mxu0 0.0
    %3956 = vmatpush1.msra.mxu0 0.0
    %3957 = vmatprep.subr.mxu0 0.0
    %3958 = vmatpush1.msra.mxu0 0.0
    %3959 = vmatprep.subr.mxu0 0.0
    %3960 = vmatpush1.msra.mxu0 0.0
    %3961 = vmatprep.subr.mxu0 0.0
    %3962 = vmatpush1.msra.mxu0 0.0
    %3963 = vmatprep.mubr.f32.mxu0 0.0
    %3964 = vmatmul.mubr.f32.gmra.mrb[0].mxu0 %v3894
    %v3965 = vpop.f32.mrb[0].mxu0
    %v3966 = vadd.f32 %v3891, %v3965
    %v3967 = vpop.f32.mrb[0].mxu0
    %3968 = vmatprep.mubr.f32.mxu0 0.0
    %3969 = vmatmul.mubr.f32.gmra.mrb[0].mxu0 %v3897
    %v3970 = vpop.f32.mrb[0].mxu0
    %v3971 = vadd.f32 %v3891, %v3970
    %v3972 = vpop.f32.mrb[0].mxu0
    %3973 = vdwg.mxu0
    %v3974 = vmul.f32 %v3966, 0.5
    %v3975 = vmul.f32 %v3971, 0.5
    %v3976 = vmul.f32 %v3966, 0.70710677
    %v3977 = vmul.f32 %v3971, 0.70710677
    %v3978 = verf.f32.pop %v3976
    %v3979 = verf.f32.pop %v3977
    %v3980 = vadd.f32 %v3978, 1.0
    %v3981 = vadd.f32 %v3979, 1.0
    %v3982 = vmul.f32 %v3974, %v3980
    %v3983 = vmul.f32 %v3975, %v3981
    %v3985 = vsel %vm1968, %v3982, 0
    %v3988 = vsel %vm1968, %v3983, 0
    %3990 = vmatprep.subr.mxu0 0.0
    %3991 = vmatpush1.msra.mxu0 %v2082
    %3992 = vmatprep.subr.mxu0 0.0
    %3993 = vmatpush1.msra.mxu0 %v2083
    %3994 = vmatprep.subr.mxu0 0.0
    %3995 = vmatpush1.msra.mxu0 %v2084
    %3996 = vmatprep.subr.mxu0 0.0
    %3997 = vmatpush1.msra.mxu0 %v2085
    %3998 = vmatprep.subr.mxu0 0.0
    %3999 = vmatpush1.msra.mxu0 %v2086
    %4000 = vmatprep.subr.mxu0 0.0
    %4001 = vmatpush1.msra.mxu0 %v2087
    %4002 = vmatprep.subr.mxu0 0.0
    %4003 = vmatpush1.msra.mxu0 %v2088
    %4004 = vmatprep.subr.mxu0 0.0
    %4005 = vmatpush1.msra.mxu0 %v2089
    %4006 = vmatprep.subr.mxu0 0.0
    %4007 = vmatpush1.msra.mxu0 0.0
    %4008 = vmatprep.subr.mxu0 0.0
    %4009 = vmatpush1.msra.mxu0 0.0
    %4010 = vmatprep.subr.mxu0 0.0
    %4011 = vmatpush1.msra.mxu0 0.0
    %4012 = vmatprep.subr.mxu0 0.0
    %4013 = vmatpush1.msra.mxu0 0.0
    %4014 = vmatprep.subr.mxu0 0.0
    %4015 = vmatpush1.msra.mxu0 0.0
    %4016 = vmatprep.subr.mxu0 0.0
    %4017 = vmatpush1.msra.mxu0 0.0
    %4018 = vmatprep.subr.mxu0 0.0
    %4019 = vmatpush1.msra.mxu0 0.0
    %4020 = vmatprep.subr.mxu0 0.0
    %4021 = vmatpush1.msra.mxu0 0.0
    %4022 = vmatprep.subr.mxu0 0.0
    %4023 = vmatpush1.msra.mxu0 0.0
    %4024 = vmatprep.subr.mxu0 0.0
    %4025 = vmatpush1.msra.mxu0 0.0
    %4026 = vmatprep.subr.mxu0 0.0
    %4027 = vmatpush1.msra.mxu0 0.0
    %4028 = vmatprep.subr.mxu0 0.0
    %4029 = vmatpush1.msra.mxu0 0.0
    %4030 = vmatprep.subr.mxu0 0.0
    %4031 = vmatpush1.msra.mxu0 0.0
    %4032 = vmatprep.subr.mxu0 0.0
    %4033 = vmatpush1.msra.mxu0 0.0
    %4034 = vmatprep.subr.mxu0 0.0
    %4035 = vmatpush1.msra.mxu0 0.0
    %4036 = vmatprep.subr.mxu0 0.0
    %4037 = vmatpush1.msra.mxu0 0.0
    %4038 = vmatprep.subr.mxu0 0.0
    %4039 = vmatpush1.msra.mxu0 0.0
    %4040 = vmatprep.subr.mxu0 0.0
    %4041 = vmatpush1.msra.mxu0 0.0
    %4042 = vmatprep.subr.mxu0 0.0
    %4043 = vmatpush1.msra.mxu0 0.0
    %4044 = vmatprep.subr.mxu0 0.0
    %4045 = vmatpush1.msra.mxu0 0.0
    %4046 = vmatprep.subr.mxu0 0.0
    %4047 = vmatpush1.msra.mxu0 0.0
    %4048 = vmatprep.subr.mxu0 0.0
    %4049 = vmatpush1.msra.mxu0 0.0
    %4050 = vmatprep.subr.mxu0 0.0
    %4051 = vmatpush1.msra.mxu0 0.0
    %4052 = vmatprep.subr.mxu0 0.0
    %4053 = vmatpush1.msra.mxu0 0.0
    %4054 = vmatprep.mubr.f32.mxu0 0.0
    %4055 = vmatmul.mubr.f32.gmra.mrb[0].mxu0 %v3985
    %v4056 = vpop.f32.mrb[0].mxu0
    %v4057 = vadd.f32 0.0, %v4056
    %v4058 = vpop.f32.mrb[0].mxu0
    %4059 = vmatprep.mubr.f32.mxu0 0.0
    %4060 = vmatmul.mubr.f32.gmra.mrb[0].mxu0 %v3988
    %v4061 = vpop.f32.mrb[0].mxu0
    %v4062 = vadd.f32 0.0, %v4061
    %v4063 = vpop.f32.mrb[0].mxu0
    %4064 = vdwg.mxu0
    %v4065 = vadd.f32 %v3859, %v4057
    %v4066 = vadd.f32 %v3860, %v4062
    %v4068 = vlaneseq
    %v4069 = vshrl.u32 %v4068, 7
    %v4070 = vsub.s32 0, %v4069
    %v4071 = vrot.slane %v2091, %v4070
    %v4073 = vadd.f32 %v4065, %v4071
    %v4074 = vadd.f32 %v4066, %v4071
    %4075 = vst.msk [vmem:[#allocation5] sm:$0xff] %vm73, %v4073
    %4076 = vst.msk [vmem:[#allocation5 + $0x8] sm:$0xff] %vm73, %v4074
    // Predicated region
    $region42: #{tpu_custom_call.1} parent=1 // pred_check
      _
    $region43: #{tpu_custom_call.1} parent=1 // pred_check_branch
      %4078 = sbr.rel (0) target = $region45
    $region44: #{tpu_custom_call.1} parent=1 // pred_region
      %s4080 = ssub.s32 256, 256
      %4081 = vsyncadd [#allocation4], %s4080
      %s4082 = sshll.u32 [#allocation5], 4
      %s4083 = int_to_ptr.vmem [resolvable:$true] %s4082
      %4088 = dma.vmem_to_hbm [thread:$0]  %s4083, 256, %s9, [#allocation4], 128, 128, 8
    $region45: #{tpu_custom_call.1} parent=1 // pred_fallthru
      _
    // Predicated region
    $region46: #{tpu_custom_call.1} parent=1 // pred_check
      _
    $region47: #{tpu_custom_call.1} parent=1 // pred_check_branch
      %4090 = sbr.rel (0) target = $region49
    $region48: #{tpu_custom_call.1} parent=1 // pred_region
      %4091 = dma.done [#allocation4], 256
    $region49: #{tpu_custom_call.1} parent=1 // pred_fallthru
      _
    %4092 = vsyncpa [#allocation3], 1
    %4093 = vsyncpa [#allocation4], 1

</llo_original>
